<compile_context>
chip_gen: v6e
topology: v6e:2x2x1
jax: 0.10.0
libtpu: 0.0.40
codegen_flags: <defaults>
</compile_context>

<pallas_src>
import functools

import jax
import jax.numpy as jnp
from jax import lax
from jax.experimental import pallas as pl
from jax.experimental.pallas import tpu as pltpu

BN_EPS = 1e-5
LANE = 128


def _round_up(x, m):
    return (x + m - 1) // m * m


def _pick_divisor(n, candidates):
    for c in candidates:
        if n % c == 0 and n >= c:
            return c
    return n


def _is_v5e():
    try:
        kind = jax.devices()[0].device_kind.lower()
    except Exception:
        return False
    return ("v5 lite" in kind) or ("v5e" in kind) or ("v5litepod" in kind)


def _vmem_limit_bytes():
    """Per-generation VMEM limit: physical capacity minus headroom for
    compiler-internal scratch (v7x 64 MiB -> 48 MiB, v5e/v6e 128 MiB -> 104 MiB)."""
    cap = 64 * 1024 * 1024  # safe fallback == smallest (v7x) physical per-TC VMEM
    try:
        cap = int(pltpu.get_tpu_info().vmem_capacity_bytes)
    except Exception:
        pass
    return max(cap - 24 * 1024 * 1024, (cap * 3) // 4)


def _attend(q_tile, k_sc, v_sc, *, tk, compute_dtype, approx_recip):
    """Flash-style online-softmax attention of one query tile against the full
    VMEM-resident key/value scratch.  Only a (tq, tk) logits block is live at a
    time; running max / sum / accumulator are carried in f32."""
    tq = q_tile.shape[0]
    n_kv = k_sc.shape[0]
    iv = v_sc.shape[1]
    n_blk = n_kv // tk

    def body(t, carry):
        m, l, acc = carry
        off = pl.multiple_of(t * tk, tk)
        k_blk = k_sc[pl.ds(off, tk), :]
        v_blk = v_sc[pl.ds(off, tk), :]
        # Contract the channel dims directly -> (tq, tk); no k^T materialization.
        s = lax.dot_general(q_tile, k_blk,
                            dimension_numbers=(((1,), (1,)), ((), ())),
                            preferred_element_type=jnp.float32)
        m_new = jnp.maximum(m, jnp.max(s, axis=-1, keepdims=True))
        alpha = jnp.exp(m - m_new)
        p = jnp.exp(s - m_new)
        l_new = alpha * l + jnp.sum(p, axis=-1, keepdims=True)
        acc_new = alpha * acc + jnp.dot(p.astype(compute_dtype), v_blk,
                                        preferred_element_type=jnp.float32)
        return m_new, l_new, acc_new

    m0 = jnp.full((tq, 1), -jnp.inf, dtype=jnp.float32)
    l0 = jnp.zeros((tq, 1), dtype=jnp.float32)
    acc0 = jnp.zeros((tq, iv), dtype=jnp.float32)
    _, l, acc = lax.fori_loop(0, n_blk, body, (m0, l0, acc0))
    if approx_recip:
        return acc * pl.reciprocal(l, approx=True)  # EUP slot, ~1e-3 rel error
    return acc / l


def _bi_nonlocal_kernel(
    a_hbm, b_hbm,                       # full (B, N, Cp) f32 in HBM (pl.ANY)
    a_res_ref, b_res_ref,               # (1, tq, Cp) f32 residual tiles
    wpa_hbm, bpa_ref,                   # fused theta|g_a weights (ANY) / bias (VMEM)
    wpb_hbm, bpb_ref,                   # fused phi|g_b weights (ANY) / bias (VMEM)
    wa_ref, ba_ref, wb_ref, bb_ref,     # W_a / W_b with BN folded (used every tile)
    z_ref, zinv_ref,                    # (1, tq, Cp) outputs
    qa_sc, kb_sc, va_sc, vb_sc,         # per-batch resident projections
    *, tq, tk, proj_rows, cp, compute_dtype, approx_recip,
):
    bi = pl.program_id(0)
    qi = pl.program_id(1)

    # ---- per-batch projections, computed ONCE (qi == 0) into resident scratch.
    # The f32 input block and the projection-only weights are DMA'd into a
    # run_scoped buffer that is released afterwards (no residency during the
    # attention sweep).
    @pl.when(qi == 0)
    def _project():
        def scoped(x_buf, w_buf, sem):
            def project_one(x_hbm, w_hbm, bias_row, q_dst, v_dst):
                cp_x = pltpu.make_async_copy(x_hbm.at[bi], x_buf, sem.at[0])
                cp_w = pltpu.make_async_copy(w_hbm, w_buf, sem.at[1])
                cp_x.start()
                cp_w.start()
                cp_x.wait()
                cp_w.wait()
                n_chunks = x_buf.shape[0] // proj_rows

                def chunk(r, carry):
                    off = pl.multiple_of(r * proj_rows, proj_rows)
                    xr = x_buf[pl.ds(off, proj_rows), :].astype(compute_dtype)
                    p = jnp.dot(xr, w_buf[...],
                                preferred_element_type=jnp.float32) + bias_row
                    q_dst[pl.ds(off, proj_rows), :] = p[:, :cp].astype(compute_dtype)
                    v_dst[pl.ds(off, proj_rows), :] = p[:, cp:].astype(compute_dtype)
                    return carry

                lax.fori_loop(0, n_chunks, chunk, 0)

            # theta(a)|g_a(a) then phi(b)|g_b(b); buffers are reused so the
            # projection peak is a single (N, Cp) f32 block + one weight.
            project_one(a_hbm, wpa_hbm, bpa_ref[...], qa_sc, va_sc)
            project_one(b_hbm, wpb_hbm, bpb_ref[...], kb_sc, vb_sc)

        pl.run_scoped(
            scoped,
            pltpu.VMEM(a_hbm.shape[1:], jnp.float32),
            pltpu.VMEM(wpa_hbm.shape, compute_dtype),
            pltpu.SemaphoreType.DMA((2,)),
        )

    # ---------------------- attention for this query tile ---------------------
    row0 = pl.multiple_of(qi * tq, tq)
    q_a = qa_sc[pl.ds(row0, tq), :]     # theta(a) rows for this tile
    q_b = kb_sc[pl.ds(row0, tq), :]     # phi(b)   rows for this tile

    # Forward path: softmax_j(theta(a)_i . phi(b)_j) @ g_a(a)
    # (the module's "v_a" quirk is intentional and kept).
    y = _attend(q_a, kb_sc, va_sc, tk=tk, compute_dtype=compute_dtype,
                approx_recip=approx_recip)
    # Reverse path == softmax(f^T) @ g_b(b), computed as role-swapped attention
    # (queries = phi(b) tile, keys = theta(a)) -> no NxN transpose.
    y_inv = _attend(q_b, qa_sc, vb_sc, tk=tk, compute_dtype=compute_dtype,
                    approx_recip=approx_recip)

    # W_a / W_b 1x1 conv with eval-mode BatchNorm folded in, plus residual.
    z_ref[0] = (jnp.dot(y.astype(compute_dtype), wa_ref[...],
                        preferred_element_type=jnp.float32)
                + ba_ref[...] + a_res_ref[0]).astype(z_ref.dtype)
    zinv_ref[0] = (jnp.dot(y_inv.astype(compute_dtype), wb_ref[...],
                           preferred_element_type=jnp.float32)
                   + bb_ref[...] + b_res_ref[0]).astype(zinv_ref.dtype)


def bi_nonlocal_forward(a, b, params, *, compute_dtype=jnp.bfloat16,
                        out_dtype=jnp.float32, approx_softmax_recip=True,
                        tq=None, data_format="NCHW"):
    """Forward pass of _BiNonLocalBlockND (2D, bn_layer=True, eval-mode BN).

    a, b: NCHW float32 arrays (or (B, N, C) channels-last with data_format="NLC").
    compute_dtype: MXU-operand dtype (bfloat16 default; accumulation is f32).
    out_dtype: output dtype (set to bfloat16 to halve output HBM writeback).
    approx_softmax_recip: use the EUP approximate reciprocal in the softmax
      denominator (~1e-3 relative deviation); set False for exact division.
    """
    if data_format == "NCHW":
        B, C, H, W = a.shape
        N = H * W
    elif data_format == "NLC":
        B, N, C = a.shape
        H = W = None
    else:
        raise ValueError(f"unknown data_format {data_format!r}")

    I = params["wg_a"].shape[1]
    Cp = _round_up(C, LANE)
    Ip = _round_up(I, LANE)

    if tq is None:
        # v6e/v7x MXUs are 2x256x256 -> fill them with 256-row query tiles;
        # v5e's MXU is 4x128x128 -> 128 is the natural fit there.
        prefer = 128 if _is_v5e() else 256
        tq = _pick_divisor(N, (prefer, 256, 128))
    assert N % tq == 0, "query tile must divide N"
    n_q = N // tq
    tk = _pick_divisor(N, (1024, 512, 256, 128))   # online-softmax key tile
    proj_rows = _pick_divisor(N, (512, 256, 128))  # projection row chunk

    # --- host-side layout prep -------------------------------------------------
    def to_nlc(x):
        if data_format == "NCHW":
            x = jnp.transpose(x.reshape(B, C, N), (0, 2, 1))
        return jnp.pad(x.astype(jnp.float32), ((0, 0), (0, 0), (0, Cp - C)))
    # TODO(synk): for NCHW callers this transpose+pad is an extra HBM round trip
    # over a/b (and the inverse over z/z_inv); callers holding channels-last
    # activations should pass data_format="NLC" to skip it entirely.

    a_f = to_nlc(a)
    b_f = to_nlc(b)

    def pad_mat(w, rows, cols):
        w = w.astype(jnp.float32)
        return jnp.pad(w, ((0, rows - w.shape[0]), (0, cols - w.shape[1])))

    # Fold eval-mode BatchNorm (gamma, beta, running stats) into W_a / W_b.
    def fold_bn(w, bias, bn):
        gamma, beta, mean, var = bn[0], bn[1], bn[2], bn[3]
        scale = gamma * jax.lax.rsqrt(var + BN_EPS)
        return w * scale[None, :], (bias - mean[None, :]) * scale[None, :] + beta[None, :]

    wa_eff, ba_eff = fold_bn(params["wa"], params["ba"], params["bn_a"])
    wb_eff, bb_eff = fold_bn(params["wb"], params["bb"], params["bn_b"])

    # Fuse theta|g_a (and phi|g_b) into one (Cp, Cp+Ip) projection matrix so the
    # per-batch projection is a single MXU matmul per input.
    wproj_a = jnp.concatenate([pad_mat(params["wth"], Cp, Cp),
                               pad_mat(params["wg_a"], Cp, Ip)], axis=1).astype(compute_dtype)
    bproj_a = jnp.concatenate([pad_mat(params["bth"], 1, Cp),
                               pad_mat(params["bg_a"], 1, Ip)], axis=1)
    wproj_b = jnp.concatenate([pad_mat(params["wph"], Cp, Cp),
                               pad_mat(params["wg_b"], Cp, Ip)], axis=1).astype(compute_dtype)
    bproj_b = jnp.concatenate([pad_mat(params["bph"], 1, Cp),
                               pad_mat(params["bg_b"], 1, Ip)], axis=1)

    wa_p = pad_mat(wa_eff, Ip, Cp).astype(compute_dtype)
    ba_p = pad_mat(ba_eff, 1, Cp)
    wb_p = pad_mat(wb_eff, Ip, Cp).astype(compute_dtype)
    bb_p = pad_mat(bb_eff, 1, Cp)

    # --- VMEM budget (all-resident design) --------------------------------------
    cd = jnp.dtype(compute_dtype).itemsize
    od = jnp.dtype(out_dtype).itemsize
    vmem_limit = _vmem_limit_bytes()
    vmem_est = (
        2 * N * Cp * cd + 2 * N * Ip * cd              # resident projections
        + N * Cp * 4 + Cp * (Cp + Ip) * cd             # qi==0 projection scope
        + 2 * 2 * tq * Cp * 4                          # a/b residual tiles (2 bufs)
        + 2 * 2 * tq * Cp * od                         # z/z_inv tiles (2 bufs)
        + 2 * 2 * Ip * Cp * cd                         # wa/wb weights (2 bufs)
        + 3 * tq * tk * 4 + 2 * tq * Ip * 4            # softmax block + accumulators
        + 4 * 1024 * 1024                              # misc compiler temporaries
    )
    if vmem_est > vmem_limit:
        # TODO(synk): add a streamed-K/V fallback (pltpu.emit_pipeline over a
        # key-tile axis from HBM) instead of failing when the per-batch working
        # set does not fit this generation's VMEM.
        raise ValueError(
            f"per-batch working set (~{vmem_est >> 20} MiB) exceeds the VMEM "
            f"budget ({vmem_limit >> 20} MiB); reduce N/C or tq={tq}")

    any_spec = pl.BlockSpec(memory_space=pl.ANY)
    tile_spec = pl.BlockSpec((1, tq, Cp), lambda i, j: (i, j, 0))
    const_spec = lambda arr: pl.BlockSpec(arr.shape, lambda i, j: (0, 0))

    flops = int(B * (4 * N * Cp * (Cp + Ip)      # projections
                     + 4 * N * N * (Cp + Ip)     # two attention paths (QK + PV)
                     + 4 * N * Ip * Cp))         # W_a / W_b output matmuls
    bytes_accessed = int(4 * B * N * Cp * 4      # a, b read twice (projection + residual)
                         + 2 * B * N * Cp * od   # z, z_inv writeback
                         + 2 * Cp * (Cp + Ip) * cd + 2 * Ip * Cp * cd)
    cost = pl.CostEstimate(flops=flops, transcendentals=int(2 * B * N * N),
                           bytes_accessed=bytes_accessed)

    kernel = functools.partial(
        _bi_nonlocal_kernel, tq=tq, tk=tk, proj_rows=proj_rows, cp=Cp,
        compute_dtype=compute_dtype, approx_recip=approx_softmax_recip)

    z_f, zinv_f = pl.pallas_call(
        kernel,
        grid_spec=pltpu.PrefetchScalarGridSpec(
            num_scalar_prefetch=0,
            grid=(B, n_q),
            in_specs=[any_spec, any_spec,                       # a, b (projection)
                      tile_spec, tile_spec,                     # a, b (residual tiles)
                      any_spec, const_spec(bproj_a),            # theta|g_a weights
                      any_spec, const_spec(bproj_b),            # phi|g_b weights
                      const_spec(wa_p), const_spec(ba_p),       # W_a (+BN folded)
                      const_spec(wb_p), const_spec(bb_p)],      # W_b (+BN folded)
            out_specs=(tile_spec, tile_spec),
            scratch_shapes=[
                pltpu.VMEM((N, Cp), compute_dtype),   # theta(a)
                pltpu.VMEM((N, Cp), compute_dtype),   # phi(b)
                pltpu.VMEM((N, Ip), compute_dtype),   # g_a(a)
                pltpu.VMEM((N, Ip), compute_dtype),   # g_b(b)
            ],
        ),
        out_shape=(
            jax.ShapeDtypeStruct((B, N, Cp), out_dtype),
            jax.ShapeDtypeStruct((B, N, Cp), out_dtype),
        ),
        compiler_params=pltpu.CompilerParams(
            # Batch axis may shard across TensorCores (keep B >= 2 on v7x, which
            # has 2 TCs); query-tile axis reuses per-batch scratch -> sequential.
            dimension_semantics=("parallel", "arbitrary"),
            vmem_limit_bytes=vmem_limit,
        ),
        cost_estimate=cost,
    )(a_f, b_f, a_f, b_f, wproj_a, bproj_a, wproj_b, bproj_b,
      wa_p, ba_p, wb_p, bb_p)

    def from_out(x):
        x = x[:, :, :C]
        if data_format == "NCHW":
            x = jnp.transpose(x, (0, 2, 1)).reshape(B, C, H, W)
        return x

    return from_out(z_f), from_out(zinv_f)


def init_params(key, in_channels, inter_channels):
    """Deterministic synthetic parameters mirroring the module's __init__ shapes.

    1x1 conv weights stored as (Cin, Cout) so the kernel can use x @ W.
    BN params stored as a (4, C) stack: [gamma, beta, running_mean, running_var];
    per the module, BN gamma and beta are zero-initialized.
    """
    ks = jax.random.split(key, 12)
    u = lambda k, shape, scale=0.5: jax.random.uniform(
        k, shape, jnp.float32, minval=-scale, maxval=scale)

    C, I = in_channels, inter_channels
    return {
        "wg_a": u(ks[0], (C, I)), "bg_a": u(ks[1], (1, I)),
        "wg_b": u(ks[2], (C, I)), "bg_b": u(ks[3], (1, I)),
        "wth": u(ks[4], (C, C)), "bth": u(ks[5], (1, C)),
        "wph": u(ks[6], (C, C)), "bph": u(ks[7], (1, C)),
        "wa": u(ks[8], (I, C)), "ba": u(ks[9], (1, C)),
        "wb": u(ks[10], (I, C)), "bb": u(ks[11], (1, C)),
        "bn_a": jnp.stack([jnp.zeros((C,)), jnp.zeros((C,)),
                           jnp.zeros((C,)), jnp.ones((C,))]).astype(jnp.float32),
        "bn_b": jnp.stack([jnp.zeros((C,)), jnp.zeros((C,)),
                           jnp.zeros((C,)), jnp.ones((C,))]).astype(jnp.float32),
    }


def reference_forward(a, b, params):
    """Pure-JAX reference mirroring the PyTorch forward (for verification)."""
    B, C, H, W = a.shape
    N = H * W
    a_f = jnp.transpose(a.reshape(B, C, N), (0, 2, 1))
    b_f = jnp.transpose(b.reshape(B, C, N), (0, 2, 1))

    v_a = a_f @ params["wg_a"] + params["bg_a"]
    v_b = b_f @ params["wg_b"] + params["bg_b"]
    q_a = a_f @ params["wth"] + params["bth"]
    k_b = b_f @ params["wph"] + params["bph"]
    f = jnp.einsum("bnc,bmc->bnm", q_a, k_b)
    p = jax.nn.softmax(f, axis=-1)
    pt = jax.nn.softmax(jnp.swapaxes(f, 1, 2), axis=-1)
    y = p @ v_a
    y_inv = pt @ v_b

    def wbn(yy, w, bias, bn):
        wy = yy @ w + bias
        gamma, beta, mean, var = bn[0], bn[1], bn[2], bn[3]
        return (wy - mean) * jax.lax.rsqrt(var + BN_EPS) * gamma + beta

    z = wbn(y, params["wa"], params["ba"], params["bn_a"]) + a_f
    zinv = wbn(y_inv, params["wb"], params["bb"], params["bn_b"]) + b_f
    z = jnp.transpose(z, (0, 2, 1)).reshape(B, C, H, W)
    zinv = jnp.transpose(zinv, (0, 2, 1)).reshape(B, C, H, W)
    return z, zinv


if __name__ == "__main__":
    key = jax.random.PRNGKey(0)
    k_a, k_b, k_p, k_bn = jax.random.split(key, 4)

    B, C, H, W = 2, 4, 16, 16          # B >= 2 keeps both v7x TensorCores busy
    inter = max(C // 2, 1)             # inter_channels default: in_channels // 2

    a = jax.random.normal(k_a, (B, C, H, W), dtype=jnp.float32)
    b = jax.random.normal(k_b, (B, C, H, W), dtype=jnp.float32)

    params = init_params(k_p, C, inter)
    # Non-trivial BatchNorm stats/affine so the attention + folded W+BN paths
    # are exercised end-to-end (the module's default zero-init makes z == a).
    kb1, kb2, kb3, kb4, kb5, kb6, kb7, kb8 = jax.random.split(k_bn, 8)

    def rand_bn(kg, kbb, km, kv):
        return jnp.stack([
            jax.random.uniform(kg, (C,), minval=0.5, maxval=1.5),
            jax.random.uniform(kbb, (C,), minval=-0.5, maxval=0.5),
            jax.random.uniform(km, (C,), minval=-0.5, maxval=0.5),
            jax.random.uniform(kv, (C,), minval=0.5, maxval=1.5),
        ]).astype(jnp.float32)

    params["bn_a"] = rand_bn(kb1, kb2, kb3, kb4)
    params["bn_b"] = rand_bn(kb5, kb6, kb7, kb8)

    z_ref, zinv_ref = reference_forward(a, b, params)

    # 1) exact-math path (f32 MXU operands, exact softmax divide): semantics check.
    z32, zinv32 = bi_nonlocal_forward(a, b, params, compute_dtype=jnp.float32,
                                      approx_softmax_recip=False)
    jax.block_until_ready((z32, zinv32))
    assert jnp.allclose(z32, z_ref, atol=1e-4, rtol=1e-4), "z mismatch (f32 path)"
    assert jnp.allclose(zinv32, zinv_ref, atol=1e-4, rtol=1e-4), "z_inv mismatch (f32 path)"

    # 2) default fast path (bf16 MXU operands, f32 accumulation/softmax, approx recip).
    z, zinv = bi_nonlocal_forward(a, b, params)
    jax.block_until_ready((z, zinv))
    assert jnp.allclose(z, z_ref, atol=5e-2, rtol=5e-2), "z mismatch (bf16 path)"
    assert jnp.allclose(zinv, zinv_ref, atol=5e-2, rtol=5e-2), "z_inv mismatch (bf16 path)"

    print("KERNEL_OK")
</pallas_src>

<mosaic_0001>
module attributes {stable_mosaic.version = 11 : i64} {
  func.func @_bi_nonlocal_kernel(%arg0: i32, %arg1: i32, %arg2: memref<2x256x128xf32, #tpu.memory_space<any>>, %arg3: memref<2x256x128xf32, #tpu.memory_space<any>>, %arg4: memref<1x256x128xf32, #tpu.memory_space<vmem>>, %arg5: memref<1x256x128xf32, #tpu.memory_space<vmem>>, %arg6: memref<128x256xf32, #tpu.memory_space<any>>, %arg7: memref<1x256xf32, #tpu.memory_space<vmem>>, %arg8: memref<128x256xf32, #tpu.memory_space<any>>, %arg9: memref<1x256xf32, #tpu.memory_space<vmem>>, %arg10: memref<128x128xf32, #tpu.memory_space<vmem>>, %arg11: memref<1x128xf32, #tpu.memory_space<vmem>>, %arg12: memref<128x128xf32, #tpu.memory_space<vmem>>, %arg13: memref<1x128xf32, #tpu.memory_space<vmem>>, %arg14: memref<1x256x128xf32, #tpu.memory_space<vmem>>, %arg15: memref<1x256x128xf32, #tpu.memory_space<vmem>>, %arg16: memref<256x128xf32, #tpu.memory_space<vmem>>, %arg17: memref<256x128xf32, #tpu.memory_space<vmem>>, %arg18: memref<256x128xf32, #tpu.memory_space<vmem>>, %arg19: memref<256x128xf32, #tpu.memory_space<vmem>>) attributes {dimension_semantics = [#tpu.dimension_semantics<parallel>, #tpu.dimension_semantics<arbitrary>], iteration_bounds = array<i64: 2, 1>, scalar_prefetch = 0 : i64, scratch_operands = 4 : i64, tpu.core_type = #tpu.core_type<tc>, window_params = [{}, {}, {transform_indices = @transform_2, window_bounds = array<i64: 1, 256, 128>}, {transform_indices = @transform_3, window_bounds = array<i64: 1, 256, 128>}, {}, {pipeline_mode = #tpu.pipeline_mode<synchronous>, transform_indices = @transform_5, window_bounds = array<i64: 1, 256>}, {}, {pipeline_mode = #tpu.pipeline_mode<synchronous>, transform_indices = @transform_7, window_bounds = array<i64: 1, 256>}, {pipeline_mode = #tpu.pipeline_mode<synchronous>, transform_indices = @transform_8, window_bounds = array<i64: 128, 128>}, {pipeline_mode = #tpu.pipeline_mode<synchronous>, transform_indices = @transform_9, window_bounds = array<i64: 1, 128>}, {pipeline_mode = #tpu.pipeline_mode<synchronous>, transform_indices = @transform_10, window_bounds = array<i64: 128, 128>}, {pipeline_mode = #tpu.pipeline_mode<synchronous>, transform_indices = @transform_11, window_bounds = array<i64: 1, 128>}, {transform_indices = @transform_12, window_bounds = array<i64: 1, 256, 128>}, {transform_indices = @transform_13, window_bounds = array<i64: 1, 256, 128>}]} {
    %c0_i32 = arith.constant 0 : i32
    %0 = arith.cmpi eq, %arg1, %c0_i32 : i32
    %1 = arith.extui %0 : i1 to i32
    %c0_i32_0 = arith.constant 0 : i32
    %2 = arith.cmpi ne, %1, %c0_i32_0 : i32
    scf.if %2 {
      "tpu.region"() ({
        %alloca = memref.alloca() : memref<256x128xf32, #tpu.memory_space<vmem>>
        %alloca_46 = memref.alloca() : memref<128x256xf32, #tpu.memory_space<vmem>>
        %87 = tpu.sem_alloc : memref<2x!tpu.dma_semaphore, #tpu.memory_space<semaphore_mem>>
        %c0_47 = arith.constant 0 : index
        %c0_48 = arith.constant 0 : index
        %88 = vector.load %arg7[%c0_47, %c0_48] : memref<1x256xf32, #tpu.memory_space<vmem>>, vector<1x256xf32>
        %c0_i32_49 = arith.constant 0 : i32
        %c0_i32_50 = arith.constant 0 : i32
        %c0_i32_51 = arith.constant 0 : i32
        %89 = tpu.memref_slice %arg2[%arg0, %c0_i32_50, %c0_i32_51] : memref<2x256x128xf32, #tpu.memory_space<any>> -> memref<1x256x128xf32, #tpu.memory_space<any>>
        %90 = tpu.memref_squeeze %89 : memref<1x256x128xf32, #tpu.memory_space<any>> -> memref<256x128xf32, #tpu.memory_space<any>>
        %91 = tpu.memref_slice %87[%c0_i32_49] : memref<2x!tpu.dma_semaphore, #tpu.memory_space<semaphore_mem>> -> memref<1x!tpu.dma_semaphore, #tpu.memory_space<semaphore_mem>>
        %92 = tpu.memref_squeeze %91 : memref<1x!tpu.dma_semaphore, #tpu.memory_space<semaphore_mem>> -> memref<!tpu.dma_semaphore, #tpu.memory_space<semaphore_mem>>
        tpu.enqueue_dma source(%90 : memref<256x128xf32, #tpu.memory_space<any>>) target(%alloca : memref<256x128xf32, #tpu.memory_space<vmem>>) target_semaphore(%92 : memref<!tpu.dma_semaphore, #tpu.memory_space<semaphore_mem>>)
        %c1_i32_52 = arith.constant 1 : i32
        %93 = tpu.memref_slice %87[%c1_i32_52] : memref<2x!tpu.dma_semaphore, #tpu.memory_space<semaphore_mem>> -> memref<1x!tpu.dma_semaphore, #tpu.memory_space<semaphore_mem>>
        %94 = tpu.memref_squeeze %93 : memref<1x!tpu.dma_semaphore, #tpu.memory_space<semaphore_mem>> -> memref<!tpu.dma_semaphore, #tpu.memory_space<semaphore_mem>>
        tpu.enqueue_dma source(%arg6 : memref<128x256xf32, #tpu.memory_space<any>>) target(%alloca_46 : memref<128x256xf32, #tpu.memory_space<vmem>>) target_semaphore(%94 : memref<!tpu.dma_semaphore, #tpu.memory_space<semaphore_mem>>)
        %c0_i32_53 = arith.constant 0 : i32
        %c0_i32_54 = arith.constant 0 : i32
        %c0_i32_55 = arith.constant 0 : i32
        %95 = tpu.memref_slice %arg2[%arg0, %c0_i32_54, %c0_i32_55] : memref<2x256x128xf32, #tpu.memory_space<any>> -> memref<1x256x128xf32, #tpu.memory_space<any>>
        %96 = tpu.memref_squeeze %95 : memref<1x256x128xf32, #tpu.memory_space<any>> -> memref<256x128xf32, #tpu.memory_space<any>>
        %97 = tpu.memref_slice %87[%c0_i32_53] : memref<2x!tpu.dma_semaphore, #tpu.memory_space<semaphore_mem>> -> memref<1x!tpu.dma_semaphore, #tpu.memory_space<semaphore_mem>>
        %98 = tpu.memref_squeeze %97 : memref<1x!tpu.dma_semaphore, #tpu.memory_space<semaphore_mem>> -> memref<!tpu.dma_semaphore, #tpu.memory_space<semaphore_mem>>
        tpu.wait_dma2 semaphore(%98 : memref<!tpu.dma_semaphore, #tpu.memory_space<semaphore_mem>>) src(%96 : memref<256x128xf32, #tpu.memory_space<any>>) dst(%alloca : memref<256x128xf32, #tpu.memory_space<vmem>>)
        %c1_i32_56 = arith.constant 1 : i32
        %99 = tpu.memref_slice %87[%c1_i32_56] : memref<2x!tpu.dma_semaphore, #tpu.memory_space<semaphore_mem>> -> memref<1x!tpu.dma_semaphore, #tpu.memory_space<semaphore_mem>>
        %100 = tpu.memref_squeeze %99 : memref<1x!tpu.dma_semaphore, #tpu.memory_space<semaphore_mem>> -> memref<!tpu.dma_semaphore, #tpu.memory_space<semaphore_mem>>
        tpu.wait_dma2 semaphore(%100 : memref<!tpu.dma_semaphore, #tpu.memory_space<semaphore_mem>>) src(%arg6 : memref<128x256xf32, #tpu.memory_space<any>>) dst(%alloca_46 : memref<128x256xf32, #tpu.memory_space<vmem>>)
        %c0_i32_57 = arith.constant 0 : i32
        %c0_i32_58 = arith.constant 0 : i32
        %c256_i32_59 = arith.constant 256 : i32
        %101 = arith.muli %c0_i32_58, %c256_i32_59 : i32
        %102 = tpu.assume_multiple %101, 256 : i32
        %103 = arith.index_cast %102 : i32 to index
        %c0_60 = arith.constant 0 : index
        %104 = vector.load %alloca[%103, %c0_60] : memref<256x128xf32, #tpu.memory_space<vmem>>, vector<256x128xf32>
        %c0_61 = arith.constant 0 : index
        %c0_62 = arith.constant 0 : index
        %105 = vector.load %alloca_46[%c0_61, %c0_62] : memref<128x256xf32, #tpu.memory_space<vmem>>, vector<128x256xf32>
        %cst_63 = arith.constant dense<0.000000e+00> : vector<256x256xf32>
        %106 = tpu.matmul %104, %105, %cst_63 {dimension_numbers = #tpu.dot_dimension_numbers<[1], [0], [0], [1], [0, 0, 1, 1], [], []>} : vector<256x128xf32>, vector<128x256xf32>, vector<256x256xf32> -> vector<256x256xf32>
        %107 = vector.broadcast %88 : vector<1x256xf32> to vector<256x256xf32>
        %108 = arith.addf %106, %107 : vector<256x256xf32>
        %109 = vector.extract_strided_slice %108 {offsets = [0, 0], sizes = [256, 128], strides = [1, 1]} : vector<256x256xf32> to vector<256x128xf32>
        %110 = arith.index_cast %102 : i32 to index
        %c0_64 = arith.constant 0 : index
        %111 = vector.load %arg16[%110, %c0_64] : memref<256x128xf32, #tpu.memory_space<vmem>>, vector<256x128xf32>
        tpu.vector_store %arg16[%110, %c0_64], %109 {strides = array<i32>} : memref<256x128xf32, #tpu.memory_space<vmem>>, vector<256x128xf32>,
        %112 = vector.extract_strided_slice %108 {offsets = [0, 128], sizes = [256, 128], strides = [1, 1]} : vector<256x256xf32> to vector<256x128xf32>
        %113 = arith.index_cast %102 : i32 to index
        %c0_65 = arith.constant 0 : index
        %114 = vector.load %arg18[%113, %c0_65] : memref<256x128xf32, #tpu.memory_space<vmem>>, vector<256x128xf32>
        tpu.vector_store %arg18[%113, %c0_65], %112 {strides = array<i32>} : memref<256x128xf32, #tpu.memory_space<vmem>>, vector<256x128xf32>,
        %c1_i32_66 = arith.constant 1 : i32
        %c0_67 = arith.constant 0 : index
        %c0_68 = arith.constant 0 : index
        %115 = vector.load %arg9[%c0_67, %c0_68] : memref<1x256xf32, #tpu.memory_space<vmem>>, vector<1x256xf32>
        %c0_i32_69 = arith.constant 0 : i32
        %c0_i32_70 = arith.constant 0 : i32
        %c0_i32_71 = arith.constant 0 : i32
        %116 = tpu.memref_slice %arg3[%arg0, %c0_i32_70, %c0_i32_71] : memref<2x256x128xf32, #tpu.memory_space<any>> -> memref<1x256x128xf32, #tpu.memory_space<any>>
        %117 = tpu.memref_squeeze %116 : memref<1x256x128xf32, #tpu.memory_space<any>> -> memref<256x128xf32, #tpu.memory_space<any>>
        %118 = tpu.memref_slice %87[%c0_i32_69] : memref<2x!tpu.dma_semaphore, #tpu.memory_space<semaphore_mem>> -> memref<1x!tpu.dma_semaphore, #tpu.memory_space<semaphore_mem>>
        %119 = tpu.memref_squeeze %118 : memref<1x!tpu.dma_semaphore, #tpu.memory_space<semaphore_mem>> -> memref<!tpu.dma_semaphore, #tpu.memory_space<semaphore_mem>>
        tpu.enqueue_dma source(%117 : memref<256x128xf32, #tpu.memory_space<any>>) target(%alloca : memref<256x128xf32, #tpu.memory_space<vmem>>) target_semaphore(%119 : memref<!tpu.dma_semaphore, #tpu.memory_space<semaphore_mem>>)
        %c1_i32_72 = arith.constant 1 : i32
        %120 = tpu.memref_slice %87[%c1_i32_72] : memref<2x!tpu.dma_semaphore, #tpu.memory_space<semaphore_mem>> -> memref<1x!tpu.dma_semaphore, #tpu.memory_space<semaphore_mem>>
        %121 = tpu.memref_squeeze %120 : memref<1x!tpu.dma_semaphore, #tpu.memory_space<semaphore_mem>> -> memref<!tpu.dma_semaphore, #tpu.memory_space<semaphore_mem>>
        tpu.enqueue_dma source(%arg8 : memref<128x256xf32, #tpu.memory_space<any>>) target(%alloca_46 : memref<128x256xf32, #tpu.memory_space<vmem>>) target_semaphore(%121 : memref<!tpu.dma_semaphore, #tpu.memory_space<semaphore_mem>>)
        %c0_i32_73 = arith.constant 0 : i32
        %c0_i32_74 = arith.constant 0 : i32
        %c0_i32_75 = arith.constant 0 : i32
        %122 = tpu.memref_slice %arg3[%arg0, %c0_i32_74, %c0_i32_75] : memref<2x256x128xf32, #tpu.memory_space<any>> -> memref<1x256x128xf32, #tpu.memory_space<any>>
        %123 = tpu.memref_squeeze %122 : memref<1x256x128xf32, #tpu.memory_space<any>> -> memref<256x128xf32, #tpu.memory_space<any>>
        %124 = tpu.memref_slice %87[%c0_i32_73] : memref<2x!tpu.dma_semaphore, #tpu.memory_space<semaphore_mem>> -> memref<1x!tpu.dma_semaphore, #tpu.memory_space<semaphore_mem>>
        %125 = tpu.memref_squeeze %124 : memref<1x!tpu.dma_semaphore, #tpu.memory_space<semaphore_mem>> -> memref<!tpu.dma_semaphore, #tpu.memory_space<semaphore_mem>>
        tpu.wait_dma2 semaphore(%125 : memref<!tpu.dma_semaphore, #tpu.memory_space<semaphore_mem>>) src(%123 : memref<256x128xf32, #tpu.memory_space<any>>) dst(%alloca : memref<256x128xf32, #tpu.memory_space<vmem>>)
        %c1_i32_76 = arith.constant 1 : i32
        %126 = tpu.memref_slice %87[%c1_i32_76] : memref<2x!tpu.dma_semaphore, #tpu.memory_space<semaphore_mem>> -> memref<1x!tpu.dma_semaphore, #tpu.memory_space<semaphore_mem>>
        %127 = tpu.memref_squeeze %126 : memref<1x!tpu.dma_semaphore, #tpu.memory_space<semaphore_mem>> -> memref<!tpu.dma_semaphore, #tpu.memory_space<semaphore_mem>>
        tpu.wait_dma2 semaphore(%127 : memref<!tpu.dma_semaphore, #tpu.memory_space<semaphore_mem>>) src(%arg8 : memref<128x256xf32, #tpu.memory_space<any>>) dst(%alloca_46 : memref<128x256xf32, #tpu.memory_space<vmem>>)
        %c0_i32_77 = arith.constant 0 : i32
        %c0_i32_78 = arith.constant 0 : i32
        %c256_i32_79 = arith.constant 256 : i32
        %128 = arith.muli %c0_i32_78, %c256_i32_79 : i32
        %129 = tpu.assume_multiple %128, 256 : i32
        %130 = arith.index_cast %129 : i32 to index
        %c0_80 = arith.constant 0 : index
        %131 = vector.load %alloca[%130, %c0_80] : memref<256x128xf32, #tpu.memory_space<vmem>>, vector<256x128xf32>
        %c0_81 = arith.constant 0 : index
        %c0_82 = arith.constant 0 : index
        %132 = vector.load %alloca_46[%c0_81, %c0_82] : memref<128x256xf32, #tpu.memory_space<vmem>>, vector<128x256xf32>
        %cst_83 = arith.constant dense<0.000000e+00> : vector<256x256xf32>
        %133 = tpu.matmul %131, %132, %cst_83 {dimension_numbers = #tpu.dot_dimension_numbers<[1], [0], [0], [1], [0, 0, 1, 1], [], []>} : vector<256x128xf32>, vector<128x256xf32>, vector<256x256xf32> -> vector<256x256xf32>
        %134 = vector.broadcast %115 : vector<1x256xf32> to vector<256x256xf32>
        %135 = arith.addf %133, %134 : vector<256x256xf32>
        %136 = vector.extract_strided_slice %135 {offsets = [0, 0], sizes = [256, 128], strides = [1, 1]} : vector<256x256xf32> to vector<256x128xf32>
        %137 = arith.index_cast %129 : i32 to index
        %c0_84 = arith.constant 0 : index
        %138 = vector.load %arg17[%137, %c0_84] : memref<256x128xf32, #tpu.memory_space<vmem>>, vector<256x128xf32>
        tpu.vector_store %arg17[%137, %c0_84], %136 {strides = array<i32>} : memref<256x128xf32, #tpu.memory_space<vmem>>, vector<256x128xf32>,
        %139 = vector.extract_strided_slice %135 {offsets = [0, 128], sizes = [256, 128], strides = [1, 1]} : vector<256x256xf32> to vector<256x128xf32>
        %140 = arith.index_cast %129 : i32 to index
        %c0_85 = arith.constant 0 : index
        %141 = vector.load %arg19[%140, %c0_85] : memref<256x128xf32, #tpu.memory_space<vmem>>, vector<256x128xf32>
        tpu.vector_store %arg19[%140, %c0_85], %139 {strides = array<i32>} : memref<256x128xf32, #tpu.memory_space<vmem>>, vector<256x128xf32>,
        %c1_i32_86 = arith.constant 1 : i32
        tpu.yield
      }) : () -> ()
    } else {
    }
    %c256_i32 = arith.constant 256 : i32
    %3 = arith.muli %arg1, %c256_i32 : i32
    %4 = tpu.assume_multiple %3, 256 : i32
    %5 = arith.index_cast %4 : i32 to index
    %c0 = arith.constant 0 : index
    %6 = vector.load %arg16[%5, %c0] : memref<256x128xf32, #tpu.memory_space<vmem>>, vector<256x128xf32>
    %7 = arith.index_cast %4 : i32 to index
    %c0_1 = arith.constant 0 : index
    %8 = vector.load %arg17[%7, %c0_1] : memref<256x128xf32, #tpu.memory_space<vmem>>, vector<256x128xf32>
    %cst = arith.constant 0xFF800000 : f32
    %9 = vector.broadcast %cst : f32 to vector<256x1xf32>
    %cst_2 = arith.constant 0.000000e+00 : f32
    %10 = vector.broadcast %cst_2 : f32 to vector<256x1xf32>
    %cst_3 = arith.constant 0.000000e+00 : f32
    %11 = vector.broadcast %cst_3 : f32 to vector<256x128xf32>
    %c0_i32_4 = arith.constant 0 : i32
    %c256_i32_5 = arith.constant 256 : i32
    %12 = arith.muli %c0_i32_4, %c256_i32_5 : i32
    %13 = tpu.assume_multiple %12, 256 : i32
    %14 = arith.index_cast %13 : i32 to index
    %c0_6 = arith.constant 0 : index
    %15 = vector.load %arg17[%14, %c0_6] : memref<256x128xf32, #tpu.memory_space<vmem>>, vector<256x128xf32>
    %16 = arith.index_cast %13 : i32 to index
    %c0_7 = arith.constant 0 : index
    %17 = vector.load %arg18[%16, %c0_7] : memref<256x128xf32, #tpu.memory_space<vmem>>, vector<256x128xf32>
    %cst_8 = arith.constant dense<0.000000e+00> : vector<256x256xf32>
    %18 = tpu.matmul %6, %15, %cst_8 {dimension_numbers = #tpu.dot_dimension_numbers<[1], [1], [0], [0], [0, 0, 1, 0], [], []>} : vector<256x128xf32>, vector<256x128xf32>, vector<256x256xf32> -> vector<256x256xf32>
    %cst_9 = arith.constant dense<0xFF800000> : vector<256xf32>
    %19 = vector.multi_reduction <maximumf>, %18, %cst_9 [1] : vector<256x256xf32> to vector<256xf32>
    %20 = vector.shape_cast %19 : vector<256xf32> to vector<256x1xf32>
    %21 = arith.maximumf %9, %20 : vector<256x1xf32>
    %22 = arith.subf %9, %21 : vector<256x1xf32>
    %23 = math.exp %22 : vector<256x1xf32>
    %24 = vector.broadcast %21 : vector<256x1xf32> to vector<256x256xf32>
    %25 = arith.subf %18, %24 : vector<256x256xf32>
    %26 = math.exp %25 : vector<256x256xf32>
    %27 = arith.mulf %23, %10 : vector<256x1xf32>
    %cst_10 = arith.constant dense<0.000000e+00> : vector<256xf32>
    %28 = vector.multi_reduction <add>, %26, %cst_10 [1] : vector<256x256xf32> to vector<256xf32>
    %29 = vector.shape_cast %28 : vector<256xf32> to vector<256x1xf32>
    %30 = arith.addf %27, %29 : vector<256x1xf32>
    %31 = vector.broadcast %23 : vector<256x1xf32> to vector<256x128xf32>
    %32 = arith.mulf %31, %11 : vector<256x128xf32>
    %cst_11 = arith.constant dense<0.000000e+00> : vector<256x128xf32>
    %33 = tpu.matmul %26, %17, %cst_11 {dimension_numbers = #tpu.dot_dimension_numbers<[1], [0], [0], [1], [0, 0, 1, 1], [], []>} : vector<256x256xf32>, vector<256x128xf32>, vector<256x128xf32> -> vector<256x128xf32>
    %34 = arith.addf %32, %33 : vector<256x128xf32>
    %c1_i32 = arith.constant 1 : i32
    %35 = vector.broadcast %30 : vector<256x1xf32> to vector<256x128xf32>
    %36 = arith.divf %34, %35 : vector<256x128xf32>
    %cst_12 = arith.constant 0xFF800000 : f32
    %37 = vector.broadcast %cst_12 : f32 to vector<256x1xf32>
    %cst_13 = arith.constant 0.000000e+00 : f32
    %38 = vector.broadcast %cst_13 : f32 to vector<256x1xf32>
    %cst_14 = arith.constant 0.000000e+00 : f32
    %39 = vector.broadcast %cst_14 : f32 to vector<256x128xf32>
    %c0_i32_15 = arith.constant 0 : i32
    %c256_i32_16 = arith.constant 256 : i32
    %40 = arith.muli %c0_i32_15, %c256_i32_16 : i32
    %41 = tpu.assume_multiple %40, 256 : i32
    %42 = arith.index_cast %41 : i32 to index
    %c0_17 = arith.constant 0 : index
    %43 = vector.load %arg16[%42, %c0_17] : memref<256x128xf32, #tpu.memory_space<vmem>>, vector<256x128xf32>
    %44 = arith.index_cast %41 : i32 to index
    %c0_18 = arith.constant 0 : index
    %45 = vector.load %arg19[%44, %c0_18] : memref<256x128xf32, #tpu.memory_space<vmem>>, vector<256x128xf32>
    %cst_19 = arith.constant dense<0.000000e+00> : vector<256x256xf32>
    %46 = tpu.matmul %8, %43, %cst_19 {dimension_numbers = #tpu.dot_dimension_numbers<[1], [1], [0], [0], [0, 0, 1, 0], [], []>} : vector<256x128xf32>, vector<256x128xf32>, vector<256x256xf32> -> vector<256x256xf32>
    %cst_20 = arith.constant dense<0xFF800000> : vector<256xf32>
    %47 = vector.multi_reduction <maximumf>, %46, %cst_20 [1] : vector<256x256xf32> to vector<256xf32>
    %48 = vector.shape_cast %47 : vector<256xf32> to vector<256x1xf32>
    %49 = arith.maximumf %37, %48 : vector<256x1xf32>
    %50 = arith.subf %37, %49 : vector<256x1xf32>
    %51 = math.exp %50 : vector<256x1xf32>
    %52 = vector.broadcast %49 : vector<256x1xf32> to vector<256x256xf32>
    %53 = arith.subf %46, %52 : vector<256x256xf32>
    %54 = math.exp %53 : vector<256x256xf32>
    %55 = arith.mulf %51, %38 : vector<256x1xf32>
    %cst_21 = arith.constant dense<0.000000e+00> : vector<256xf32>
    %56 = vector.multi_reduction <add>, %54, %cst_21 [1] : vector<256x256xf32> to vector<256xf32>
    %57 = vector.shape_cast %56 : vector<256xf32> to vector<256x1xf32>
    %58 = arith.addf %55, %57 : vector<256x1xf32>
    %59 = vector.broadcast %51 : vector<256x1xf32> to vector<256x128xf32>
    %60 = arith.mulf %59, %39 : vector<256x128xf32>
    %cst_22 = arith.constant dense<0.000000e+00> : vector<256x128xf32>
    %61 = tpu.matmul %54, %45, %cst_22 {dimension_numbers = #tpu.dot_dimension_numbers<[1], [0], [0], [1], [0, 0, 1, 1], [], []>} : vector<256x256xf32>, vector<256x128xf32>, vector<256x128xf32> -> vector<256x128xf32>
    %62 = arith.addf %60, %61 : vector<256x128xf32>
    %c1_i32_23 = arith.constant 1 : i32
    %63 = vector.broadcast %58 : vector<256x1xf32> to vector<256x128xf32>
    %64 = arith.divf %62, %63 : vector<256x128xf32>
    %c0_24 = arith.constant 0 : index
    %c0_25 = arith.constant 0 : index
    %65 = vector.load %arg10[%c0_24, %c0_25] : memref<128x128xf32, #tpu.memory_space<vmem>>, vector<128x128xf32>
    %cst_26 = arith.constant dense<0.000000e+00> : vector<256x128xf32>
    %66 = tpu.matmul %36, %65, %cst_26 {dimension_numbers = #tpu.dot_dimension_numbers<[1], [0], [0], [1], [0, 0, 1, 1], [], []>} : vector<256x128xf32>, vector<128x128xf32>, vector<256x128xf32> -> vector<256x128xf32>
    %c0_27 = arith.constant 0 : index
    %c0_28 = arith.constant 0 : index
    %67 = vector.load %arg11[%c0_27, %c0_28] : memref<1x128xf32, #tpu.memory_space<vmem>>, vector<1x128xf32>
    %68 = vector.broadcast %67 : vector<1x128xf32> to vector<256x128xf32>
    %69 = arith.addf %66, %68 : vector<256x128xf32>
    %c0_29 = arith.constant 0 : index
    %c0_30 = arith.constant 0 : index
    %c0_31 = arith.constant 0 : index
    %70 = vector.load %arg4[%c0_29, %c0_30, %c0_31] : memref<1x256x128xf32, #tpu.memory_space<vmem>>, vector<1x256x128xf32>
    %71 = vector.shape_cast %70 : vector<1x256x128xf32> to vector<256x128xf32>
    %72 = arith.addf %69, %71 : vector<256x128xf32>
    %c0_32 = arith.constant 0 : index
    %c0_33 = arith.constant 0 : index
    %c0_34 = arith.constant 0 : index
    %73 = vector.load %arg14[%c0_32, %c0_33, %c0_34] : memref<1x256x128xf32, #tpu.memory_space<vmem>>, vector<1x256x128xf32>
    %74 = vector.shape_cast %73 : vector<1x256x128xf32> to vector<256x128xf32>
    %75 = vector.shape_cast %72 : vector<256x128xf32> to vector<1x256x128xf32>
    tpu.vector_store %arg14[%c0_32, %c0_33, %c0_34], %75 {strides = array<i32>} : memref<1x256x128xf32, #tpu.memory_space<vmem>>, vector<1x256x128xf32>,
    %c0_35 = arith.constant 0 : index
    %c0_36 = arith.constant 0 : index
    %76 = vector.load %arg12[%c0_35, %c0_36] : memref<128x128xf32, #tpu.memory_space<vmem>>, vector<128x128xf32>
    %cst_37 = arith.constant dense<0.000000e+00> : vector<256x128xf32>
    %77 = tpu.matmul %64, %76, %cst_37 {dimension_numbers = #tpu.dot_dimension_numbers<[1], [0], [0], [1], [0, 0, 1, 1], [], []>} : vector<256x128xf32>, vector<128x128xf32>, vector<256x128xf32> -> vector<256x128xf32>
    %c0_38 = arith.constant 0 : index
    %c0_39 = arith.constant 0 : index
    %78 = vector.load %arg13[%c0_38, %c0_39] : memref<1x128xf32, #tpu.memory_space<vmem>>, vector<1x128xf32>
    %79 = vector.broadcast %78 : vector<1x128xf32> to vector<256x128xf32>
    %80 = arith.addf %77, %79 : vector<256x128xf32>
    %c0_40 = arith.constant 0 : index
    %c0_41 = arith.constant 0 : index
    %c0_42 = arith.constant 0 : index
    %81 = vector.load %arg5[%c0_40, %c0_41, %c0_42] : memref<1x256x128xf32, #tpu.memory_space<vmem>>, vector<1x256x128xf32>
    %82 = vector.shape_cast %81 : vector<1x256x128xf32> to vector<256x128xf32>
    %83 = arith.addf %80, %82 : vector<256x128xf32>
    %c0_43 = arith.constant 0 : index
    %c0_44 = arith.constant 0 : index
    %c0_45 = arith.constant 0 : index
    %84 = vector.load %arg15[%c0_43, %c0_44, %c0_45] : memref<1x256x128xf32, #tpu.memory_space<vmem>>, vector<1x256x128xf32>
    %85 = vector.shape_cast %84 : vector<1x256x128xf32> to vector<256x128xf32>
    %86 = vector.shape_cast %83 : vector<256x128xf32> to vector<1x256x128xf32>
    tpu.vector_store %arg15[%c0_43, %c0_44, %c0_45], %86 {strides = array<i32>} : memref<1x256x128xf32, #tpu.memory_space<vmem>>, vector<1x256x128xf32>,
    return
  }
  func.func @transform_2(%arg0: i32, %arg1: i32) -> (i32, i32, i32) {
    %c0_i32 = arith.constant 0 : i32
    %c0_i32_0 = arith.constant 0 : i32
    return %arg0, %arg1, %c0_i32 : i32, i32, i32
  }
  func.func @transform_3(%arg0: i32, %arg1: i32) -> (i32, i32, i32) {
    %c0_i32 = arith.constant 0 : i32
    %c0_i32_0 = arith.constant 0 : i32
    return %arg0, %arg1, %c0_i32 : i32, i32, i32
  }
  func.func @transform_5(%arg0: i32, %arg1: i32) -> (i32, i32) {
    %c0_i32 = arith.constant 0 : i32
    %c0_i32_0 = arith.constant 0 : i32
    %c0_i32_1 = arith.constant 0 : i32
    return %c0_i32, %c0_i32_0 : i32, i32
  }
  func.func @transform_7(%arg0: i32, %arg1: i32) -> (i32, i32) {
    %c0_i32 = arith.constant 0 : i32
    %c0_i32_0 = arith.constant 0 : i32
    %c0_i32_1 = arith.constant 0 : i32
    return %c0_i32, %c0_i32_0 : i32, i32
  }
  func.func @transform_8(%arg0: i32, %arg1: i32) -> (i32, i32) {
    %c0_i32 = arith.constant 0 : i32
    %c0_i32_0 = arith.constant 0 : i32
    %c0_i32_1 = arith.constant 0 : i32
    return %c0_i32, %c0_i32_0 : i32, i32
  }
  func.func @transform_9(%arg0: i32, %arg1: i32) -> (i32, i32) {
    %c0_i32 = arith.constant 0 : i32
    %c0_i32_0 = arith.constant 0 : i32
    %c0_i32_1 = arith.constant 0 : i32
    return %c0_i32, %c0_i32_0 : i32, i32
  }
  func.func @transform_10(%arg0: i32, %arg1: i32) -> (i32, i32) {
    %c0_i32 = arith.constant 0 : i32
    %c0_i32_0 = arith.constant 0 : i32
    %c0_i32_1 = arith.constant 0 : i32
    return %c0_i32, %c0_i32_0 : i32, i32
  }
  func.func @transform_11(%arg0: i32, %arg1: i32) -> (i32, i32) {
    %c0_i32 = arith.constant 0 : i32
    %c0_i32_0 = arith.constant 0 : i32
    %c0_i32_1 = arith.constant 0 : i32
    return %c0_i32, %c0_i32_0 : i32, i32
  }
  func.func @transform_12(%arg0: i32, %arg1: i32) -> (i32, i32, i32) {
    %c0_i32 = arith.constant 0 : i32
    %c0_i32_0 = arith.constant 0 : i32
    return %arg0, %arg1, %c0_i32 : i32, i32, i32
  }
  func.func @transform_13(%arg0: i32, %arg1: i32) -> (i32, i32, i32) {
    %c0_i32 = arith.constant 0 : i32
    %c0_i32_0 = arith.constant 0 : i32
    return %arg0, %arg1, %c0_i32 : i32, i32, i32
  }
}

</mosaic_0001>

<llo_original>
// kernel: tpu_custom_call.1
$region0: #{tpu_custom_call.1}
  #allocation0 [shape = 'u32[]', space=smem, size = 0x4, offset = 0x4, fixed_abs, tag = 'smem constant byte address 0x4 - core index']
  #allocation1 [shape = 'u32[144,128]{1,0:T(1,128)}', space=vmem, size = 0x12000, scoped, tag = 'internal scratch']
  #allocation2 [shape = 'f32[256,128]{1,0:T(8,128)}', space=vmem, size = 0x20000, scoped, tag = 'scratch operand']
  #allocation3 [shape = 'f32[256,128]{1,0:T(8,128)}', space=vmem, size = 0x20000, scoped, tag = 'scratch operand']
  #allocation4 [shape = 'f32[256,128]{1,0:T(8,128)}', space=vmem, size = 0x20000, scoped, tag = 'scratch operand']
  #allocation5 [shape = 'f32[256,128]{1,0:T(8,128)}', space=vmem, size = 0x20000, scoped, tag = 'scratch operand']
  #allocation20 [shape = 's32[]', space=sflag, size = 0x4, offset = 0, fixed_abs, tag = 'sflag constant byte address 0x0 - dummy sync flag']
  #allocation21 [shape = 's32[]', space=sflag, size = 0x4, offset = 0, fixed_abs, tag = 'sflag constant byte address 0x0 - dummy sync flag']
  #allocation22 [shape = 'u32[]', space=smem, size = 0x4, offset = 0x44, fixed_abs, tag = 'smem constant byte address 0x44 - assertion arg 0']
  #allocation23 [shape = 'u32[]', space=smem, size = 0x4, offset = 0x48, fixed_abs, tag = 'smem constant byte address 0x48 - assertion arg 1']
  #allocation24 [shape = 's32[]', space=sflag, size = 0x4, offset = 0, fixed_abs, tag = 'sflag constant byte address 0x0 - dummy sync flag']
  #allocation25 [shape = 's32[]', space=sflag, size = 0x4, offset = 0, fixed_abs, tag = 'sflag constant byte address 0x0 - dummy sync flag']
  #allocation26 [shape = 's32[]', space=sflag, size = 0x4, offset = 0, fixed_abs, tag = 'sflag constant byte address 0x0 - dummy sync flag']
  #allocation27 [shape = 's32[]', space=sflag, size = 0x4, offset = 0, fixed_abs, tag = 'sflag constant byte address 0x0 - dummy sync flag']
  #allocation28 [shape = 's32[]', space=sflag, size = 0x4, offset = 0, fixed_abs, tag = 'sflag constant byte address 0x0 - dummy sync flag']
  #allocation29 [shape = 's32[]', space=sflag, size = 0x4, offset = 0, fixed_abs, tag = 'sflag constant byte address 0x0 - dummy sync flag']
  %s0 = inlined_call_operand.hbm [shape: f32[2,256,128], index: 0, kind: input, shape index: {}]
  %s1 = inlined_call_operand.hbm [shape: f32[2,256,128], index: 1, kind: input, shape index: {}]
  %s2 = inlined_call_operand.hbm [shape: f32[2,256,128], index: 2, kind: input, shape index: {}]
  %s3 = inlined_call_operand.hbm [shape: f32[2,256,128], index: 3, kind: input, shape index: {}]
  %s4 = inlined_call_operand.hbm [shape: f32[128,256], index: 4, kind: input, shape index: {}]
  %s5 = inlined_call_operand.vmem [shape: f32[1,256], index: 5, kind: input, shape index: {}]
  %s6 = inlined_call_operand.hbm [shape: f32[128,256], index: 6, kind: input, shape index: {}]
  %s7 = inlined_call_operand.vmem [shape: f32[1,256], index: 7, kind: input, shape index: {}]
  %s8 = inlined_call_operand.hbm [shape: f32[128,128], index: 8, kind: input, shape index: {}]
  %s9 = inlined_call_operand.vmem [shape: f32[1,128], index: 9, kind: input, shape index: {}]
  %s10 = inlined_call_operand.hbm [shape: f32[128,128], index: 10, kind: input, shape index: {}]
  %s11 = inlined_call_operand.vmem [shape: f32[1,128], index: 11, kind: input, shape index: {}]
  %s12 = inlined_call_operand.hbm [shape: f32[2,256,128], index: 12, kind: output, shape index: {0}]
  %s13 = inlined_call_operand.hbm [shape: f32[2,256,128], index: 13, kind: output, shape index: {1}]
  %14 = xla_tuple %s12, %s13
  %s15 = sld [smem:[#allocation0]]
  $region110: #{tpu_custom_call.1} parent=0
    _
  %s17 = ssub.s32 1, %s15
  %s18 = scalar_select 0, %s17, %s15
  $region1: #{tpu_custom_call.1} parent=0
    #allocation6 [shape = 'u8[262144]{0}', space=vmem, size = 0x40000, scoped, tag = 'input window, operand 2']
    #allocation7 [shape = 's32[2]{0}', space=sflag, size = 0x8, scoped, tag = 'scoped memory for tpu_custom_call.1']
    #allocation8 [shape = 's32[2]{0}', space=sflag, size = 0x8, scoped, tag = 'scoped memory for tpu_custom_call.1']
    #allocation9 [shape = 'u8[262144]{0}', space=vmem, size = 0x40000, scoped, tag = 'input window, operand 3']
    #allocation10 [shape = 's32[2]{0}', space=sflag, size = 0x8, scoped, tag = 'scoped memory for tpu_custom_call.1']
    #allocation11 [shape = 'u8[65536]{0}', space=vmem, size = 0x10000, scoped, tag = 'input window, operand 8, single buffered']
    #allocation12 [shape = 'u8[65536]{0}', space=vmem, size = 0x10000, scoped, tag = 'input window, operand 10, single buffered']
    #allocation13 [shape = 's32[1]{0}', space=sflag, size = 0x4, scoped, tag = 'scoped memory for tpu_custom_call.1']
    #allocation14 [shape = 'u8[262144]{0}', space=vmem, size = 0x40000, scoped, tag = 'output window, operand 0']
    #allocation15 [shape = 'u8[262144]{0}', space=vmem, size = 0x40000, scoped, tag = 'output window, operand 1']
    #allocation16 [shape = 's32[2]{0}', space=sflag, size = 0x8, scoped, tag = 'scoped memory for tpu_custom_call.1']
    %19 = vsyncpa [#allocation7], 0
    %s20 = scalar_lea.sflag [#allocation7], 1
    %21 = vsyncpa %s20, 0
    %22 = vsyncpa [#allocation10], 0
    %s23 = scalar_lea.sflag [#allocation10], 1
    %24 = vsyncpa %s23, 0
    %25 = vsyncpa [#allocation13], 0
    %26 = vsyncpa [#allocation8], 0
    %s27 = scalar_lea.sflag [#allocation8], 1
    %28 = vsyncpa %s27, 0
    %29 = vsyncpa [#allocation16], 0
    %s30 = scalar_lea.sflag [#allocation16], 1
    %31 = vsyncpa %s30, 0
    loop: start=0, step=1, limit=4
    $region2: #{tpu_custom_call.1} parent=1 // loop_pre_header
      _
    $region3: #{tpu_custom_call.1} parent=1 // loop_header
      %s33 = sphi 0, %s37
      %p34 = scmp.ge.s32.totalorder %s33, 4
      %s40 = sphi 0, %s52
      %s41 = sphi 0, %s48
      %s42 = sphi 0, %s40
      %s43 = sphi 0, %s41
      %s44 = sphi 0, %s42
      %s45 = sphi 0, %s43
      %s57 = sphi 0, %s59
      %s60 = sphi 0, %s57
      %s61 = sphi 0, %s60
      %s77 = sphi 0, %s61
      %s85 = sphi 0, %s87
      %s88 = sphi 0, %s85
      %s89 = sphi 0, %s88
      %s105 = sphi 0, %s89
      %s109 = sphi 0, %s109
      %s111 = sphi 0, %s109
      %s112 = sphi 0, %s111
      %s126 = sphi 0, %s112
      %s130 = sphi 0, %s130
      %s132 = sphi 0, %s130
      %s133 = sphi 0, %s132
      %s147 = sphi 0, %s133
      %s151 = sphi 0, %s151
      %s153 = sphi 0, %s151
      %s154 = sphi 0, %s153
      %s168 = sphi 0, %s154
      %s172 = sphi 0, %s172
      %s174 = sphi 0, %s172
      %s175 = sphi 0, %s174
      %s189 = sphi 0, %s175
      %s193 = sphi 0, %s193
      %s195 = sphi 0, %s193
      %s196 = sphi 0, %s195
      %s210 = sphi 0, %s196
      %s214 = sphi 0, %s214
      %s216 = sphi 0, %s214
      %s217 = sphi 0, %s216
      %s231 = sphi 0, %s217
      %s239 = sphi 0, %s241
      %s242 = sphi 0, %s239
      %s243 = sphi 0, %s242
      %s259 = sphi 0, %s243
      %s267 = sphi 0, %s269
      %s270 = sphi 0, %s267
      %s271 = sphi 0, %s270
      %s287 = sphi 0, %s271
    $region4: #{tpu_custom_call.1} parent=1 // loop_header_branch
      %36 = sbr.rel (%p34) target = $region8
    $region5: #{tpu_custom_call.1} parent=1 // loop_body
      %s38 = ssub.s32 %s33, 1
      %s39 = ssub.s32 %s33, 2
      %s46 = sadd.s32 1, %s41
      %p47 = scmp.ge.s32.totalorder %s46, 1
      %s48 = scalar_select %p47, 0, %s46
      %s49 = sadd.s32 1, %s40
      %s50 = scalar_select %p47, %s49, %s40
      %p51 = scmp.ge.s32.totalorder %s50, 2
      %s52 = scalar_select %p51, 0, %s50
      %s53 = ssub.s32 %s40, %s52
      %s54 = ssub.s32 %s41, %s48
      %s55 = sor.u32 %s53, %s54
      %p56 = scmp.eq.s32.totalorder %s55, 0
      %s58 = sadd.s32 %s57, 1
      %s59 = scalar_select %p56, %s57, %s58
      %p62 = pneg %p56
      %p63 = scmp.eq.s32.totalorder %s33, 1
      %p64 = por %p62, %p63
      %p65 = scmp.ne.s32.totalorder %s57, %s60
      %p66 = scmp.eq.s32.totalorder %s33, 0
      %p67 = por %p65, %p66
      %p68 = scmp.ne.s32.totalorder %s57, %s60
      %p69 = scmp.eq.s32.totalorder %s38, 1
      %p70 = por %p68, %p69
      %p71 = scmp.ne.s32.totalorder %s60, %s61
      %p72 = scmp.eq.s32.totalorder %s38, 0
      %p73 = por %p71, %p72
      %p74 = scmp.ne.s32.totalorder %s60, %s61
      %p75 = scmp.eq.s32.totalorder %s39, 1
      %p76 = por %p74, %p75
      %p78 = scmp.ne.s32.totalorder %s61, %s77
      %p79 = scmp.eq.s32.totalorder %s39, 0
      %p80 = por %p78, %p79
      %s81 = ssub.s32 %s40, %s52
      %s82 = ssub.s32 %s41, %s48
      %s83 = sor.u32 %s81, %s82
      %p84 = scmp.eq.s32.totalorder %s83, 0
      %s86 = sadd.s32 %s85, 1
      %s87 = scalar_select %p84, %s85, %s86
      %p90 = pneg %p84
      %p91 = scmp.eq.s32.totalorder %s33, 1
      %p92 = por %p90, %p91
      %p93 = scmp.ne.s32.totalorder %s85, %s88
      %p94 = scmp.eq.s32.totalorder %s33, 0
      %p95 = por %p93, %p94
      %p96 = scmp.ne.s32.totalorder %s85, %s88
      %p97 = scmp.eq.s32.totalorder %s38, 1
      %p98 = por %p96, %p97
      %p99 = scmp.ne.s32.totalorder %s88, %s89
      %p100 = scmp.eq.s32.totalorder %s38, 0
      %p101 = por %p99, %p100
      %p102 = scmp.ne.s32.totalorder %s88, %s89
      %p103 = scmp.eq.s32.totalorder %s39, 1
      %p104 = por %p102, %p103
      %p106 = scmp.ne.s32.totalorder %s89, %s105
      %p107 = scmp.eq.s32.totalorder %s39, 0
      %p108 = por %p106, %p107
      %s110 = sadd.s32 %s109, 1
      %p113 = scmp.eq.s32.totalorder %s33, 1
      %p114 = scmp.ne.s32.totalorder %s109, %s111
      %p115 = scmp.eq.s32.totalorder %s33, 0
      %p116 = por %p114, %p115
      %p117 = scmp.ne.s32.totalorder %s109, %s111
      %p118 = scmp.eq.s32.totalorder %s38, 1
      %p119 = por %p117, %p118
      %p120 = scmp.ne.s32.totalorder %s111, %s112
      %p121 = scmp.eq.s32.totalorder %s38, 0
      %p122 = por %p120, %p121
      %p123 = scmp.ne.s32.totalorder %s111, %s112
      %p124 = scmp.eq.s32.totalorder %s39, 1
      %p125 = por %p123, %p124
      %p127 = scmp.ne.s32.totalorder %s112, %s126
      %p128 = scmp.eq.s32.totalorder %s39, 0
      %p129 = por %p127, %p128
      %s131 = sadd.s32 %s130, 1
      %p134 = scmp.eq.s32.totalorder %s33, 1
      %p135 = scmp.ne.s32.totalorder %s130, %s132
      %p136 = scmp.eq.s32.totalorder %s33, 0
      %p137 = por %p135, %p136
      %p138 = scmp.ne.s32.totalorder %s130, %s132
      %p139 = scmp.eq.s32.totalorder %s38, 1
      %p140 = por %p138, %p139
      %p141 = scmp.ne.s32.totalorder %s132, %s133
      %p142 = scmp.eq.s32.totalorder %s38, 0
      %p143 = por %p141, %p142
      %p144 = scmp.ne.s32.totalorder %s132, %s133
      %p145 = scmp.eq.s32.totalorder %s39, 1
      %p146 = por %p144, %p145
      %p148 = scmp.ne.s32.totalorder %s133, %s147
      %p149 = scmp.eq.s32.totalorder %s39, 0
      %p150 = por %p148, %p149
      %s152 = sadd.s32 %s151, 1
      %p155 = scmp.eq.s32.totalorder %s33, 1
      %p156 = scmp.ne.s32.totalorder %s151, %s153
      %p157 = scmp.eq.s32.totalorder %s33, 0
      %p158 = por %p156, %p157
      %p159 = scmp.ne.s32.totalorder %s151, %s153
      %p160 = scmp.eq.s32.totalorder %s38, 1
      %p161 = por %p159, %p160
      %p162 = scmp.ne.s32.totalorder %s153, %s154
      %p163 = scmp.eq.s32.totalorder %s38, 0
      %p164 = por %p162, %p163
      %p165 = scmp.ne.s32.totalorder %s153, %s154
      %p166 = scmp.eq.s32.totalorder %s39, 1
      %p167 = por %p165, %p166
      %p169 = scmp.ne.s32.totalorder %s154, %s168
      %p170 = scmp.eq.s32.totalorder %s39, 0
      %p171 = por %p169, %p170
      %s173 = sadd.s32 %s172, 1
      %p176 = scmp.eq.s32.totalorder %s33, 1
      %p177 = scmp.ne.s32.totalorder %s172, %s174
      %p178 = scmp.eq.s32.totalorder %s33, 0
      %p179 = por %p177, %p178
      %p180 = scmp.ne.s32.totalorder %s172, %s174
      %p181 = scmp.eq.s32.totalorder %s38, 1
      %p182 = por %p180, %p181
      %p183 = scmp.ne.s32.totalorder %s174, %s175
      %p184 = scmp.eq.s32.totalorder %s38, 0
      %p185 = por %p183, %p184
      %p186 = scmp.ne.s32.totalorder %s174, %s175
      %p187 = scmp.eq.s32.totalorder %s39, 1
      %p188 = por %p186, %p187
      %p190 = scmp.ne.s32.totalorder %s175, %s189
      %p191 = scmp.eq.s32.totalorder %s39, 0
      %p192 = por %p190, %p191
      %s194 = sadd.s32 %s193, 1
      %p197 = scmp.eq.s32.totalorder %s33, 1
      %p198 = scmp.ne.s32.totalorder %s193, %s195
      %p199 = scmp.eq.s32.totalorder %s33, 0
      %p200 = por %p198, %p199
      %p201 = scmp.ne.s32.totalorder %s193, %s195
      %p202 = scmp.eq.s32.totalorder %s38, 1
      %p203 = por %p201, %p202
      %p204 = scmp.ne.s32.totalorder %s195, %s196
      %p205 = scmp.eq.s32.totalorder %s38, 0
      %p206 = por %p204, %p205
      %p207 = scmp.ne.s32.totalorder %s195, %s196
      %p208 = scmp.eq.s32.totalorder %s39, 1
      %p209 = por %p207, %p208
      %p211 = scmp.ne.s32.totalorder %s196, %s210
      %p212 = scmp.eq.s32.totalorder %s39, 0
      %p213 = por %p211, %p212
      %s215 = sadd.s32 %s214, 1
      %p218 = scmp.eq.s32.totalorder %s33, 1
      %p219 = scmp.ne.s32.totalorder %s214, %s216
      %p220 = scmp.eq.s32.totalorder %s33, 0
      %p221 = por %p219, %p220
      %p222 = scmp.ne.s32.totalorder %s214, %s216
      %p223 = scmp.eq.s32.totalorder %s38, 1
      %p224 = por %p222, %p223
      %p225 = scmp.ne.s32.totalorder %s216, %s217
      %p226 = scmp.eq.s32.totalorder %s38, 0
      %p227 = por %p225, %p226
      %p228 = scmp.ne.s32.totalorder %s216, %s217
      %p229 = scmp.eq.s32.totalorder %s39, 1
      %p230 = por %p228, %p229
      %p232 = scmp.ne.s32.totalorder %s217, %s231
      %p233 = scmp.eq.s32.totalorder %s39, 0
      %p234 = por %p232, %p233
      %s235 = ssub.s32 %s40, %s52
      %s236 = ssub.s32 %s41, %s48
      %s237 = sor.u32 %s235, %s236
      %p238 = scmp.eq.s32.totalorder %s237, 0
      %s240 = sadd.s32 %s239, 1
      %s241 = scalar_select %p238, %s239, %s240
      %p244 = pneg %p238
      %p245 = scmp.eq.s32.totalorder %s33, 1
      %p246 = por %p244, %p245
      %p247 = scmp.ne.s32.totalorder %s239, %s242
      %p248 = scmp.eq.s32.totalorder %s33, 0
      %p249 = por %p247, %p248
      %p250 = scmp.ne.s32.totalorder %s239, %s242
      %p251 = scmp.eq.s32.totalorder %s38, 1
      %p252 = por %p250, %p251
      %p253 = scmp.ne.s32.totalorder %s242, %s243
      %p254 = scmp.eq.s32.totalorder %s38, 0
      %p255 = por %p253, %p254
      %p256 = scmp.ne.s32.totalorder %s242, %s243
      %p257 = scmp.eq.s32.totalorder %s39, 1
      %p258 = por %p256, %p257
      %p260 = scmp.ne.s32.totalorder %s243, %s259
      %p261 = scmp.eq.s32.totalorder %s39, 0
      %p262 = por %p260, %p261
      %s263 = ssub.s32 %s40, %s52
      %s264 = ssub.s32 %s41, %s48
      %s265 = sor.u32 %s263, %s264
      %p266 = scmp.eq.s32.totalorder %s265, 0
      %s268 = sadd.s32 %s267, 1
      %s269 = scalar_select %p266, %s267, %s268
      %p272 = pneg %p266
      %p273 = scmp.eq.s32.totalorder %s33, 1
      %p274 = por %p272, %p273
      %p275 = scmp.ne.s32.totalorder %s267, %s270
      %p276 = scmp.eq.s32.totalorder %s33, 0
      %p277 = por %p275, %p276
      %p278 = scmp.ne.s32.totalorder %s267, %s270
      %p279 = scmp.eq.s32.totalorder %s38, 1
      %p280 = por %p278, %p279
      %p281 = scmp.ne.s32.totalorder %s270, %s271
      %p282 = scmp.eq.s32.totalorder %s38, 0
      %p283 = por %p281, %p282
      %p284 = scmp.ne.s32.totalorder %s270, %s271
      %p285 = scmp.eq.s32.totalorder %s39, 1
      %p286 = por %p284, %p285
      %p288 = scmp.ne.s32.totalorder %s271, %s287
      %p289 = scmp.eq.s32.totalorder %s39, 0
      %p290 = por %p288, %p289
      %p291 = scmp.le.s32.totalorder 1, %s33
      %p292 = scmp.lt.s32.totalorder %s33, 3
      %p293 = pnand %p291, %p292
      %p294 = pneg %p293
      // Predicated region
      $region9: #{tpu_custom_call.1} parent=5 // pred_check
        _
      $region10: #{tpu_custom_call.1} parent=5 // pred_check_branch
        %296 = sbr.rel (%p293) target = $region12
      $region11: #{tpu_custom_call.1} parent=5 // pred_region
        %s297 = ssub.s32 %s33, 1
        // Predicated region
        $region13: #{tpu_custom_call.1} parent=11 // pred_check
          %p298 = pneg %p122
        $region14: #{tpu_custom_call.1} parent=11 // pred_check_branch
          %300 = sbr.rel (%p298) target = $region16
        $region15: #{tpu_custom_call.1} parent=11 // pred_region
          _
        $region16: #{tpu_custom_call.1} parent=11 // pred_fallthru
          _
        // Predicated region
        $region17: #{tpu_custom_call.1} parent=11 // pred_check
          %p301 = pneg %p143
        $region18: #{tpu_custom_call.1} parent=11 // pred_check_branch
          %303 = sbr.rel (%p301) target = $region20
        $region19: #{tpu_custom_call.1} parent=11 // pred_region
          _
        $region20: #{tpu_custom_call.1} parent=11 // pred_fallthru
          _
        // Predicated region
        $region21: #{tpu_custom_call.1} parent=11 // pred_check
          %p304 = pneg %p164
        $region22: #{tpu_custom_call.1} parent=11 // pred_check_branch
          %306 = sbr.rel (%p304) target = $region24
        $region23: #{tpu_custom_call.1} parent=11 // pred_region
          %s308 = ssub.s32 2048, 2048
          %309 = vsyncadd [#allocation10], %s308
          %s310 = sshll.u32 [#allocation11], 4
          %s311 = int_to_ptr.vmem [resolvable:$true] %s310
          %316 = dma.hbm_to_vmem [thread:$0]  %s8, 2048, %s311, [#allocation10], 128, 128, 8
        $region24: #{tpu_custom_call.1} parent=11 // pred_fallthru
          _
        // Predicated region
        $region25: #{tpu_custom_call.1} parent=11 // pred_check
          %p317 = pneg %p185
        $region26: #{tpu_custom_call.1} parent=11 // pred_check_branch
          %319 = sbr.rel (%p317) target = $region28
        $region27: #{tpu_custom_call.1} parent=11 // pred_region
          _
        $region28: #{tpu_custom_call.1} parent=11 // pred_fallthru
          _
        // Predicated region
        $region29: #{tpu_custom_call.1} parent=11 // pred_check
          %p320 = pneg %p206
        $region30: #{tpu_custom_call.1} parent=11 // pred_check_branch
          %322 = sbr.rel (%p320) target = $region32
        $region31: #{tpu_custom_call.1} parent=11 // pred_region
          %s324 = ssub.s32 2048, 2048
          %325 = vsyncadd [#allocation13], %s324
          %s326 = sshll.u32 [#allocation12], 4
          %s327 = int_to_ptr.vmem [resolvable:$true] %s326
          %332 = dma.hbm_to_vmem [thread:$0]  %s10, 2048, %s327, [#allocation13], 128, 128, 8
        $region32: #{tpu_custom_call.1} parent=11 // pred_fallthru
          _
        // Predicated region
        $region33: #{tpu_custom_call.1} parent=11 // pred_check
          %p333 = pneg %p227
        $region34: #{tpu_custom_call.1} parent=11 // pred_check_branch
          %335 = sbr.rel (%p333) target = $region36
        $region35: #{tpu_custom_call.1} parent=11 // pred_region
          _
        $region36: #{tpu_custom_call.1} parent=11 // pred_fallthru
          _
      $region12: #{tpu_custom_call.1} parent=5 // pred_fallthru
        _
      %p336 = scmp.lt.s32.totalorder %s33, 2
      // Predicated region
      $region37: #{tpu_custom_call.1} parent=5 // pred_check
        %p337 = pneg %p336
      $region38: #{tpu_custom_call.1} parent=5 // pred_check_branch
        %339 = sbr.rel (%p337) target = $region40
      $region39: #{tpu_custom_call.1} parent=5 // pred_region
        // Predicated region
        $region41: #{tpu_custom_call.1} parent=39 // pred_check
          %p340 = pneg %p67
        $region42: #{tpu_custom_call.1} parent=39 // pred_check_branch
          %342 = sbr.rel (%p340) target = $region44
        $region43: #{tpu_custom_call.1} parent=39 // pred_region
          %s343 = sand.u32 %s57, 1
          %s344 = scalar_lea.sflag [#allocation7], %s343
          %s345 = sand.u32 %s57, 1
          %s346 = smul.addr %s345, 256
          %s347 = scalar_lea.vmem [#allocation6], %s346
          %s348 = smul.u32 32, %s41
          %s350 = ssub.s32 4096, 4096
          %351 = vsyncadd %s344, %s350
          %s352 = smul.addr %s40, 32
          %s353 = sadd.s32 %s348, %s352
          %s354 = smul.addr %s353, 128
          %s355 = scalar_lea.hbm %s2, %s354
          %s356 = sshll.u32 %s347, 4
          %s357 = int_to_ptr.vmem [resolvable:$true] %s356
          %362 = dma.hbm_to_vmem [thread:$0]  %s355, 4096, %s357, %s344, 128, 128, 8
        $region44: #{tpu_custom_call.1} parent=39 // pred_fallthru
          _
        // Predicated region
        $region45: #{tpu_custom_call.1} parent=39 // pred_check
          %p363 = pneg %p95
        $region46: #{tpu_custom_call.1} parent=39 // pred_check_branch
          %365 = sbr.rel (%p363) target = $region48
        $region47: #{tpu_custom_call.1} parent=39 // pred_region
          %s366 = sand.u32 %s33, 1
          %s367 = scalar_lea.sflag [#allocation10], %s366
          %s368 = sand.u32 %s85, 1
          %s369 = smul.addr %s368, 256
          %s370 = scalar_lea.vmem [#allocation9], %s369
          %s371 = smul.u32 32, %s41
          %s373 = ssub.s32 4096, 4096
          %374 = vsyncadd %s367, %s373
          %s375 = smul.addr %s40, 32
          %s376 = sadd.s32 %s371, %s375
          %s377 = smul.addr %s376, 128
          %s378 = scalar_lea.hbm %s3, %s377
          %s379 = sshll.u32 %s370, 4
          %s380 = int_to_ptr.vmem [resolvable:$true] %s379
          %385 = dma.hbm_to_vmem [thread:$0]  %s378, 4096, %s380, %s367, 128, 128, 8
        $region48: #{tpu_custom_call.1} parent=39 // pred_fallthru
          _
      $region40: #{tpu_custom_call.1} parent=5 // pred_fallthru
        _
      %p386 = scmp.le.s32.totalorder 1, %s33
      %p387 = scmp.lt.s32.totalorder %s33, 3
      %p388 = pnand %p386, %p387
      %p389 = pneg %p388
      // Predicated region
      $region49: #{tpu_custom_call.1} parent=5 // pred_check
        _
      $region50: #{tpu_custom_call.1} parent=5 // pred_check_branch
        %391 = sbr.rel (%p388) target = $region52
      $region51: #{tpu_custom_call.1} parent=5 // pred_region
        %s392 = ssub.s32 %s33, 1
        %s393 = sand.u32 %s60, 1
        %s394 = scalar_lea.sflag [#allocation7], %s393
        %s395 = sand.u32 %s60, 1
        %s396 = smul.addr %s395, 256
        %s397 = scalar_lea.vmem [#allocation6], %s396
        // Predicated region
        $region53: #{tpu_custom_call.1} parent=51 // pred_check
          %p398 = pneg %p73
        $region54: #{tpu_custom_call.1} parent=51 // pred_check_branch
          %400 = sbr.rel (%p398) target = $region56
        $region55: #{tpu_custom_call.1} parent=51 // pred_region
          %401 = dma.done %s394, 4096
        $region56: #{tpu_custom_call.1} parent=51 // pred_fallthru
          _
        %s402 = sand.u32 %s38, 1
        %s403 = scalar_lea.sflag [#allocation10], %s402
        %s404 = sand.u32 %s88, 1
        %s405 = smul.addr %s404, 256
        %s406 = scalar_lea.vmem [#allocation9], %s405
        // Predicated region
        $region57: #{tpu_custom_call.1} parent=51 // pred_check
          %p407 = pneg %p101
        $region58: #{tpu_custom_call.1} parent=51 // pred_check_branch
          %409 = sbr.rel (%p407) target = $region60
        $region59: #{tpu_custom_call.1} parent=51 // pred_region
          %410 = dma.done %s403, 4096
        $region60: #{tpu_custom_call.1} parent=51 // pred_fallthru
          _
        // Predicated region
        $region61: #{tpu_custom_call.1} parent=51 // pred_check
          %p411 = pneg %p164
        $region62: #{tpu_custom_call.1} parent=51 // pred_check_branch
          %413 = sbr.rel (%p411) target = $region64
        $region63: #{tpu_custom_call.1} parent=51 // pred_region
          %414 = dma.done [#allocation10], 2048
        $region64: #{tpu_custom_call.1} parent=51 // pred_fallthru
          _
        // Predicated region
        $region65: #{tpu_custom_call.1} parent=51 // pred_check
          %p415 = pneg %p206
        $region66: #{tpu_custom_call.1} parent=51 // pred_check_branch
          %417 = sbr.rel (%p415) target = $region68
        $region67: #{tpu_custom_call.1} parent=51 // pred_region
          %418 = dma.done [#allocation13], 2048
        $region68: #{tpu_custom_call.1} parent=51 // pred_fallthru
          _
        %s419 = sand.u32 %s60, 1
        %s420 = scalar_lea.sflag [#allocation7], %s419
        %s421 = sand.u32 %s60, 1
        %s422 = smul.addr %s421, 256
        %s423 = scalar_lea.vmem [#allocation6], %s422
        %p424 = pneg %p73
        %p425 = pneg %p70
        %s426 = sand.u32 %s38, 1
        %s427 = scalar_lea.sflag [#allocation10], %s426
        %s428 = sand.u32 %s88, 1
        %s429 = smul.addr %s428, 256
        %s430 = scalar_lea.vmem [#allocation9], %s429
        %p431 = pneg %p101
        %p432 = pneg %p98
        %p433 = pneg %p122
        %p434 = pneg %p119
        %p435 = pneg %p143
        %p436 = pneg %p140
        %p437 = pneg %p164
        %p438 = pneg %p161
        %p439 = pneg %p185
        %p440 = pneg %p182
        %p441 = pneg %p206
        %p442 = pneg %p203
        %p443 = pneg %p227
        %p444 = pneg %p224
        %p445 = pneg %p255
        %p446 = pneg %p252
        %s447 = sand.u32 %s242, 1
        %s448 = scalar_lea.sflag [#allocation8], %s447
        %s449 = sand.u32 %s242, 1
        %s450 = smul.addr %s449, 256
        %s451 = scalar_lea.vmem [#allocation14], %s450
        %p452 = pneg %p283
        %p453 = pneg %p280
        %s454 = sand.u32 %s270, 1
        %s455 = scalar_lea.sflag [#allocation16], %s454
        %s456 = sand.u32 %s270, 1
        %s457 = smul.addr %s456, 256
        %s458 = scalar_lea.vmem [#allocation15], %s457
        %s459 = smul.u32 32, %s43
        %s460 = smul.u32 32, %s43
        %s461 = smul.u32 32, %s43
        %s462 = smul.u32 32, %s43
        %p463 = scmp.eq.s32.totalorder %s43, 0
        // Predicated region
        $region69: #{tpu_custom_call.1} parent=51 // pred_check
          %p464 = pneg %p463
        $region70: #{tpu_custom_call.1} parent=51 // pred_check_branch
          %466 = sbr.rel (%p464) target = $region72
        $region71: #{tpu_custom_call.1} parent=51 // pred_region
          $region73: #{tpu_custom_call.1} parent=71
            #allocation17 [shape = 'u8[131072]{0}', space=vmem, size = 0x20000, scoped, tag = 'scoped memory for tpu_custom_call.1']
            #allocation18 [shape = 'u8[131072]{0}', space=vmem, size = 0x20000, scoped, tag = 'scoped memory for tpu_custom_call.1']
            #allocation19 [shape = 's32[2]{0}', space=sflag, size = 0x8, scoped, tag = 'scoped memory for tpu_custom_call.1']
            %v467 = vld [vmem:[%s5] sm:$0x3]
            %s468 = smul.u32 %s42, 256
            %s469 = smul.addr %s468, 16
            %s470 = scalar_lea.hbm %s0, %s469
            // Predicated region
            $region74: #{tpu_custom_call.1} parent=73 // pred_check
              _
            $region75: #{tpu_custom_call.1} parent=73 // pred_check_branch
              %472 = sbr.rel target = $region77
            $region76: #{tpu_custom_call.1} parent=73 // pred_region
              %473 = sst [smem:[#allocation22]] [#allocation21]
              %474 = sst [smem:[#allocation23]] [#allocation20]
            $region77: #{tpu_custom_call.1} parent=73 // pred_fallthru
              _
            %476 = shalt.err (0)
            %s478 = sshll.u32 [#allocation17], 4
            %s479 = int_to_ptr.vmem [resolvable:$true] %s478
            %481 = dma.hbm_to_vmem [thread:$0]  %s470, 4096, %s479, [#allocation19]
            %s482 = scalar_lea.sflag [#allocation19], 1
            // Predicated region
            $region78: #{tpu_custom_call.1} parent=73 // pred_check
              _
            $region79: #{tpu_custom_call.1} parent=73 // pred_check_branch
              %484 = sbr.rel target = $region81
            $region80: #{tpu_custom_call.1} parent=73 // pred_region
              %485 = sst [smem:[#allocation22]] [#allocation25]
              %486 = sst [smem:[#allocation23]] [#allocation24]
            $region81: #{tpu_custom_call.1} parent=73 // pred_fallthru
              _
            %488 = shalt.err (0)
            %s490 = sshll.u32 [#allocation18], 4
            %s491 = int_to_ptr.vmem [resolvable:$true] %s490
            %493 = dma.hbm_to_vmem [thread:$0]  %s4, 4096, %s491, %s482
            %s494 = smul.u32 256, 1
            %s495 = sshll.u32 %s494, 4
            %496 = dma.done [#allocation19], %s495
            %s497 = smul.u32 8, 16
            %s498 = smul.u32 %s497, 2
            %s499 = sshll.u32 %s498, 4
            %500 = dma.done %s482, %s499
            %v501 = vld [vmem:[#allocation17] sm:$0xff]
            %v502 = vld [vmem:[#allocation17 + $0x8] sm:$0xff]
            %v503 = vld [vmem:[#allocation17 + $0x10] sm:$0xff]
            %v504 = vld [vmem:[#allocation17 + $0x18] sm:$0xff]
            %v505 = vld [vmem:[#allocation17 + $0x20] sm:$0xff]
            %v506 = vld [vmem:[#allocation17 + $0x28] sm:$0xff]
            %v507 = vld [vmem:[#allocation17 + $0x30] sm:$0xff]
            %v508 = vld [vmem:[#allocation17 + $0x38] sm:$0xff]
            %v509 = vld [vmem:[#allocation17 + $0x40] sm:$0xff]
            %v510 = vld [vmem:[#allocation17 + $0x48] sm:$0xff]
            %v511 = vld [vmem:[#allocation17 + $0x50] sm:$0xff]
            %v512 = vld [vmem:[#allocation17 + $0x58] sm:$0xff]
            %v513 = vld [vmem:[#allocation17 + $0x60] sm:$0xff]
            %v514 = vld [vmem:[#allocation17 + $0x68] sm:$0xff]
            %v515 = vld [vmem:[#allocation17 + $0x70] sm:$0xff]
            %v516 = vld [vmem:[#allocation17 + $0x78] sm:$0xff]
            %v517 = vld [vmem:[#allocation17 + $0x80] sm:$0xff]
            %v518 = vld [vmem:[#allocation17 + $0x88] sm:$0xff]
            %v519 = vld [vmem:[#allocation17 + $0x90] sm:$0xff]
            %v520 = vld [vmem:[#allocation17 + $0x98] sm:$0xff]
            %v521 = vld [vmem:[#allocation17 + $0xa0] sm:$0xff]
            %v522 = vld [vmem:[#allocation17 + $0xa8] sm:$0xff]
            %v523 = vld [vmem:[#allocation17 + $0xb0] sm:$0xff]
            %v524 = vld [vmem:[#allocation17 + $0xb8] sm:$0xff]
            %v525 = vld [vmem:[#allocation17 + $0xc0] sm:$0xff]
            %v526 = vld [vmem:[#allocation17 + $0xc8] sm:$0xff]
            %v527 = vld [vmem:[#allocation17 + $0xd0] sm:$0xff]
            %v528 = vld [vmem:[#allocation17 + $0xd8] sm:$0xff]
            %v529 = vld [vmem:[#allocation17 + $0xe0] sm:$0xff]
            %v530 = vld [vmem:[#allocation17 + $0xe8] sm:$0xff]
            %v531 = vld [vmem:[#allocation17 + $0xf0] sm:$0xff]
            %v532 = vld [vmem:[#allocation17 + $0xf8] sm:$0xff]
            %v533 = vld [vmem:[#allocation18] sm:$0xff]
            %v534 = vld [vmem:[#allocation18 + $0x8] sm:$0xff]
            %v535 = vld [vmem:[#allocation18 + $0x10] sm:$0xff]
            %v536 = vld [vmem:[#allocation18 + $0x18] sm:$0xff]
            %v537 = vld [vmem:[#allocation18 + $0x20] sm:$0xff]
            %v538 = vld [vmem:[#allocation18 + $0x28] sm:$0xff]
            %v539 = vld [vmem:[#allocation18 + $0x30] sm:$0xff]
            %v540 = vld [vmem:[#allocation18 + $0x38] sm:$0xff]
            %v541 = vld [vmem:[#allocation18 + $0x40] sm:$0xff]
            %v542 = vld [vmem:[#allocation18 + $0x48] sm:$0xff]
            %v543 = vld [vmem:[#allocation18 + $0x50] sm:$0xff]
            %v544 = vld [vmem:[#allocation18 + $0x58] sm:$0xff]
            %v545 = vld [vmem:[#allocation18 + $0x60] sm:$0xff]
            %v546 = vld [vmem:[#allocation18 + $0x68] sm:$0xff]
            %v547 = vld [vmem:[#allocation18 + $0x70] sm:$0xff]
            %v548 = vld [vmem:[#allocation18 + $0x78] sm:$0xff]
            %v549 = vld [vmem:[#allocation18 + $0x80] sm:$0xff]
            %v550 = vld [vmem:[#allocation18 + $0x88] sm:$0xff]
            %v551 = vld [vmem:[#allocation18 + $0x90] sm:$0xff]
            %v552 = vld [vmem:[#allocation18 + $0x98] sm:$0xff]
            %v553 = vld [vmem:[#allocation18 + $0xa0] sm:$0xff]
            %v554 = vld [vmem:[#allocation18 + $0xa8] sm:$0xff]
            %v555 = vld [vmem:[#allocation18 + $0xb0] sm:$0xff]
            %v556 = vld [vmem:[#allocation18 + $0xb8] sm:$0xff]
            %v557 = vld [vmem:[#allocation18 + $0xc0] sm:$0xff]
            %v558 = vld [vmem:[#allocation18 + $0xc8] sm:$0xff]
            %v559 = vld [vmem:[#allocation18 + $0xd0] sm:$0xff]
            %v560 = vld [vmem:[#allocation18 + $0xd8] sm:$0xff]
            %v561 = vld [vmem:[#allocation18 + $0xe0] sm:$0xff]
            %v562 = vld [vmem:[#allocation18 + $0xe8] sm:$0xff]
            %v563 = vld [vmem:[#allocation18 + $0xf0] sm:$0xff]
            %v564 = vld [vmem:[#allocation18 + $0xf8] sm:$0xff]
            %v566 = vlaneseq
            %v567 = vshrl.u32 %v566, 7
            %v568 = vsub.s32 0, %v567
            %v569 = vrot.slane %v467, %v568
            %v570 = vlaneseq
            %v571 = vshrl.u32 %v570, 7
            %v572 = vsub.s32 1, %v571
            %v573 = vrot.slane %v467, %v572
            %576 = vmatprep.subr.mxu0 %v564
            %577 = vmatpush1.msra.mxu0 %v563
            %578 = vmatprep.subr.mxu0 %v562
            %579 = vmatpush1.msra.mxu0 %v561
            %580 = vmatprep.subr.mxu0 %v560
            %581 = vmatpush1.msra.mxu0 %v559
            %582 = vmatprep.subr.mxu0 %v558
            %583 = vmatpush1.msra.mxu0 %v557
            %584 = vmatprep.subr.mxu0 %v556
            %585 = vmatpush1.msra.mxu0 %v555
            %586 = vmatprep.subr.mxu0 %v554
            %587 = vmatpush1.msra.mxu0 %v553
            %588 = vmatprep.subr.mxu0 %v552
            %589 = vmatpush1.msra.mxu0 %v551
            %590 = vmatprep.subr.mxu0 %v550
            %591 = vmatpush1.msra.mxu0 %v549
            %592 = vmatprep.subr.mxu0 %v548
            %593 = vmatpush1.msra.mxu0 %v547
            %594 = vmatprep.subr.mxu0 %v546
            %595 = vmatpush1.msra.mxu0 %v545
            %596 = vmatprep.subr.mxu0 %v544
            %597 = vmatpush1.msra.mxu0 %v543
            %598 = vmatprep.subr.mxu0 %v542
            %599 = vmatpush1.msra.mxu0 %v541
            %600 = vmatprep.subr.mxu0 %v540
            %601 = vmatpush1.msra.mxu0 %v539
            %602 = vmatprep.subr.mxu0 %v538
            %603 = vmatpush1.msra.mxu0 %v537
            %604 = vmatprep.subr.mxu0 %v536
            %605 = vmatpush1.msra.mxu0 %v535
            %606 = vmatprep.subr.mxu0 %v534
            %607 = vmatpush1.msra.mxu0 %v533
            %608 = vmatprep.subr.mxu0 0.0
            %609 = vmatpush2.msra.mxu0 0.0
            %610 = vmatprep.subr.mxu0 0.0
            %611 = vmatpush2.msra.mxu0 0.0
            %612 = vmatprep.subr.mxu0 0.0
            %613 = vmatpush2.msra.mxu0 0.0
            %614 = vmatprep.subr.mxu0 0.0
            %615 = vmatpush2.msra.mxu0 0.0
            %616 = vmatprep.subr.mxu0 0.0
            %617 = vmatpush2.msra.mxu0 0.0
            %618 = vmatprep.subr.mxu0 0.0
            %619 = vmatpush2.msra.mxu0 0.0
            %620 = vmatprep.subr.mxu0 0.0
            %621 = vmatpush2.msra.mxu0 0.0
            %622 = vmatprep.subr.mxu0 0.0
            %623 = vmatpush2.msra.mxu0 0.0
            %624 = vmatprep.subr.mxu0 0.0
            %625 = vmatpush2.msra.mxu0 0.0
            %626 = vmatprep.subr.mxu0 0.0
            %627 = vmatpush2.msra.mxu0 0.0
            %628 = vmatprep.subr.mxu0 0.0
            %629 = vmatpush2.msra.mxu0 0.0
            %630 = vmatprep.subr.mxu0 0.0
            %631 = vmatpush2.msra.mxu0 0.0
            %632 = vmatprep.subr.mxu0 0.0
            %633 = vmatpush2.msra.mxu0 0.0
            %634 = vmatprep.subr.mxu0 0.0
            %635 = vmatpush2.msra.mxu0 0.0
            %636 = vmatprep.subr.mxu0 0.0
            %637 = vmatpush2.msra.mxu0 0.0
            %638 = vmatprep.subr.mxu0 0.0
            %639 = vmatpush2.msra.mxu0 0.0
            %640 = vmatprep.mubr.f32.mxu0 0.0
            %641 = vmatmul.mubr.f32.gmra.mxu0 %v501
            %v642 = vpop.f32.mrf.mxu0
            %v643 = vadd.f32 %v569, %v642
            %v644 = vpop.f32.mrf.mxu0
            %v645 = vadd.f32 %v573, %v644
            %646 = vmatprep.mubr.f32.mxu0 0.0
            %647 = vmatmul.mubr.f32.gmra.mxu0 %v502
            %v648 = vpop.f32.mrf.mxu0
            %v649 = vadd.f32 %v569, %v648
            %v650 = vpop.f32.mrf.mxu0
            %v651 = vadd.f32 %v573, %v650
            %652 = vmatprep.mubr.f32.mxu0 0.0
            %653 = vmatmul.mubr.f32.gmra.mxu0 %v503
            %v654 = vpop.f32.mrf.mxu0
            %v655 = vadd.f32 %v569, %v654
            %v656 = vpop.f32.mrf.mxu0
            %v657 = vadd.f32 %v573, %v656
            %658 = vmatprep.mubr.f32.mxu0 0.0
            %659 = vmatmul.mubr.f32.gmra.mxu0 %v504
            %v660 = vpop.f32.mrf.mxu0
            %v661 = vadd.f32 %v569, %v660
            %v662 = vpop.f32.mrf.mxu0
            %v663 = vadd.f32 %v573, %v662
            %664 = vmatprep.mubr.f32.mxu0 0.0
            %665 = vmatmul.mubr.f32.gmra.mxu0 %v505
            %v666 = vpop.f32.mrf.mxu0
            %v667 = vadd.f32 %v569, %v666
            %v668 = vpop.f32.mrf.mxu0
            %v669 = vadd.f32 %v573, %v668
            %670 = vmatprep.mubr.f32.mxu0 0.0
            %671 = vmatmul.mubr.f32.gmra.mxu0 %v506
            %v672 = vpop.f32.mrf.mxu0
            %v673 = vadd.f32 %v569, %v672
            %v674 = vpop.f32.mrf.mxu0
            %v675 = vadd.f32 %v573, %v674
            %676 = vmatprep.mubr.f32.mxu0 0.0
            %677 = vmatmul.mubr.f32.gmra.mxu0 %v507
            %v678 = vpop.f32.mrf.mxu0
            %v679 = vadd.f32 %v569, %v678
            %v680 = vpop.f32.mrf.mxu0
            %v681 = vadd.f32 %v573, %v680
            %682 = vmatprep.mubr.f32.mxu0 0.0
            %683 = vmatmul.mubr.f32.gmra.mxu0 %v508
            %v684 = vpop.f32.mrf.mxu0
            %v685 = vadd.f32 %v569, %v684
            %v686 = vpop.f32.mrf.mxu0
            %v687 = vadd.f32 %v573, %v686
            %688 = vmatprep.mubr.f32.mxu0 0.0
            %689 = vmatmul.mubr.f32.gmra.mxu0 %v509
            %v690 = vpop.f32.mrf.mxu0
            %v691 = vadd.f32 %v569, %v690
            %v692 = vpop.f32.mrf.mxu0
            %v693 = vadd.f32 %v573, %v692
            %694 = vmatprep.mubr.f32.mxu0 0.0
            %695 = vmatmul.mubr.f32.gmra.mxu0 %v510
            %v696 = vpop.f32.mrf.mxu0
            %v697 = vadd.f32 %v569, %v696
            %v698 = vpop.f32.mrf.mxu0
            %v699 = vadd.f32 %v573, %v698
            %700 = vmatprep.mubr.f32.mxu0 0.0
            %701 = vmatmul.mubr.f32.gmra.mxu0 %v511
            %v702 = vpop.f32.mrf.mxu0
            %v703 = vadd.f32 %v569, %v702
            %v704 = vpop.f32.mrf.mxu0
            %v705 = vadd.f32 %v573, %v704
            %706 = vmatprep.mubr.f32.mxu0 0.0
            %707 = vmatmul.mubr.f32.gmra.mxu0 %v512
            %v708 = vpop.f32.mrf.mxu0
            %v709 = vadd.f32 %v569, %v708
            %v710 = vpop.f32.mrf.mxu0
            %v711 = vadd.f32 %v573, %v710
            %712 = vmatprep.mubr.f32.mxu0 0.0
            %713 = vmatmul.mubr.f32.gmra.mxu0 %v513
            %v714 = vpop.f32.mrf.mxu0
            %v715 = vadd.f32 %v569, %v714
            %v716 = vpop.f32.mrf.mxu0
            %v717 = vadd.f32 %v573, %v716
            %718 = vmatprep.mubr.f32.mxu0 0.0
            %719 = vmatmul.mubr.f32.gmra.mxu0 %v514
            %v720 = vpop.f32.mrf.mxu0
            %v721 = vadd.f32 %v569, %v720
            %v722 = vpop.f32.mrf.mxu0
            %v723 = vadd.f32 %v573, %v722
            %724 = vmatprep.mubr.f32.mxu0 0.0
            %725 = vmatmul.mubr.f32.gmra.mxu0 %v515
            %v726 = vpop.f32.mrf.mxu0
            %v727 = vadd.f32 %v569, %v726
            %v728 = vpop.f32.mrf.mxu0
            %v729 = vadd.f32 %v573, %v728
            %730 = vmatprep.mubr.f32.mxu0 0.0
            %731 = vmatmul.mubr.f32.gmra.mxu0 %v516
            %v732 = vpop.f32.mrf.mxu0
            %v733 = vadd.f32 %v569, %v732
            %v734 = vpop.f32.mrf.mxu0
            %v735 = vadd.f32 %v573, %v734
            %736 = vmatprep.mubr.f32.mxu0 0.0
            %737 = vmatmul.mubr.f32.gmra.mxu0 %v517
            %v738 = vpop.f32.mrf.mxu0
            %v739 = vadd.f32 %v569, %v738
            %v740 = vpop.f32.mrf.mxu0
            %v741 = vadd.f32 %v573, %v740
            %742 = vmatprep.mubr.f32.mxu0 0.0
            %743 = vmatmul.mubr.f32.gmra.mxu0 %v518
            %v744 = vpop.f32.mrf.mxu0
            %v745 = vadd.f32 %v569, %v744
            %v746 = vpop.f32.mrf.mxu0
            %v747 = vadd.f32 %v573, %v746
            %748 = vmatprep.mubr.f32.mxu0 0.0
            %749 = vmatmul.mubr.f32.gmra.mxu0 %v519
            %v750 = vpop.f32.mrf.mxu0
            %v751 = vadd.f32 %v569, %v750
            %v752 = vpop.f32.mrf.mxu0
            %v753 = vadd.f32 %v573, %v752
            %754 = vmatprep.mubr.f32.mxu0 0.0
            %755 = vmatmul.mubr.f32.gmra.mxu0 %v520
            %v756 = vpop.f32.mrf.mxu0
            %v757 = vadd.f32 %v569, %v756
            %v758 = vpop.f32.mrf.mxu0
            %v759 = vadd.f32 %v573, %v758
            %760 = vmatprep.mubr.f32.mxu0 0.0
            %761 = vmatmul.mubr.f32.gmra.mxu0 %v521
            %v762 = vpop.f32.mrf.mxu0
            %v763 = vadd.f32 %v569, %v762
            %v764 = vpop.f32.mrf.mxu0
            %v765 = vadd.f32 %v573, %v764
            %766 = vmatprep.mubr.f32.mxu0 0.0
            %767 = vmatmul.mubr.f32.gmra.mxu0 %v522
            %v768 = vpop.f32.mrf.mxu0
            %v769 = vadd.f32 %v569, %v768
            %v770 = vpop.f32.mrf.mxu0
            %v771 = vadd.f32 %v573, %v770
            %772 = vmatprep.mubr.f32.mxu0 0.0
            %773 = vmatmul.mubr.f32.gmra.mxu0 %v523
            %v774 = vpop.f32.mrf.mxu0
            %v775 = vadd.f32 %v569, %v774
            %v776 = vpop.f32.mrf.mxu0
            %v777 = vadd.f32 %v573, %v776
            %778 = vmatprep.mubr.f32.mxu0 0.0
            %779 = vmatmul.mubr.f32.gmra.mxu0 %v524
            %v780 = vpop.f32.mrf.mxu0
            %v781 = vadd.f32 %v569, %v780
            %v782 = vpop.f32.mrf.mxu0
            %v783 = vadd.f32 %v573, %v782
            %784 = vmatprep.mubr.f32.mxu0 0.0
            %785 = vmatmul.mubr.f32.gmra.mxu0 %v525
            %v786 = vpop.f32.mrf.mxu0
            %v787 = vadd.f32 %v569, %v786
            %v788 = vpop.f32.mrf.mxu0
            %v789 = vadd.f32 %v573, %v788
            %790 = vmatprep.mubr.f32.mxu0 0.0
            %791 = vmatmul.mubr.f32.gmra.mxu0 %v526
            %v792 = vpop.f32.mrf.mxu0
            %v793 = vadd.f32 %v569, %v792
            %v794 = vpop.f32.mrf.mxu0
            %v795 = vadd.f32 %v573, %v794
            %796 = vmatprep.mubr.f32.mxu0 0.0
            %797 = vmatmul.mubr.f32.gmra.mxu0 %v527
            %v798 = vpop.f32.mrf.mxu0
            %v799 = vadd.f32 %v569, %v798
            %v800 = vpop.f32.mrf.mxu0
            %v801 = vadd.f32 %v573, %v800
            %802 = vmatprep.mubr.f32.mxu0 0.0
            %803 = vmatmul.mubr.f32.gmra.mxu0 %v528
            %v804 = vpop.f32.mrf.mxu0
            %v805 = vadd.f32 %v569, %v804
            %v806 = vpop.f32.mrf.mxu0
            %v807 = vadd.f32 %v573, %v806
            %808 = vmatprep.mubr.f32.mxu0 0.0
            %809 = vmatmul.mubr.f32.gmra.mxu0 %v529
            %v810 = vpop.f32.mrf.mxu0
            %v811 = vadd.f32 %v569, %v810
            %v812 = vpop.f32.mrf.mxu0
            %v813 = vadd.f32 %v573, %v812
            %814 = vmatprep.mubr.f32.mxu0 0.0
            %815 = vmatmul.mubr.f32.gmra.mxu0 %v530
            %v816 = vpop.f32.mrf.mxu0
            %v817 = vadd.f32 %v569, %v816
            %v818 = vpop.f32.mrf.mxu0
            %v819 = vadd.f32 %v573, %v818
            %820 = vmatprep.mubr.f32.mxu0 0.0
            %821 = vmatmul.mubr.f32.gmra.mxu0 %v531
            %v822 = vpop.f32.mrf.mxu0
            %v823 = vadd.f32 %v569, %v822
            %v824 = vpop.f32.mrf.mxu0
            %v825 = vadd.f32 %v573, %v824
            %826 = vmatprep.mubr.f32.mxu0 0.0
            %827 = vmatmul.mubr.f32.gmra.mxu0 %v532
            %v828 = vpop.f32.mrf.mxu0
            %v829 = vadd.f32 %v569, %v828
            %v830 = vpop.f32.mrf.mxu0
            %v831 = vadd.f32 %v573, %v830
            %832 = vdwg.mxu0
            %833 = vst [vmem:[#allocation2] sm:$0xff] %v643
            %834 = vst [vmem:[#allocation2 + $0x8] sm:$0xff] %v649
            %835 = vst [vmem:[#allocation2 + $0x10] sm:$0xff] %v655
            %836 = vst [vmem:[#allocation2 + $0x18] sm:$0xff] %v661
            %837 = vst [vmem:[#allocation2 + $0x20] sm:$0xff] %v667
            %838 = vst [vmem:[#allocation2 + $0x28] sm:$0xff] %v673
            %839 = vst [vmem:[#allocation2 + $0x30] sm:$0xff] %v679
            %840 = vst [vmem:[#allocation2 + $0x38] sm:$0xff] %v685
            %841 = vst [vmem:[#allocation2 + $0x40] sm:$0xff] %v691
            %842 = vst [vmem:[#allocation2 + $0x48] sm:$0xff] %v697
            %843 = vst [vmem:[#allocation2 + $0x50] sm:$0xff] %v703
            %844 = vst [vmem:[#allocation2 + $0x58] sm:$0xff] %v709
            %845 = vst [vmem:[#allocation2 + $0x60] sm:$0xff] %v715
            %846 = vst [vmem:[#allocation2 + $0x68] sm:$0xff] %v721
            %847 = vst [vmem:[#allocation2 + $0x70] sm:$0xff] %v727
            %848 = vst [vmem:[#allocation2 + $0x78] sm:$0xff] %v733
            %849 = vst [vmem:[#allocation2 + $0x80] sm:$0xff] %v739
            %850 = vst [vmem:[#allocation2 + $0x88] sm:$0xff] %v745
            %851 = vst [vmem:[#allocation2 + $0x90] sm:$0xff] %v751
            %852 = vst [vmem:[#allocation2 + $0x98] sm:$0xff] %v757
            %853 = vst [vmem:[#allocation2 + $0xa0] sm:$0xff] %v763
            %854 = vst [vmem:[#allocation2 + $0xa8] sm:$0xff] %v769
            %855 = vst [vmem:[#allocation2 + $0xb0] sm:$0xff] %v775
            %856 = vst [vmem:[#allocation2 + $0xb8] sm:$0xff] %v781
            %857 = vst [vmem:[#allocation2 + $0xc0] sm:$0xff] %v787
            %858 = vst [vmem:[#allocation2 + $0xc8] sm:$0xff] %v793
            %859 = vst [vmem:[#allocation2 + $0xd0] sm:$0xff] %v799
            %860 = vst [vmem:[#allocation2 + $0xd8] sm:$0xff] %v805
            %861 = vst [vmem:[#allocation2 + $0xe0] sm:$0xff] %v811
            %862 = vst [vmem:[#allocation2 + $0xe8] sm:$0xff] %v817
            %863 = vst [vmem:[#allocation2 + $0xf0] sm:$0xff] %v823
            %864 = vst [vmem:[#allocation2 + $0xf8] sm:$0xff] %v829
            %865 = vst [vmem:[#allocation4] sm:$0xff] %v645
            %866 = vst [vmem:[#allocation4 + $0x8] sm:$0xff] %v651
            %867 = vst [vmem:[#allocation4 + $0x10] sm:$0xff] %v657
            %868 = vst [vmem:[#allocation4 + $0x18] sm:$0xff] %v663
            %869 = vst [vmem:[#allocation4 + $0x20] sm:$0xff] %v669
            %870 = vst [vmem:[#allocation4 + $0x28] sm:$0xff] %v675
            %871 = vst [vmem:[#allocation4 + $0x30] sm:$0xff] %v681
            %872 = vst [vmem:[#allocation4 + $0x38] sm:$0xff] %v687
            %873 = vst [vmem:[#allocation4 + $0x40] sm:$0xff] %v693
            %874 = vst [vmem:[#allocation4 + $0x48] sm:$0xff] %v699
            %875 = vst [vmem:[#allocation4 + $0x50] sm:$0xff] %v705
            %876 = vst [vmem:[#allocation4 + $0x58] sm:$0xff] %v711
            %877 = vst [vmem:[#allocation4 + $0x60] sm:$0xff] %v717
            %878 = vst [vmem:[#allocation4 + $0x68] sm:$0xff] %v723
            %879 = vst [vmem:[#allocation4 + $0x70] sm:$0xff] %v729
            %880 = vst [vmem:[#allocation4 + $0x78] sm:$0xff] %v735
            %881 = vst [vmem:[#allocation4 + $0x80] sm:$0xff] %v741
            %882 = vst [vmem:[#allocation4 + $0x88] sm:$0xff] %v747
            %883 = vst [vmem:[#allocation4 + $0x90] sm:$0xff] %v753
            %884 = vst [vmem:[#allocation4 + $0x98] sm:$0xff] %v759
            %885 = vst [vmem:[#allocation4 + $0xa0] sm:$0xff] %v765
            %886 = vst [vmem:[#allocation4 + $0xa8] sm:$0xff] %v771
            %887 = vst [vmem:[#allocation4 + $0xb0] sm:$0xff] %v777
            %888 = vst [vmem:[#allocation4 + $0xb8] sm:$0xff] %v783
            %889 = vst [vmem:[#allocation4 + $0xc0] sm:$0xff] %v789
            %890 = vst [vmem:[#allocation4 + $0xc8] sm:$0xff] %v795
            %891 = vst [vmem:[#allocation4 + $0xd0] sm:$0xff] %v801
            %892 = vst [vmem:[#allocation4 + $0xd8] sm:$0xff] %v807
            %893 = vst [vmem:[#allocation4 + $0xe0] sm:$0xff] %v813
            %894 = vst [vmem:[#allocation4 + $0xe8] sm:$0xff] %v819
            %895 = vst [vmem:[#allocation4 + $0xf0] sm:$0xff] %v825
            %896 = vst [vmem:[#allocation4 + $0xf8] sm:$0xff] %v831
            %v897 = vld [vmem:[%s7] sm:$0x3]
            %s898 = smul.addr %s468, 16
            %s899 = scalar_lea.hbm %s1, %s898
            // Predicated region
            $region82: #{tpu_custom_call.1} parent=73 // pred_check
              _
            $region83: #{tpu_custom_call.1} parent=73 // pred_check_branch
              %901 = sbr.rel target = $region85
            $region84: #{tpu_custom_call.1} parent=73 // pred_region
              %902 = sst [smem:[#allocation22]] [#allocation27]
              %903 = sst [smem:[#allocation23]] [#allocation26]
            $region85: #{tpu_custom_call.1} parent=73 // pred_fallthru
              _
            %905 = shalt.err (0)
            %s907 = sshll.u32 [#allocation17], 4
            %s908 = int_to_ptr.vmem [resolvable:$true] %s907
            %910 = dma.hbm_to_vmem [thread:$0]  %s899, 4096, %s908, [#allocation19]
            // Predicated region
            $region86: #{tpu_custom_call.1} parent=73 // pred_check
              _
            $region87: #{tpu_custom_call.1} parent=73 // pred_check_branch
              %912 = sbr.rel target = $region89
            $region88: #{tpu_custom_call.1} parent=73 // pred_region
              %913 = sst [smem:[#allocation22]] [#allocation29]
              %914 = sst [smem:[#allocation23]] [#allocation28]
            $region89: #{tpu_custom_call.1} parent=73 // pred_fallthru
              _
            %916 = shalt.err (0)
            %s918 = sshll.u32 [#allocation18], 4
            %s919 = int_to_ptr.vmem [resolvable:$true] %s918
            %921 = dma.hbm_to_vmem [thread:$0]  %s6, 4096, %s919, %s482
            %s922 = sshll.u32 %s494, 4
            %923 = dma.done [#allocation19], %s922
            %s924 = sshll.u32 %s498, 4
            %925 = dma.done %s482, %s924
            %v926 = vld [vmem:[#allocation17] sm:$0xff]
            %v927 = vld [vmem:[#allocation17 + $0x8] sm:$0xff]
            %v928 = vld [vmem:[#allocation17 + $0x10] sm:$0xff]
            %v929 = vld [vmem:[#allocation17 + $0x18] sm:$0xff]
            %v930 = vld [vmem:[#allocation17 + $0x20] sm:$0xff]
            %v931 = vld [vmem:[#allocation17 + $0x28] sm:$0xff]
            %v932 = vld [vmem:[#allocation17 + $0x30] sm:$0xff]
            %v933 = vld [vmem:[#allocation17 + $0x38] sm:$0xff]
            %v934 = vld [vmem:[#allocation17 + $0x40] sm:$0xff]
            %v935 = vld [vmem:[#allocation17 + $0x48] sm:$0xff]
            %v936 = vld [vmem:[#allocation17 + $0x50] sm:$0xff]
            %v937 = vld [vmem:[#allocation17 + $0x58] sm:$0xff]
            %v938 = vld [vmem:[#allocation17 + $0x60] sm:$0xff]
            %v939 = vld [vmem:[#allocation17 + $0x68] sm:$0xff]
            %v940 = vld [vmem:[#allocation17 + $0x70] sm:$0xff]
            %v941 = vld [vmem:[#allocation17 + $0x78] sm:$0xff]
            %v942 = vld [vmem:[#allocation17 + $0x80] sm:$0xff]
            %v943 = vld [vmem:[#allocation17 + $0x88] sm:$0xff]
            %v944 = vld [vmem:[#allocation17 + $0x90] sm:$0xff]
            %v945 = vld [vmem:[#allocation17 + $0x98] sm:$0xff]
            %v946 = vld [vmem:[#allocation17 + $0xa0] sm:$0xff]
            %v947 = vld [vmem:[#allocation17 + $0xa8] sm:$0xff]
            %v948 = vld [vmem:[#allocation17 + $0xb0] sm:$0xff]
            %v949 = vld [vmem:[#allocation17 + $0xb8] sm:$0xff]
            %v950 = vld [vmem:[#allocation17 + $0xc0] sm:$0xff]
            %v951 = vld [vmem:[#allocation17 + $0xc8] sm:$0xff]
            %v952 = vld [vmem:[#allocation17 + $0xd0] sm:$0xff]
            %v953 = vld [vmem:[#allocation17 + $0xd8] sm:$0xff]
            %v954 = vld [vmem:[#allocation17 + $0xe0] sm:$0xff]
            %v955 = vld [vmem:[#allocation17 + $0xe8] sm:$0xff]
            %v956 = vld [vmem:[#allocation17 + $0xf0] sm:$0xff]
            %v957 = vld [vmem:[#allocation17 + $0xf8] sm:$0xff]
            %v958 = vld [vmem:[#allocation18] sm:$0xff]
            %v959 = vld [vmem:[#allocation18 + $0x8] sm:$0xff]
            %v960 = vld [vmem:[#allocation18 + $0x10] sm:$0xff]
            %v961 = vld [vmem:[#allocation18 + $0x18] sm:$0xff]
            %v962 = vld [vmem:[#allocation18 + $0x20] sm:$0xff]
            %v963 = vld [vmem:[#allocation18 + $0x28] sm:$0xff]
            %v964 = vld [vmem:[#allocation18 + $0x30] sm:$0xff]
            %v965 = vld [vmem:[#allocation18 + $0x38] sm:$0xff]
            %v966 = vld [vmem:[#allocation18 + $0x40] sm:$0xff]
            %v967 = vld [vmem:[#allocation18 + $0x48] sm:$0xff]
            %v968 = vld [vmem:[#allocation18 + $0x50] sm:$0xff]
            %v969 = vld [vmem:[#allocation18 + $0x58] sm:$0xff]
            %v970 = vld [vmem:[#allocation18 + $0x60] sm:$0xff]
            %v971 = vld [vmem:[#allocation18 + $0x68] sm:$0xff]
            %v972 = vld [vmem:[#allocation18 + $0x70] sm:$0xff]
            %v973 = vld [vmem:[#allocation18 + $0x78] sm:$0xff]
            %v974 = vld [vmem:[#allocation18 + $0x80] sm:$0xff]
            %v975 = vld [vmem:[#allocation18 + $0x88] sm:$0xff]
            %v976 = vld [vmem:[#allocation18 + $0x90] sm:$0xff]
            %v977 = vld [vmem:[#allocation18 + $0x98] sm:$0xff]
            %v978 = vld [vmem:[#allocation18 + $0xa0] sm:$0xff]
            %v979 = vld [vmem:[#allocation18 + $0xa8] sm:$0xff]
            %v980 = vld [vmem:[#allocation18 + $0xb0] sm:$0xff]
            %v981 = vld [vmem:[#allocation18 + $0xb8] sm:$0xff]
            %v982 = vld [vmem:[#allocation18 + $0xc0] sm:$0xff]
            %v983 = vld [vmem:[#allocation18 + $0xc8] sm:$0xff]
            %v984 = vld [vmem:[#allocation18 + $0xd0] sm:$0xff]
            %v985 = vld [vmem:[#allocation18 + $0xd8] sm:$0xff]
            %v986 = vld [vmem:[#allocation18 + $0xe0] sm:$0xff]
            %v987 = vld [vmem:[#allocation18 + $0xe8] sm:$0xff]
            %v988 = vld [vmem:[#allocation18 + $0xf0] sm:$0xff]
            %v989 = vld [vmem:[#allocation18 + $0xf8] sm:$0xff]
            %v991 = vlaneseq
            %v992 = vshrl.u32 %v991, 7
            %v993 = vsub.s32 0, %v992
            %v994 = vrot.slane %v897, %v993
            %v995 = vlaneseq
            %v996 = vshrl.u32 %v995, 7
            %v997 = vsub.s32 1, %v996
            %v998 = vrot.slane %v897, %v997
            %1001 = vmatprep.subr.mxu0 %v989
            %1002 = vmatpush1.msra.mxu0 %v988
            %1003 = vmatprep.subr.mxu0 %v987
            %1004 = vmatpush1.msra.mxu0 %v986
            %1005 = vmatprep.subr.mxu0 %v985
            %1006 = vmatpush1.msra.mxu0 %v984
            %1007 = vmatprep.subr.mxu0 %v983
            %1008 = vmatpush1.msra.mxu0 %v982
            %1009 = vmatprep.subr.mxu0 %v981
            %1010 = vmatpush1.msra.mxu0 %v980
            %1011 = vmatprep.subr.mxu0 %v979
            %1012 = vmatpush1.msra.mxu0 %v978
            %1013 = vmatprep.subr.mxu0 %v977
            %1014 = vmatpush1.msra.mxu0 %v976
            %1015 = vmatprep.subr.mxu0 %v975
            %1016 = vmatpush1.msra.mxu0 %v974
            %1017 = vmatprep.subr.mxu0 %v973
            %1018 = vmatpush1.msra.mxu0 %v972
            %1019 = vmatprep.subr.mxu0 %v971
            %1020 = vmatpush1.msra.mxu0 %v970
            %1021 = vmatprep.subr.mxu0 %v969
            %1022 = vmatpush1.msra.mxu0 %v968
            %1023 = vmatprep.subr.mxu0 %v967
            %1024 = vmatpush1.msra.mxu0 %v966
            %1025 = vmatprep.subr.mxu0 %v965
            %1026 = vmatpush1.msra.mxu0 %v964
            %1027 = vmatprep.subr.mxu0 %v963
            %1028 = vmatpush1.msra.mxu0 %v962
            %1029 = vmatprep.subr.mxu0 %v961
            %1030 = vmatpush1.msra.mxu0 %v960
            %1031 = vmatprep.subr.mxu0 %v959
            %1032 = vmatpush1.msra.mxu0 %v958
            %1033 = vmatprep.subr.mxu0 0.0
            %1034 = vmatpush2.msra.mxu0 0.0
            %1035 = vmatprep.subr.mxu0 0.0
            %1036 = vmatpush2.msra.mxu0 0.0
            %1037 = vmatprep.subr.mxu0 0.0
            %1038 = vmatpush2.msra.mxu0 0.0
            %1039 = vmatprep.subr.mxu0 0.0
            %1040 = vmatpush2.msra.mxu0 0.0
            %1041 = vmatprep.subr.mxu0 0.0
            %1042 = vmatpush2.msra.mxu0 0.0
            %1043 = vmatprep.subr.mxu0 0.0
            %1044 = vmatpush2.msra.mxu0 0.0
            %1045 = vmatprep.subr.mxu0 0.0
            %1046 = vmatpush2.msra.mxu0 0.0
            %1047 = vmatprep.subr.mxu0 0.0
            %1048 = vmatpush2.msra.mxu0 0.0
            %1049 = vmatprep.subr.mxu0 0.0
            %1050 = vmatpush2.msra.mxu0 0.0
            %1051 = vmatprep.subr.mxu0 0.0
            %1052 = vmatpush2.msra.mxu0 0.0
            %1053 = vmatprep.subr.mxu0 0.0
            %1054 = vmatpush2.msra.mxu0 0.0
            %1055 = vmatprep.subr.mxu0 0.0
            %1056 = vmatpush2.msra.mxu0 0.0
            %1057 = vmatprep.subr.mxu0 0.0
            %1058 = vmatpush2.msra.mxu0 0.0
            %1059 = vmatprep.subr.mxu0 0.0
            %1060 = vmatpush2.msra.mxu0 0.0
            %1061 = vmatprep.subr.mxu0 0.0
            %1062 = vmatpush2.msra.mxu0 0.0
            %1063 = vmatprep.subr.mxu0 0.0
            %1064 = vmatpush2.msra.mxu0 0.0
            %1065 = vmatprep.mubr.f32.mxu0 0.0
            %1066 = vmatmul.mubr.f32.gmra.mxu0 %v926
            %v1067 = vpop.f32.mrf.mxu0
            %v1068 = vadd.f32 %v994, %v1067
            %v1069 = vpop.f32.mrf.mxu0
            %v1070 = vadd.f32 %v998, %v1069
            %1071 = vmatprep.mubr.f32.mxu0 0.0
            %1072 = vmatmul.mubr.f32.gmra.mxu0 %v927
            %v1073 = vpop.f32.mrf.mxu0
            %v1074 = vadd.f32 %v994, %v1073
            %v1075 = vpop.f32.mrf.mxu0
            %v1076 = vadd.f32 %v998, %v1075
            %1077 = vmatprep.mubr.f32.mxu0 0.0
            %1078 = vmatmul.mubr.f32.gmra.mxu0 %v928
            %v1079 = vpop.f32.mrf.mxu0
            %v1080 = vadd.f32 %v994, %v1079
            %v1081 = vpop.f32.mrf.mxu0
            %v1082 = vadd.f32 %v998, %v1081
            %1083 = vmatprep.mubr.f32.mxu0 0.0
            %1084 = vmatmul.mubr.f32.gmra.mxu0 %v929
            %v1085 = vpop.f32.mrf.mxu0
            %v1086 = vadd.f32 %v994, %v1085
            %v1087 = vpop.f32.mrf.mxu0
            %v1088 = vadd.f32 %v998, %v1087
            %1089 = vmatprep.mubr.f32.mxu0 0.0
            %1090 = vmatmul.mubr.f32.gmra.mxu0 %v930
            %v1091 = vpop.f32.mrf.mxu0
            %v1092 = vadd.f32 %v994, %v1091
            %v1093 = vpop.f32.mrf.mxu0
            %v1094 = vadd.f32 %v998, %v1093
            %1095 = vmatprep.mubr.f32.mxu0 0.0
            %1096 = vmatmul.mubr.f32.gmra.mxu0 %v931
            %v1097 = vpop.f32.mrf.mxu0
            %v1098 = vadd.f32 %v994, %v1097
            %v1099 = vpop.f32.mrf.mxu0
            %v1100 = vadd.f32 %v998, %v1099
            %1101 = vmatprep.mubr.f32.mxu0 0.0
            %1102 = vmatmul.mubr.f32.gmra.mxu0 %v932
            %v1103 = vpop.f32.mrf.mxu0
            %v1104 = vadd.f32 %v994, %v1103
            %v1105 = vpop.f32.mrf.mxu0
            %v1106 = vadd.f32 %v998, %v1105
            %1107 = vmatprep.mubr.f32.mxu0 0.0
            %1108 = vmatmul.mubr.f32.gmra.mxu0 %v933
            %v1109 = vpop.f32.mrf.mxu0
            %v1110 = vadd.f32 %v994, %v1109
            %v1111 = vpop.f32.mrf.mxu0
            %v1112 = vadd.f32 %v998, %v1111
            %1113 = vmatprep.mubr.f32.mxu0 0.0
            %1114 = vmatmul.mubr.f32.gmra.mxu0 %v934
            %v1115 = vpop.f32.mrf.mxu0
            %v1116 = vadd.f32 %v994, %v1115
            %v1117 = vpop.f32.mrf.mxu0
            %v1118 = vadd.f32 %v998, %v1117
            %1119 = vmatprep.mubr.f32.mxu0 0.0
            %1120 = vmatmul.mubr.f32.gmra.mxu0 %v935
            %v1121 = vpop.f32.mrf.mxu0
            %v1122 = vadd.f32 %v994, %v1121
            %v1123 = vpop.f32.mrf.mxu0
            %v1124 = vadd.f32 %v998, %v1123
            %1125 = vmatprep.mubr.f32.mxu0 0.0
            %1126 = vmatmul.mubr.f32.gmra.mxu0 %v936
            %v1127 = vpop.f32.mrf.mxu0
            %v1128 = vadd.f32 %v994, %v1127
            %v1129 = vpop.f32.mrf.mxu0
            %v1130 = vadd.f32 %v998, %v1129
            %1131 = vmatprep.mubr.f32.mxu0 0.0
            %1132 = vmatmul.mubr.f32.gmra.mxu0 %v937
            %v1133 = vpop.f32.mrf.mxu0
            %v1134 = vadd.f32 %v994, %v1133
            %v1135 = vpop.f32.mrf.mxu0
            %v1136 = vadd.f32 %v998, %v1135
            %1137 = vmatprep.mubr.f32.mxu0 0.0
            %1138 = vmatmul.mubr.f32.gmra.mxu0 %v938
            %v1139 = vpop.f32.mrf.mxu0
            %v1140 = vadd.f32 %v994, %v1139
            %v1141 = vpop.f32.mrf.mxu0
            %v1142 = vadd.f32 %v998, %v1141
            %1143 = vmatprep.mubr.f32.mxu0 0.0
            %1144 = vmatmul.mubr.f32.gmra.mxu0 %v939
            %v1145 = vpop.f32.mrf.mxu0
            %v1146 = vadd.f32 %v994, %v1145
            %v1147 = vpop.f32.mrf.mxu0
            %v1148 = vadd.f32 %v998, %v1147
            %1149 = vmatprep.mubr.f32.mxu0 0.0
            %1150 = vmatmul.mubr.f32.gmra.mxu0 %v940
            %v1151 = vpop.f32.mrf.mxu0
            %v1152 = vadd.f32 %v994, %v1151
            %v1153 = vpop.f32.mrf.mxu0
            %v1154 = vadd.f32 %v998, %v1153
            %1155 = vmatprep.mubr.f32.mxu0 0.0
            %1156 = vmatmul.mubr.f32.gmra.mxu0 %v941
            %v1157 = vpop.f32.mrf.mxu0
            %v1158 = vadd.f32 %v994, %v1157
            %v1159 = vpop.f32.mrf.mxu0
            %v1160 = vadd.f32 %v998, %v1159
            %1161 = vmatprep.mubr.f32.mxu0 0.0
            %1162 = vmatmul.mubr.f32.gmra.mxu0 %v942
            %v1163 = vpop.f32.mrf.mxu0
            %v1164 = vadd.f32 %v994, %v1163
            %v1165 = vpop.f32.mrf.mxu0
            %v1166 = vadd.f32 %v998, %v1165
            %1167 = vmatprep.mubr.f32.mxu0 0.0
            %1168 = vmatmul.mubr.f32.gmra.mxu0 %v943
            %v1169 = vpop.f32.mrf.mxu0
            %v1170 = vadd.f32 %v994, %v1169
            %v1171 = vpop.f32.mrf.mxu0
            %v1172 = vadd.f32 %v998, %v1171
            %1173 = vmatprep.mubr.f32.mxu0 0.0
            %1174 = vmatmul.mubr.f32.gmra.mxu0 %v944
            %v1175 = vpop.f32.mrf.mxu0
            %v1176 = vadd.f32 %v994, %v1175
            %v1177 = vpop.f32.mrf.mxu0
            %v1178 = vadd.f32 %v998, %v1177
            %1179 = vmatprep.mubr.f32.mxu0 0.0
            %1180 = vmatmul.mubr.f32.gmra.mxu0 %v945
            %v1181 = vpop.f32.mrf.mxu0
            %v1182 = vadd.f32 %v994, %v1181
            %v1183 = vpop.f32.mrf.mxu0
            %v1184 = vadd.f32 %v998, %v1183
            %1185 = vmatprep.mubr.f32.mxu0 0.0
            %1186 = vmatmul.mubr.f32.gmra.mxu0 %v946
            %v1187 = vpop.f32.mrf.mxu0
            %v1188 = vadd.f32 %v994, %v1187
            %v1189 = vpop.f32.mrf.mxu0
            %v1190 = vadd.f32 %v998, %v1189
            %1191 = vmatprep.mubr.f32.mxu0 0.0
            %1192 = vmatmul.mubr.f32.gmra.mxu0 %v947
            %v1193 = vpop.f32.mrf.mxu0
            %v1194 = vadd.f32 %v994, %v1193
            %v1195 = vpop.f32.mrf.mxu0
            %v1196 = vadd.f32 %v998, %v1195
            %1197 = vmatprep.mubr.f32.mxu0 0.0
            %1198 = vmatmul.mubr.f32.gmra.mxu0 %v948
            %v1199 = vpop.f32.mrf.mxu0
            %v1200 = vadd.f32 %v994, %v1199
            %v1201 = vpop.f32.mrf.mxu0
            %v1202 = vadd.f32 %v998, %v1201
            %1203 = vmatprep.mubr.f32.mxu0 0.0
            %1204 = vmatmul.mubr.f32.gmra.mxu0 %v949
            %v1205 = vpop.f32.mrf.mxu0
            %v1206 = vadd.f32 %v994, %v1205
            %v1207 = vpop.f32.mrf.mxu0
            %v1208 = vadd.f32 %v998, %v1207
            %1209 = vmatprep.mubr.f32.mxu0 0.0
            %1210 = vmatmul.mubr.f32.gmra.mxu0 %v950
            %v1211 = vpop.f32.mrf.mxu0
            %v1212 = vadd.f32 %v994, %v1211
            %v1213 = vpop.f32.mrf.mxu0
            %v1214 = vadd.f32 %v998, %v1213
            %1215 = vmatprep.mubr.f32.mxu0 0.0
            %1216 = vmatmul.mubr.f32.gmra.mxu0 %v951
            %v1217 = vpop.f32.mrf.mxu0
            %v1218 = vadd.f32 %v994, %v1217
            %v1219 = vpop.f32.mrf.mxu0
            %v1220 = vadd.f32 %v998, %v1219
            %1221 = vmatprep.mubr.f32.mxu0 0.0
            %1222 = vmatmul.mubr.f32.gmra.mxu0 %v952
            %v1223 = vpop.f32.mrf.mxu0
            %v1224 = vadd.f32 %v994, %v1223
            %v1225 = vpop.f32.mrf.mxu0
            %v1226 = vadd.f32 %v998, %v1225
            %1227 = vmatprep.mubr.f32.mxu0 0.0
            %1228 = vmatmul.mubr.f32.gmra.mxu0 %v953
            %v1229 = vpop.f32.mrf.mxu0
            %v1230 = vadd.f32 %v994, %v1229
            %v1231 = vpop.f32.mrf.mxu0
            %v1232 = vadd.f32 %v998, %v1231
            %1233 = vmatprep.mubr.f32.mxu0 0.0
            %1234 = vmatmul.mubr.f32.gmra.mxu0 %v954
            %v1235 = vpop.f32.mrf.mxu0
            %v1236 = vadd.f32 %v994, %v1235
            %v1237 = vpop.f32.mrf.mxu0
            %v1238 = vadd.f32 %v998, %v1237
            %1239 = vmatprep.mubr.f32.mxu0 0.0
            %1240 = vmatmul.mubr.f32.gmra.mxu0 %v955
            %v1241 = vpop.f32.mrf.mxu0
            %v1242 = vadd.f32 %v994, %v1241
            %v1243 = vpop.f32.mrf.mxu0
            %v1244 = vadd.f32 %v998, %v1243
            %1245 = vmatprep.mubr.f32.mxu0 0.0
            %1246 = vmatmul.mubr.f32.gmra.mxu0 %v956
            %v1247 = vpop.f32.mrf.mxu0
            %v1248 = vadd.f32 %v994, %v1247
            %v1249 = vpop.f32.mrf.mxu0
            %v1250 = vadd.f32 %v998, %v1249
            %1251 = vmatprep.mubr.f32.mxu0 0.0
            %1252 = vmatmul.mubr.f32.gmra.mxu0 %v957
            %v1253 = vpop.f32.mrf.mxu0
            %v1254 = vadd.f32 %v994, %v1253
            %v1255 = vpop.f32.mrf.mxu0
            %v1256 = vadd.f32 %v998, %v1255
            %1257 = vdwg.mxu0
            %1258 = vst [vmem:[#allocation3] sm:$0xff] %v1068
            %1259 = vst [vmem:[#allocation3 + $0x8] sm:$0xff] %v1074
            %1260 = vst [vmem:[#allocation3 + $0x10] sm:$0xff] %v1080
            %1261 = vst [vmem:[#allocation3 + $0x18] sm:$0xff] %v1086
            %1262 = vst [vmem:[#allocation3 + $0x20] sm:$0xff] %v1092
            %1263 = vst [vmem:[#allocation3 + $0x28] sm:$0xff] %v1098
            %1264 = vst [vmem:[#allocation3 + $0x30] sm:$0xff] %v1104
            %1265 = vst [vmem:[#allocation3 + $0x38] sm:$0xff] %v1110
            %1266 = vst [vmem:[#allocation3 + $0x40] sm:$0xff] %v1116
            %1267 = vst [vmem:[#allocation3 + $0x48] sm:$0xff] %v1122
            %1268 = vst [vmem:[#allocation3 + $0x50] sm:$0xff] %v1128
            %1269 = vst [vmem:[#allocation3 + $0x58] sm:$0xff] %v1134
            %1270 = vst [vmem:[#allocation3 + $0x60] sm:$0xff] %v1140
            %1271 = vst [vmem:[#allocation3 + $0x68] sm:$0xff] %v1146
            %1272 = vst [vmem:[#allocation3 + $0x70] sm:$0xff] %v1152
            %1273 = vst [vmem:[#allocation3 + $0x78] sm:$0xff] %v1158
            %1274 = vst [vmem:[#allocation3 + $0x80] sm:$0xff] %v1164
            %1275 = vst [vmem:[#allocation3 + $0x88] sm:$0xff] %v1170
            %1276 = vst [vmem:[#allocation3 + $0x90] sm:$0xff] %v1176
            %1277 = vst [vmem:[#allocation3 + $0x98] sm:$0xff] %v1182
            %1278 = vst [vmem:[#allocation3 + $0xa0] sm:$0xff] %v1188
            %1279 = vst [vmem:[#allocation3 + $0xa8] sm:$0xff] %v1194
            %1280 = vst [vmem:[#allocation3 + $0xb0] sm:$0xff] %v1200
            %1281 = vst [vmem:[#allocation3 + $0xb8] sm:$0xff] %v1206
            %1282 = vst [vmem:[#allocation3 + $0xc0] sm:$0xff] %v1212
            %1283 = vst [vmem:[#allocation3 + $0xc8] sm:$0xff] %v1218
            %1284 = vst [vmem:[#allocation3 + $0xd0] sm:$0xff] %v1224
            %1285 = vst [vmem:[#allocation3 + $0xd8] sm:$0xff] %v1230
            %1286 = vst [vmem:[#allocation3 + $0xe0] sm:$0xff] %v1236
            %1287 = vst [vmem:[#allocation3 + $0xe8] sm:$0xff] %v1242
            %1288 = vst [vmem:[#allocation3 + $0xf0] sm:$0xff] %v1248
            %1289 = vst [vmem:[#allocation3 + $0xf8] sm:$0xff] %v1254
            %1290 = vst [vmem:[#allocation5] sm:$0xff] %v1070
            %1291 = vst [vmem:[#allocation5 + $0x8] sm:$0xff] %v1076
            %1292 = vst [vmem:[#allocation5 + $0x10] sm:$0xff] %v1082
            %1293 = vst [vmem:[#allocation5 + $0x18] sm:$0xff] %v1088
            %1294 = vst [vmem:[#allocation5 + $0x20] sm:$0xff] %v1094
            %1295 = vst [vmem:[#allocation5 + $0x28] sm:$0xff] %v1100
            %1296 = vst [vmem:[#allocation5 + $0x30] sm:$0xff] %v1106
            %1297 = vst [vmem:[#allocation5 + $0x38] sm:$0xff] %v1112
            %1298 = vst [vmem:[#allocation5 + $0x40] sm:$0xff] %v1118
            %1299 = vst [vmem:[#allocation5 + $0x48] sm:$0xff] %v1124
            %1300 = vst [vmem:[#allocation5 + $0x50] sm:$0xff] %v1130
            %1301 = vst [vmem:[#allocation5 + $0x58] sm:$0xff] %v1136
            %1302 = vst [vmem:[#allocation5 + $0x60] sm:$0xff] %v1142
            %1303 = vst [vmem:[#allocation5 + $0x68] sm:$0xff] %v1148
            %1304 = vst [vmem:[#allocation5 + $0x70] sm:$0xff] %v1154
            %1305 = vst [vmem:[#allocation5 + $0x78] sm:$0xff] %v1160
            %1306 = vst [vmem:[#allocation5 + $0x80] sm:$0xff] %v1166
            %1307 = vst [vmem:[#allocation5 + $0x88] sm:$0xff] %v1172
            %1308 = vst [vmem:[#allocation5 + $0x90] sm:$0xff] %v1178
            %1309 = vst [vmem:[#allocation5 + $0x98] sm:$0xff] %v1184
            %1310 = vst [vmem:[#allocation5 + $0xa0] sm:$0xff] %v1190
            %1311 = vst [vmem:[#allocation5 + $0xa8] sm:$0xff] %v1196
            %1312 = vst [vmem:[#allocation5 + $0xb0] sm:$0xff] %v1202
            %1313 = vst [vmem:[#allocation5 + $0xb8] sm:$0xff] %v1208
            %1314 = vst [vmem:[#allocation5 + $0xc0] sm:$0xff] %v1214
            %1315 = vst [vmem:[#allocation5 + $0xc8] sm:$0xff] %v1220
            %1316 = vst [vmem:[#allocation5 + $0xd0] sm:$0xff] %v1226
            %1317 = vst [vmem:[#allocation5 + $0xd8] sm:$0xff] %v1232
            %1318 = vst [vmem:[#allocation5 + $0xe0] sm:$0xff] %v1238
            %1319 = vst [vmem:[#allocation5 + $0xe8] sm:$0xff] %v1244
            %1320 = vst [vmem:[#allocation5 + $0xf0] sm:$0xff] %v1250
            %1321 = vst [vmem:[#allocation5 + $0xf8] sm:$0xff] %v1256
        $region72: #{tpu_custom_call.1} parent=51 // pred_fallthru
          _
        %s1322 = smul.u32 %s43, 256
        %s1323 = scalar_lea.vmem [#allocation2], %s1322
        %v1324 = vld [vmem:[%s1323] sm:$0xff]
        %v1325 = vld [vmem:[%s1323 + $0x8] sm:$0xff]
        %v1326 = vld [vmem:[%s1323 + $0x10] sm:$0xff]
        %v1327 = vld [vmem:[%s1323 + $0x18] sm:$0xff]
        %v1328 = vld [vmem:[%s1323 + $0x20] sm:$0xff]
        %v1329 = vld [vmem:[%s1323 + $0x28] sm:$0xff]
        %v1330 = vld [vmem:[%s1323 + $0x30] sm:$0xff]
        %v1331 = vld [vmem:[%s1323 + $0x38] sm:$0xff]
        %v1332 = vld [vmem:[%s1323 + $0x40] sm:$0xff]
        %v1333 = vld [vmem:[%s1323 + $0x48] sm:$0xff]
        %v1334 = vld [vmem:[%s1323 + $0x50] sm:$0xff]
        %v1335 = vld [vmem:[%s1323 + $0x58] sm:$0xff]
        %v1336 = vld [vmem:[%s1323 + $0x60] sm:$0xff]
        %v1337 = vld [vmem:[%s1323 + $0x68] sm:$0xff]
        %v1338 = vld [vmem:[%s1323 + $0x70] sm:$0xff]
        %v1339 = vld [vmem:[%s1323 + $0x78] sm:$0xff]
        %v1340 = vld [vmem:[%s1323 + $0x80] sm:$0xff]
        %v1341 = vld [vmem:[%s1323 + $0x88] sm:$0xff]
        %v1342 = vld [vmem:[%s1323 + $0x90] sm:$0xff]
        %v1343 = vld [vmem:[%s1323 + $0x98] sm:$0xff]
        %v1344 = vld [vmem:[%s1323 + $0xa0] sm:$0xff]
        %v1345 = vld [vmem:[%s1323 + $0xa8] sm:$0xff]
        %v1346 = vld [vmem:[%s1323 + $0xb0] sm:$0xff]
        %v1347 = vld [vmem:[%s1323 + $0xb8] sm:$0xff]
        %v1348 = vld [vmem:[%s1323 + $0xc0] sm:$0xff]
        %v1349 = vld [vmem:[%s1323 + $0xc8] sm:$0xff]
        %v1350 = vld [vmem:[%s1323 + $0xd0] sm:$0xff]
        %v1351 = vld [vmem:[%s1323 + $0xd8] sm:$0xff]
        %v1352 = vld [vmem:[%s1323 + $0xe0] sm:$0xff]
        %v1353 = vld [vmem:[%s1323 + $0xe8] sm:$0xff]
        %v1354 = vld [vmem:[%s1323 + $0xf0] sm:$0xff]
        %v1355 = vld [vmem:[%s1323 + $0xf8] sm:$0xff]
        %s1356 = scalar_lea.vmem [#allocation3], %s1322
        %v1357 = vld [vmem:[%s1356] sm:$0xff]
        %v1358 = vld [vmem:[%s1356 + $0x8] sm:$0xff]
        %v1359 = vld [vmem:[%s1356 + $0x10] sm:$0xff]
        %v1360 = vld [vmem:[%s1356 + $0x18] sm:$0xff]
        %v1361 = vld [vmem:[%s1356 + $0x20] sm:$0xff]
        %v1362 = vld [vmem:[%s1356 + $0x28] sm:$0xff]
        %v1363 = vld [vmem:[%s1356 + $0x30] sm:$0xff]
        %v1364 = vld [vmem:[%s1356 + $0x38] sm:$0xff]
        %v1365 = vld [vmem:[%s1356 + $0x40] sm:$0xff]
        %v1366 = vld [vmem:[%s1356 + $0x48] sm:$0xff]
        %v1367 = vld [vmem:[%s1356 + $0x50] sm:$0xff]
        %v1368 = vld [vmem:[%s1356 + $0x58] sm:$0xff]
        %v1369 = vld [vmem:[%s1356 + $0x60] sm:$0xff]
        %v1370 = vld [vmem:[%s1356 + $0x68] sm:$0xff]
        %v1371 = vld [vmem:[%s1356 + $0x70] sm:$0xff]
        %v1372 = vld [vmem:[%s1356 + $0x78] sm:$0xff]
        %v1373 = vld [vmem:[%s1356 + $0x80] sm:$0xff]
        %v1374 = vld [vmem:[%s1356 + $0x88] sm:$0xff]
        %v1375 = vld [vmem:[%s1356 + $0x90] sm:$0xff]
        %v1376 = vld [vmem:[%s1356 + $0x98] sm:$0xff]
        %v1377 = vld [vmem:[%s1356 + $0xa0] sm:$0xff]
        %v1378 = vld [vmem:[%s1356 + $0xa8] sm:$0xff]
        %v1379 = vld [vmem:[%s1356 + $0xb0] sm:$0xff]
        %v1380 = vld [vmem:[%s1356 + $0xb8] sm:$0xff]
        %v1381 = vld [vmem:[%s1356 + $0xc0] sm:$0xff]
        %v1382 = vld [vmem:[%s1356 + $0xc8] sm:$0xff]
        %v1383 = vld [vmem:[%s1356 + $0xd0] sm:$0xff]
        %v1384 = vld [vmem:[%s1356 + $0xd8] sm:$0xff]
        %v1385 = vld [vmem:[%s1356 + $0xe0] sm:$0xff]
        %v1386 = vld [vmem:[%s1356 + $0xe8] sm:$0xff]
        %v1387 = vld [vmem:[%s1356 + $0xf0] sm:$0xff]
        %v1388 = vld [vmem:[%s1356 + $0xf8] sm:$0xff]
        %v1389 = vld [vmem:[#allocation3] sm:$0xff]
        %v1390 = vld [vmem:[#allocation3 + $0x8] sm:$0xff]
        %v1391 = vld [vmem:[#allocation3 + $0x10] sm:$0xff]
        %v1392 = vld [vmem:[#allocation3 + $0x18] sm:$0xff]
        %v1393 = vld [vmem:[#allocation3 + $0x20] sm:$0xff]
        %v1394 = vld [vmem:[#allocation3 + $0x28] sm:$0xff]
        %v1395 = vld [vmem:[#allocation3 + $0x30] sm:$0xff]
        %v1396 = vld [vmem:[#allocation3 + $0x38] sm:$0xff]
        %v1397 = vld [vmem:[#allocation3 + $0x40] sm:$0xff]
        %v1398 = vld [vmem:[#allocation3 + $0x48] sm:$0xff]
        %v1399 = vld [vmem:[#allocation3 + $0x50] sm:$0xff]
        %v1400 = vld [vmem:[#allocation3 + $0x58] sm:$0xff]
        %v1401 = vld [vmem:[#allocation3 + $0x60] sm:$0xff]
        %v1402 = vld [vmem:[#allocation3 + $0x68] sm:$0xff]
        %v1403 = vld [vmem:[#allocation3 + $0x70] sm:$0xff]
        %v1404 = vld [vmem:[#allocation3 + $0x78] sm:$0xff]
        %v1405 = vld [vmem:[#allocation3 + $0x80] sm:$0xff]
        %v1406 = vld [vmem:[#allocation3 + $0x88] sm:$0xff]
        %v1407 = vld [vmem:[#allocation3 + $0x90] sm:$0xff]
        %v1408 = vld [vmem:[#allocation3 + $0x98] sm:$0xff]
        %v1409 = vld [vmem:[#allocation3 + $0xa0] sm:$0xff]
        %v1410 = vld [vmem:[#allocation3 + $0xa8] sm:$0xff]
        %v1411 = vld [vmem:[#allocation3 + $0xb0] sm:$0xff]
        %v1412 = vld [vmem:[#allocation3 + $0xb8] sm:$0xff]
        %v1413 = vld [vmem:[#allocation3 + $0xc0] sm:$0xff]
        %v1414 = vld [vmem:[#allocation3 + $0xc8] sm:$0xff]
        %v1415 = vld [vmem:[#allocation3 + $0xd0] sm:$0xff]
        %v1416 = vld [vmem:[#allocation3 + $0xd8] sm:$0xff]
        %v1417 = vld [vmem:[#allocation3 + $0xe0] sm:$0xff]
        %v1418 = vld [vmem:[#allocation3 + $0xe8] sm:$0xff]
        %v1419 = vld [vmem:[#allocation3 + $0xf0] sm:$0xff]
        %v1420 = vld [vmem:[#allocation3 + $0xf8] sm:$0xff]
        %v1421 = vld [vmem:[#allocation4] sm:$0xff]
        %v1422 = vld [vmem:[#allocation4 + $0x8] sm:$0xff]
        %v1423 = vld [vmem:[#allocation4 + $0x10] sm:$0xff]
        %v1424 = vld [vmem:[#allocation4 + $0x18] sm:$0xff]
        %v1425 = vld [vmem:[#allocation4 + $0x20] sm:$0xff]
        %v1426 = vld [vmem:[#allocation4 + $0x28] sm:$0xff]
        %v1427 = vld [vmem:[#allocation4 + $0x30] sm:$0xff]
        %v1428 = vld [vmem:[#allocation4 + $0x38] sm:$0xff]
        %v1429 = vld [vmem:[#allocation4 + $0x40] sm:$0xff]
        %v1430 = vld [vmem:[#allocation4 + $0x48] sm:$0xff]
        %v1431 = vld [vmem:[#allocation4 + $0x50] sm:$0xff]
        %v1432 = vld [vmem:[#allocation4 + $0x58] sm:$0xff]
        %v1433 = vld [vmem:[#allocation4 + $0x60] sm:$0xff]
        %v1434 = vld [vmem:[#allocation4 + $0x68] sm:$0xff]
        %v1435 = vld [vmem:[#allocation4 + $0x70] sm:$0xff]
        %v1436 = vld [vmem:[#allocation4 + $0x78] sm:$0xff]
        %v1437 = vld [vmem:[#allocation4 + $0x80] sm:$0xff]
        %v1438 = vld [vmem:[#allocation4 + $0x88] sm:$0xff]
        %v1439 = vld [vmem:[#allocation4 + $0x90] sm:$0xff]
        %v1440 = vld [vmem:[#allocation4 + $0x98] sm:$0xff]
        %v1441 = vld [vmem:[#allocation4 + $0xa0] sm:$0xff]
        %v1442 = vld [vmem:[#allocation4 + $0xa8] sm:$0xff]
        %v1443 = vld [vmem:[#allocation4 + $0xb0] sm:$0xff]
        %v1444 = vld [vmem:[#allocation4 + $0xb8] sm:$0xff]
        %v1445 = vld [vmem:[#allocation4 + $0xc0] sm:$0xff]
        %v1446 = vld [vmem:[#allocation4 + $0xc8] sm:$0xff]
        %v1447 = vld [vmem:[#allocation4 + $0xd0] sm:$0xff]
        %v1448 = vld [vmem:[#allocation4 + $0xd8] sm:$0xff]
        %v1449 = vld [vmem:[#allocation4 + $0xe0] sm:$0xff]
        %v1450 = vld [vmem:[#allocation4 + $0xe8] sm:$0xff]
        %v1451 = vld [vmem:[#allocation4 + $0xf0] sm:$0xff]
        %v1452 = vld [vmem:[#allocation4 + $0xf8] sm:$0xff]
        %1453 = vmatprep.subr.mxu0 0.0
        %1454 = vmatpush1.xpose.msra.mxu0 %v1404
        %1455 = vmatprep.subr.mxu0 0.0
        %1456 = vmatpush1.xpose.msra.mxu0 %v1403
        %1457 = vmatprep.subr.mxu0 0.0
        %1458 = vmatpush1.xpose.msra.mxu0 %v1402
        %1459 = vmatprep.subr.mxu0 0.0
        %1460 = vmatpush1.xpose.msra.mxu0 %v1401
        %1461 = vmatprep.subr.mxu0 0.0
        %1462 = vmatpush1.xpose.msra.mxu0 %v1400
        %1463 = vmatprep.subr.mxu0 0.0
        %1464 = vmatpush1.xpose.msra.mxu0 %v1399
        %1465 = vmatprep.subr.mxu0 0.0
        %1466 = vmatpush1.xpose.msra.mxu0 %v1398
        %1467 = vmatprep.subr.mxu0 0.0
        %1468 = vmatpush1.xpose.msra.mxu0 %v1397
        %1469 = vmatprep.subr.mxu0 0.0
        %1470 = vmatpush1.xpose.msra.mxu0 %v1396
        %1471 = vmatprep.subr.mxu0 0.0
        %1472 = vmatpush1.xpose.msra.mxu0 %v1395
        %1473 = vmatprep.subr.mxu0 0.0
        %1474 = vmatpush1.xpose.msra.mxu0 %v1394
        %1475 = vmatprep.subr.mxu0 0.0
        %1476 = vmatpush1.xpose.msra.mxu0 %v1393
        %1477 = vmatprep.subr.mxu0 0.0
        %1478 = vmatpush1.xpose.msra.mxu0 %v1392
        %1479 = vmatprep.subr.mxu0 0.0
        %1480 = vmatpush1.xpose.msra.mxu0 %v1391
        %1481 = vmatprep.subr.mxu0 0.0
        %1482 = vmatpush1.xpose.msra.mxu0 %v1390
        %1483 = vmatprep.subr.mxu0 0.0
        %1484 = vmatpush1.xpose.msra.mxu0 %v1389
        %1485 = vmatprep.subr.mxu0 0.0
        %1486 = vmatpush2.xpose.msra.mxu0 %v1420
        %1487 = vmatprep.subr.mxu0 0.0
        %1488 = vmatpush2.xpose.msra.mxu0 %v1419
        %1489 = vmatprep.subr.mxu0 0.0
        %1490 = vmatpush2.xpose.msra.mxu0 %v1418
        %1491 = vmatprep.subr.mxu0 0.0
        %1492 = vmatpush2.xpose.msra.mxu0 %v1417
        %1493 = vmatprep.subr.mxu0 0.0
        %1494 = vmatpush2.xpose.msra.mxu0 %v1416
        %1495 = vmatprep.subr.mxu0 0.0
        %1496 = vmatpush2.xpose.msra.mxu0 %v1415
        %1497 = vmatprep.subr.mxu0 0.0
        %1498 = vmatpush2.xpose.msra.mxu0 %v1414
        %1499 = vmatprep.subr.mxu0 0.0
        %1500 = vmatpush2.xpose.msra.mxu0 %v1413
        %1501 = vmatprep.subr.mxu0 0.0
        %1502 = vmatpush2.xpose.msra.mxu0 %v1412
        %1503 = vmatprep.subr.mxu0 0.0
        %1504 = vmatpush2.xpose.msra.mxu0 %v1411
        %1505 = vmatprep.subr.mxu0 0.0
        %1506 = vmatpush2.xpose.msra.mxu0 %v1410
        %1507 = vmatprep.subr.mxu0 0.0
        %1508 = vmatpush2.xpose.msra.mxu0 %v1409
        %1509 = vmatprep.subr.mxu0 0.0
        %1510 = vmatpush2.xpose.msra.mxu0 %v1408
        %1511 = vmatprep.subr.mxu0 0.0
        %1512 = vmatpush2.xpose.msra.mxu0 %v1407
        %1513 = vmatprep.subr.mxu0 0.0
        %1514 = vmatpush2.xpose.msra.mxu0 %v1406
        %1515 = vmatprep.subr.mxu0 0.0
        %1516 = vmatpush2.xpose.msra.mxu0 %v1405
        %1517 = vmatprep.mubr.f32.mxu0 0.0
        %1518 = vmatmul.mubr.f32.gmra.mxu0 %v1324
        %v1519 = vpop.f32.mrf.mxu0
        %v1520 = vadd.f32 0.0, %v1519
        %v1521 = vpop.f32.mrf.mxu0
        %v1522 = vadd.f32 0.0, %v1521
        %1523 = vmatprep.mubr.f32.mxu0 0.0
        %1524 = vmatmul.mubr.f32.gmra.mxu0 %v1325
        %v1525 = vpop.f32.mrf.mxu0
        %v1526 = vadd.f32 0.0, %v1525
        %v1527 = vpop.f32.mrf.mxu0
        %v1528 = vadd.f32 0.0, %v1527
        %1529 = vmatprep.mubr.f32.mxu0 0.0
        %1530 = vmatmul.mubr.f32.gmra.mxu0 %v1326
        %v1531 = vpop.f32.mrf.mxu0
        %v1532 = vadd.f32 0.0, %v1531
        %v1533 = vpop.f32.mrf.mxu0
        %v1534 = vadd.f32 0.0, %v1533
        %1535 = vmatprep.mubr.f32.mxu0 0.0
        %1536 = vmatmul.mubr.f32.gmra.mxu0 %v1327
        %v1537 = vpop.f32.mrf.mxu0
        %v1538 = vadd.f32 0.0, %v1537
        %v1539 = vpop.f32.mrf.mxu0
        %v1540 = vadd.f32 0.0, %v1539
        %1541 = vmatprep.mubr.f32.mxu0 0.0
        %1542 = vmatmul.mubr.f32.gmra.mxu0 %v1328
        %v1543 = vpop.f32.mrf.mxu0
        %v1544 = vadd.f32 0.0, %v1543
        %v1545 = vpop.f32.mrf.mxu0
        %v1546 = vadd.f32 0.0, %v1545
        %1547 = vmatprep.mubr.f32.mxu0 0.0
        %1548 = vmatmul.mubr.f32.gmra.mxu0 %v1329
        %v1549 = vpop.f32.mrf.mxu0
        %v1550 = vadd.f32 0.0, %v1549
        %v1551 = vpop.f32.mrf.mxu0
        %v1552 = vadd.f32 0.0, %v1551
        %1553 = vmatprep.mubr.f32.mxu0 0.0
        %1554 = vmatmul.mubr.f32.gmra.mxu0 %v1330
        %v1555 = vpop.f32.mrf.mxu0
        %v1556 = vadd.f32 0.0, %v1555
        %v1557 = vpop.f32.mrf.mxu0
        %v1558 = vadd.f32 0.0, %v1557
        %1559 = vmatprep.mubr.f32.mxu0 0.0
        %1560 = vmatmul.mubr.f32.gmra.mxu0 %v1331
        %v1561 = vpop.f32.mrf.mxu0
        %v1562 = vadd.f32 0.0, %v1561
        %v1563 = vpop.f32.mrf.mxu0
        %v1564 = vadd.f32 0.0, %v1563
        %1565 = vmatprep.mubr.f32.mxu0 0.0
        %1566 = vmatmul.mubr.f32.gmra.mxu0 %v1332
        %v1567 = vpop.f32.mrf.mxu0
        %v1568 = vadd.f32 0.0, %v1567
        %v1569 = vpop.f32.mrf.mxu0
        %v1570 = vadd.f32 0.0, %v1569
        %1571 = vmatprep.mubr.f32.mxu0 0.0
        %1572 = vmatmul.mubr.f32.gmra.mxu0 %v1333
        %v1573 = vpop.f32.mrf.mxu0
        %v1574 = vadd.f32 0.0, %v1573
        %v1575 = vpop.f32.mrf.mxu0
        %v1576 = vadd.f32 0.0, %v1575
        %1577 = vmatprep.mubr.f32.mxu0 0.0
        %1578 = vmatmul.mubr.f32.gmra.mxu0 %v1334
        %v1579 = vpop.f32.mrf.mxu0
        %v1580 = vadd.f32 0.0, %v1579
        %v1581 = vpop.f32.mrf.mxu0
        %v1582 = vadd.f32 0.0, %v1581
        %1583 = vmatprep.mubr.f32.mxu0 0.0
        %1584 = vmatmul.mubr.f32.gmra.mxu0 %v1335
        %v1585 = vpop.f32.mrf.mxu0
        %v1586 = vadd.f32 0.0, %v1585
        %v1587 = vpop.f32.mrf.mxu0
        %v1588 = vadd.f32 0.0, %v1587
        %1589 = vmatprep.mubr.f32.mxu0 0.0
        %1590 = vmatmul.mubr.f32.gmra.mxu0 %v1336
        %v1591 = vpop.f32.mrf.mxu0
        %v1592 = vadd.f32 0.0, %v1591
        %v1593 = vpop.f32.mrf.mxu0
        %v1594 = vadd.f32 0.0, %v1593
        %1595 = vmatprep.mubr.f32.mxu0 0.0
        %1596 = vmatmul.mubr.f32.gmra.mxu0 %v1337
        %v1597 = vpop.f32.mrf.mxu0
        %v1598 = vadd.f32 0.0, %v1597
        %v1599 = vpop.f32.mrf.mxu0
        %v1600 = vadd.f32 0.0, %v1599
        %1601 = vmatprep.mubr.f32.mxu0 0.0
        %1602 = vmatmul.mubr.f32.gmra.mxu0 %v1338
        %v1603 = vpop.f32.mrf.mxu0
        %v1604 = vadd.f32 0.0, %v1603
        %v1605 = vpop.f32.mrf.mxu0
        %v1606 = vadd.f32 0.0, %v1605
        %1607 = vmatprep.mubr.f32.mxu0 0.0
        %1608 = vmatmul.mubr.f32.gmra.mxu0 %v1339
        %v1609 = vpop.f32.mrf.mxu0
        %v1610 = vadd.f32 0.0, %v1609
        %v1611 = vpop.f32.mrf.mxu0
        %v1612 = vadd.f32 0.0, %v1611
        %1613 = vmatprep.mubr.f32.mxu0 0.0
        %1614 = vmatmul.mubr.f32.gmra.mxu0 %v1340
        %v1615 = vpop.f32.mrf.mxu0
        %v1616 = vadd.f32 0.0, %v1615
        %v1617 = vpop.f32.mrf.mxu0
        %v1618 = vadd.f32 0.0, %v1617
        %1619 = vmatprep.mubr.f32.mxu0 0.0
        %1620 = vmatmul.mubr.f32.gmra.mxu0 %v1341
        %v1621 = vpop.f32.mrf.mxu0
        %v1622 = vadd.f32 0.0, %v1621
        %v1623 = vpop.f32.mrf.mxu0
        %v1624 = vadd.f32 0.0, %v1623
        %1625 = vmatprep.mubr.f32.mxu0 0.0
        %1626 = vmatmul.mubr.f32.gmra.mxu0 %v1342
        %v1627 = vpop.f32.mrf.mxu0
        %v1628 = vadd.f32 0.0, %v1627
        %v1629 = vpop.f32.mrf.mxu0
        %v1630 = vadd.f32 0.0, %v1629
        %1631 = vmatprep.mubr.f32.mxu0 0.0
        %1632 = vmatmul.mubr.f32.gmra.mxu0 %v1343
        %v1633 = vpop.f32.mrf.mxu0
        %v1634 = vadd.f32 0.0, %v1633
        %v1635 = vpop.f32.mrf.mxu0
        %v1636 = vadd.f32 0.0, %v1635
        %1637 = vmatprep.mubr.f32.mxu0 0.0
        %1638 = vmatmul.mubr.f32.gmra.mxu0 %v1344
        %v1639 = vpop.f32.mrf.mxu0
        %v1640 = vadd.f32 0.0, %v1639
        %v1641 = vpop.f32.mrf.mxu0
        %v1642 = vadd.f32 0.0, %v1641
        %1643 = vmatprep.mubr.f32.mxu0 0.0
        %1644 = vmatmul.mubr.f32.gmra.mxu0 %v1345
        %v1645 = vpop.f32.mrf.mxu0
        %v1646 = vadd.f32 0.0, %v1645
        %v1647 = vpop.f32.mrf.mxu0
        %v1648 = vadd.f32 0.0, %v1647
        %1649 = vmatprep.mubr.f32.mxu0 0.0
        %1650 = vmatmul.mubr.f32.gmra.mxu0 %v1346
        %v1651 = vpop.f32.mrf.mxu0
        %v1652 = vadd.f32 0.0, %v1651
        %v1653 = vpop.f32.mrf.mxu0
        %v1654 = vadd.f32 0.0, %v1653
        %1655 = vmatprep.mubr.f32.mxu0 0.0
        %1656 = vmatmul.mubr.f32.gmra.mxu0 %v1347
        %v1657 = vpop.f32.mrf.mxu0
        %v1658 = vadd.f32 0.0, %v1657
        %v1659 = vpop.f32.mrf.mxu0
        %v1660 = vadd.f32 0.0, %v1659
        %1661 = vmatprep.mubr.f32.mxu0 0.0
        %1662 = vmatmul.mubr.f32.gmra.mxu0 %v1348
        %v1663 = vpop.f32.mrf.mxu0
        %v1664 = vadd.f32 0.0, %v1663
        %v1665 = vpop.f32.mrf.mxu0
        %v1666 = vadd.f32 0.0, %v1665
        %1667 = vmatprep.mubr.f32.mxu0 0.0
        %1668 = vmatmul.mubr.f32.gmra.mxu0 %v1349
        %v1669 = vpop.f32.mrf.mxu0
        %v1670 = vadd.f32 0.0, %v1669
        %v1671 = vpop.f32.mrf.mxu0
        %v1672 = vadd.f32 0.0, %v1671
        %1673 = vmatprep.mubr.f32.mxu0 0.0
        %1674 = vmatmul.mubr.f32.gmra.mxu0 %v1350
        %v1675 = vpop.f32.mrf.mxu0
        %v1676 = vadd.f32 0.0, %v1675
        %v1677 = vpop.f32.mrf.mxu0
        %v1678 = vadd.f32 0.0, %v1677
        %1679 = vmatprep.mubr.f32.mxu0 0.0
        %1680 = vmatmul.mubr.f32.gmra.mxu0 %v1351
        %v1681 = vpop.f32.mrf.mxu0
        %v1682 = vadd.f32 0.0, %v1681
        %v1683 = vpop.f32.mrf.mxu0
        %v1684 = vadd.f32 0.0, %v1683
        %1685 = vmatprep.mubr.f32.mxu0 0.0
        %1686 = vmatmul.mubr.f32.gmra.mxu0 %v1352
        %v1687 = vpop.f32.mrf.mxu0
        %v1688 = vadd.f32 0.0, %v1687
        %v1689 = vpop.f32.mrf.mxu0
        %v1690 = vadd.f32 0.0, %v1689
        %1691 = vmatprep.mubr.f32.mxu0 0.0
        %1692 = vmatmul.mubr.f32.gmra.mxu0 %v1353
        %v1693 = vpop.f32.mrf.mxu0
        %v1694 = vadd.f32 0.0, %v1693
        %v1695 = vpop.f32.mrf.mxu0
        %v1696 = vadd.f32 0.0, %v1695
        %1697 = vmatprep.mubr.f32.mxu0 0.0
        %1698 = vmatmul.mubr.f32.gmra.mxu0 %v1354
        %v1699 = vpop.f32.mrf.mxu0
        %v1700 = vadd.f32 0.0, %v1699
        %v1701 = vpop.f32.mrf.mxu0
        %v1702 = vadd.f32 0.0, %v1701
        %1703 = vmatprep.mubr.f32.mxu0 0.0
        %1704 = vmatmul.mubr.f32.gmra.mxu0 %v1355
        %v1705 = vpop.f32.mrf.mxu0
        %v1706 = vadd.f32 0.0, %v1705
        %v1707 = vpop.f32.mrf.mxu0
        %v1708 = vadd.f32 0.0, %v1707
        %1709 = vdwg.mxu0
        %v1710 = vmax.f32 %v1520, %v1522
        %1711 = vmax.xlane.f32.xlu0 %v1710
        %v1712 = vpop.xlane.xlu0 %1711
        %v1713 = vmax.f32 %v1526, %v1528
        %1714 = vmax.xlane.f32.xlu0 %v1713
        %v1715 = vpop.xlane.xlu0 %1714
        %v1716 = vmax.f32 %v1532, %v1534
        %1717 = vmax.xlane.f32.xlu0 %v1716
        %v1718 = vpop.xlane.xlu0 %1717
        %v1719 = vmax.f32 %v1538, %v1540
        %1720 = vmax.xlane.f32.xlu0 %v1719
        %v1721 = vpop.xlane.xlu0 %1720
        %v1722 = vmax.f32 %v1544, %v1546
        %1723 = vmax.xlane.f32.xlu0 %v1722
        %v1724 = vpop.xlane.xlu0 %1723
        %v1725 = vmax.f32 %v1550, %v1552
        %1726 = vmax.xlane.f32.xlu0 %v1725
        %v1727 = vpop.xlane.xlu0 %1726
        %v1728 = vmax.f32 %v1556, %v1558
        %1729 = vmax.xlane.f32.xlu0 %v1728
        %v1730 = vpop.xlane.xlu0 %1729
        %v1731 = vmax.f32 %v1562, %v1564
        %1732 = vmax.xlane.f32.xlu0 %v1731
        %v1733 = vpop.xlane.xlu0 %1732
        %v1734 = vmax.f32 %v1568, %v1570
        %1735 = vmax.xlane.f32.xlu0 %v1734
        %v1736 = vpop.xlane.xlu0 %1735
        %v1737 = vmax.f32 %v1574, %v1576
        %1738 = vmax.xlane.f32.xlu0 %v1737
        %v1739 = vpop.xlane.xlu0 %1738
        %v1740 = vmax.f32 %v1580, %v1582
        %1741 = vmax.xlane.f32.xlu0 %v1740
        %v1742 = vpop.xlane.xlu0 %1741
        %v1743 = vmax.f32 %v1586, %v1588
        %1744 = vmax.xlane.f32.xlu0 %v1743
        %v1745 = vpop.xlane.xlu0 %1744
        %v1746 = vmax.f32 %v1592, %v1594
        %1747 = vmax.xlane.f32.xlu0 %v1746
        %v1748 = vpop.xlane.xlu0 %1747
        %v1749 = vmax.f32 %v1598, %v1600
        %1750 = vmax.xlane.f32.xlu0 %v1749
        %v1751 = vpop.xlane.xlu0 %1750
        %v1752 = vmax.f32 %v1604, %v1606
        %1753 = vmax.xlane.f32.xlu0 %v1752
        %v1754 = vpop.xlane.xlu0 %1753
        %v1755 = vmax.f32 %v1610, %v1612
        %1756 = vmax.xlane.f32.xlu0 %v1755
        %v1757 = vpop.xlane.xlu0 %1756
        %v1758 = vmax.f32 %v1616, %v1618
        %1759 = vmax.xlane.f32.xlu0 %v1758
        %v1760 = vpop.xlane.xlu0 %1759
        %v1761 = vmax.f32 %v1622, %v1624
        %1762 = vmax.xlane.f32.xlu0 %v1761
        %v1763 = vpop.xlane.xlu0 %1762
        %v1764 = vmax.f32 %v1628, %v1630
        %1765 = vmax.xlane.f32.xlu0 %v1764
        %v1766 = vpop.xlane.xlu0 %1765
        %v1767 = vmax.f32 %v1634, %v1636
        %1768 = vmax.xlane.f32.xlu0 %v1767
        %v1769 = vpop.xlane.xlu0 %1768
        %v1770 = vmax.f32 %v1640, %v1642
        %1771 = vmax.xlane.f32.xlu0 %v1770
        %v1772 = vpop.xlane.xlu0 %1771
        %v1773 = vmax.f32 %v1646, %v1648
        %1774 = vmax.xlane.f32.xlu0 %v1773
        %v1775 = vpop.xlane.xlu0 %1774
        %v1776 = vmax.f32 %v1652, %v1654
        %1777 = vmax.xlane.f32.xlu0 %v1776
        %v1778 = vpop.xlane.xlu0 %1777
        %v1779 = vmax.f32 %v1658, %v1660
        %1780 = vmax.xlane.f32.xlu0 %v1779
        %v1781 = vpop.xlane.xlu0 %1780
        %v1782 = vmax.f32 %v1664, %v1666
        %1783 = vmax.xlane.f32.xlu0 %v1782
        %v1784 = vpop.xlane.xlu0 %1783
        %v1785 = vmax.f32 %v1670, %v1672
        %1786 = vmax.xlane.f32.xlu0 %v1785
        %v1787 = vpop.xlane.xlu0 %1786
        %v1788 = vmax.f32 %v1676, %v1678
        %1789 = vmax.xlane.f32.xlu0 %v1788
        %v1790 = vpop.xlane.xlu0 %1789
        %v1791 = vmax.f32 %v1682, %v1684
        %1792 = vmax.xlane.f32.xlu0 %v1791
        %v1793 = vpop.xlane.xlu0 %1792
        %v1794 = vmax.f32 %v1688, %v1690
        %1795 = vmax.xlane.f32.xlu0 %v1794
        %v1796 = vpop.xlane.xlu0 %1795
        %v1797 = vmax.f32 %v1694, %v1696
        %1798 = vmax.xlane.f32.xlu0 %v1797
        %v1799 = vpop.xlane.xlu0 %1798
        %v1800 = vmax.f32 %v1700, %v1702
        %1801 = vmax.xlane.f32.xlu0 %v1800
        %v1802 = vpop.xlane.xlu0 %1801
        %v1803 = vmax.f32 %v1706, %v1708
        %1804 = vmax.xlane.f32.xlu0 %v1803
        %v1805 = vpop.xlane.xlu0 %1804
        %v1806 = vsub.f32 -inf, %v1712
        %v1807 = vsub.f32 -inf, %v1715
        %v1808 = vsub.f32 -inf, %v1718
        %v1809 = vsub.f32 -inf, %v1721
        %v1810 = vsub.f32 -inf, %v1724
        %v1811 = vsub.f32 -inf, %v1727
        %v1812 = vsub.f32 -inf, %v1730
        %v1813 = vsub.f32 -inf, %v1733
        %v1814 = vsub.f32 -inf, %v1736
        %v1815 = vsub.f32 -inf, %v1739
        %v1816 = vsub.f32 -inf, %v1742
        %v1817 = vsub.f32 -inf, %v1745
        %v1818 = vsub.f32 -inf, %v1748
        %v1819 = vsub.f32 -inf, %v1751
        %v1820 = vsub.f32 -inf, %v1754
        %v1821 = vsub.f32 -inf, %v1757
        %v1822 = vsub.f32 -inf, %v1760
        %v1823 = vsub.f32 -inf, %v1763
        %v1824 = vsub.f32 -inf, %v1766
        %v1825 = vsub.f32 -inf, %v1769
        %v1826 = vsub.f32 -inf, %v1772
        %v1827 = vsub.f32 -inf, %v1775
        %v1828 = vsub.f32 -inf, %v1778
        %v1829 = vsub.f32 -inf, %v1781
        %v1830 = vsub.f32 -inf, %v1784
        %v1831 = vsub.f32 -inf, %v1787
        %v1832 = vsub.f32 -inf, %v1790
        %v1833 = vsub.f32 -inf, %v1793
        %v1834 = vsub.f32 -inf, %v1796
        %v1835 = vsub.f32 -inf, %v1799
        %v1836 = vsub.f32 -inf, %v1802
        %v1837 = vsub.f32 -inf, %v1805
        %v1838 = vmul.f32 %v1806, 1.442695
        %v1839 = vpow.pop %v1838
        %v1840 = vmul.f32 %v1807, 1.442695
        %v1841 = vpow.pop %v1840
        %v1842 = vmul.f32 %v1808, 1.442695
        %v1843 = vpow.pop %v1842
        %v1844 = vmul.f32 %v1809, 1.442695
        %v1845 = vpow.pop %v1844
        %v1846 = vmul.f32 %v1810, 1.442695
        %v1847 = vpow.pop %v1846
        %v1848 = vmul.f32 %v1811, 1.442695
        %v1849 = vpow.pop %v1848
        %v1850 = vmul.f32 %v1812, 1.442695
        %v1851 = vpow.pop %v1850
        %v1852 = vmul.f32 %v1813, 1.442695
        %v1853 = vpow.pop %v1852
        %v1854 = vmul.f32 %v1814, 1.442695
        %v1855 = vpow.pop %v1854
        %v1856 = vmul.f32 %v1815, 1.442695
        %v1857 = vpow.pop %v1856
        %v1858 = vmul.f32 %v1816, 1.442695
        %v1859 = vpow.pop %v1858
        %v1860 = vmul.f32 %v1817, 1.442695
        %v1861 = vpow.pop %v1860
        %v1862 = vmul.f32 %v1818, 1.442695
        %v1863 = vpow.pop %v1862
        %v1864 = vmul.f32 %v1819, 1.442695
        %v1865 = vpow.pop %v1864
        %v1866 = vmul.f32 %v1820, 1.442695
        %v1867 = vpow.pop %v1866
        %v1868 = vmul.f32 %v1821, 1.442695
        %v1869 = vpow.pop %v1868
        %v1870 = vmul.f32 %v1822, 1.442695
        %v1871 = vpow.pop %v1870
        %v1872 = vmul.f32 %v1823, 1.442695
        %v1873 = vpow.pop %v1872
        %v1874 = vmul.f32 %v1824, 1.442695
        %v1875 = vpow.pop %v1874
        %v1876 = vmul.f32 %v1825, 1.442695
        %v1877 = vpow.pop %v1876
        %v1878 = vmul.f32 %v1826, 1.442695
        %v1879 = vpow.pop %v1878
        %v1880 = vmul.f32 %v1827, 1.442695
        %v1881 = vpow.pop %v1880
        %v1882 = vmul.f32 %v1828, 1.442695
        %v1883 = vpow.pop %v1882
        %v1884 = vmul.f32 %v1829, 1.442695
        %v1885 = vpow.pop %v1884
        %v1886 = vmul.f32 %v1830, 1.442695
        %v1887 = vpow.pop %v1886
        %v1888 = vmul.f32 %v1831, 1.442695
        %v1889 = vpow.pop %v1888
        %v1890 = vmul.f32 %v1832, 1.442695
        %v1891 = vpow.pop %v1890
        %v1892 = vmul.f32 %v1833, 1.442695
        %v1893 = vpow.pop %v1892
        %v1894 = vmul.f32 %v1834, 1.442695
        %v1895 = vpow.pop %v1894
        %v1896 = vmul.f32 %v1835, 1.442695
        %v1897 = vpow.pop %v1896
        %v1898 = vmul.f32 %v1836, 1.442695
        %v1899 = vpow.pop %v1898
        %v1900 = vmul.f32 %v1837, 1.442695
        %v1901 = vpow.pop %v1900
        %v1902 = vsub.f32 %v1520, %v1712
        %v1903 = vsub.f32 %v1522, %v1712
        %v1904 = vsub.f32 %v1526, %v1715
        %v1905 = vsub.f32 %v1528, %v1715
        %v1906 = vsub.f32 %v1532, %v1718
        %v1907 = vsub.f32 %v1534, %v1718
        %v1908 = vsub.f32 %v1538, %v1721
        %v1909 = vsub.f32 %v1540, %v1721
        %v1910 = vsub.f32 %v1544, %v1724
        %v1911 = vsub.f32 %v1546, %v1724
        %v1912 = vsub.f32 %v1550, %v1727
        %v1913 = vsub.f32 %v1552, %v1727
        %v1914 = vsub.f32 %v1556, %v1730
        %v1915 = vsub.f32 %v1558, %v1730
        %v1916 = vsub.f32 %v1562, %v1733
        %v1917 = vsub.f32 %v1564, %v1733
        %v1918 = vsub.f32 %v1568, %v1736
        %v1919 = vsub.f32 %v1570, %v1736
        %v1920 = vsub.f32 %v1574, %v1739
        %v1921 = vsub.f32 %v1576, %v1739
        %v1922 = vsub.f32 %v1580, %v1742
        %v1923 = vsub.f32 %v1582, %v1742
        %v1924 = vsub.f32 %v1586, %v1745
        %v1925 = vsub.f32 %v1588, %v1745
        %v1926 = vsub.f32 %v1592, %v1748
        %v1927 = vsub.f32 %v1594, %v1748
        %v1928 = vsub.f32 %v1598, %v1751
        %v1929 = vsub.f32 %v1600, %v1751
        %v1930 = vsub.f32 %v1604, %v1754
        %v1931 = vsub.f32 %v1606, %v1754
        %v1932 = vsub.f32 %v1610, %v1757
        %v1933 = vsub.f32 %v1612, %v1757
        %v1934 = vsub.f32 %v1616, %v1760
        %v1935 = vsub.f32 %v1618, %v1760
        %v1936 = vsub.f32 %v1622, %v1763
        %v1937 = vsub.f32 %v1624, %v1763
        %v1938 = vsub.f32 %v1628, %v1766
        %v1939 = vsub.f32 %v1630, %v1766
        %v1940 = vsub.f32 %v1634, %v1769
        %v1941 = vsub.f32 %v1636, %v1769
        %v1942 = vsub.f32 %v1640, %v1772
        %v1943 = vsub.f32 %v1642, %v1772
        %v1944 = vsub.f32 %v1646, %v1775
        %v1945 = vsub.f32 %v1648, %v1775
        %v1946 = vsub.f32 %v1652, %v1778
        %v1947 = vsub.f32 %v1654, %v1778
        %v1948 = vsub.f32 %v1658, %v1781
        %v1949 = vsub.f32 %v1660, %v1781
        %v1950 = vsub.f32 %v1664, %v1784
        %v1951 = vsub.f32 %v1666, %v1784
        %v1952 = vsub.f32 %v1670, %v1787
        %v1953 = vsub.f32 %v1672, %v1787
        %v1954 = vsub.f32 %v1676, %v1790
        %v1955 = vsub.f32 %v1678, %v1790
        %v1956 = vsub.f32 %v1682, %v1793
        %v1957 = vsub.f32 %v1684, %v1793
        %v1958 = vsub.f32 %v1688, %v1796
        %v1959 = vsub.f32 %v1690, %v1796
        %v1960 = vsub.f32 %v1694, %v1799
        %v1961 = vsub.f32 %v1696, %v1799
        %v1962 = vsub.f32 %v1700, %v1802
        %v1963 = vsub.f32 %v1702, %v1802
        %v1964 = vsub.f32 %v1706, %v1805
        %v1965 = vsub.f32 %v1708, %v1805
        %v1966 = vmul.f32 %v1902, 1.442695
        %v1967 = vpow.pop %v1966
        %v1968 = vmul.f32 %v1903, 1.442695
        %v1969 = vpow.pop %v1968
        %v1970 = vmul.f32 %v1904, 1.442695
        %v1971 = vpow.pop %v1970
        %v1972 = vmul.f32 %v1905, 1.442695
        %v1973 = vpow.pop %v1972
        %v1974 = vmul.f32 %v1906, 1.442695
        %v1975 = vpow.pop %v1974
        %v1976 = vmul.f32 %v1907, 1.442695
        %v1977 = vpow.pop %v1976
        %v1978 = vmul.f32 %v1908, 1.442695
        %v1979 = vpow.pop %v1978
        %v1980 = vmul.f32 %v1909, 1.442695
        %v1981 = vpow.pop %v1980
        %v1982 = vmul.f32 %v1910, 1.442695
        %v1983 = vpow.pop %v1982
        %v1984 = vmul.f32 %v1911, 1.442695
        %v1985 = vpow.pop %v1984
        %v1986 = vmul.f32 %v1912, 1.442695
        %v1987 = vpow.pop %v1986
        %v1988 = vmul.f32 %v1913, 1.442695
        %v1989 = vpow.pop %v1988
        %v1990 = vmul.f32 %v1914, 1.442695
        %v1991 = vpow.pop %v1990
        %v1992 = vmul.f32 %v1915, 1.442695
        %v1993 = vpow.pop %v1992
        %v1994 = vmul.f32 %v1916, 1.442695
        %v1995 = vpow.pop %v1994
        %v1996 = vmul.f32 %v1917, 1.442695
        %v1997 = vpow.pop %v1996
        %v1998 = vmul.f32 %v1918, 1.442695
        %v1999 = vpow.pop %v1998
        %v2000 = vmul.f32 %v1919, 1.442695
        %v2001 = vpow.pop %v2000
        %v2002 = vmul.f32 %v1920, 1.442695
        %v2003 = vpow.pop %v2002
        %v2004 = vmul.f32 %v1921, 1.442695
        %v2005 = vpow.pop %v2004
        %v2006 = vmul.f32 %v1922, 1.442695
        %v2007 = vpow.pop %v2006
        %v2008 = vmul.f32 %v1923, 1.442695
        %v2009 = vpow.pop %v2008
        %v2010 = vmul.f32 %v1924, 1.442695
        %v2011 = vpow.pop %v2010
        %v2012 = vmul.f32 %v1925, 1.442695
        %v2013 = vpow.pop %v2012
        %v2014 = vmul.f32 %v1926, 1.442695
        %v2015 = vpow.pop %v2014
        %v2016 = vmul.f32 %v1927, 1.442695
        %v2017 = vpow.pop %v2016
        %v2018 = vmul.f32 %v1928, 1.442695
        %v2019 = vpow.pop %v2018
        %v2020 = vmul.f32 %v1929, 1.442695
        %v2021 = vpow.pop %v2020
        %v2022 = vmul.f32 %v1930, 1.442695
        %v2023 = vpow.pop %v2022
        %v2024 = vmul.f32 %v1931, 1.442695
        %v2025 = vpow.pop %v2024
        %v2026 = vmul.f32 %v1932, 1.442695
        %v2027 = vpow.pop %v2026
        %v2028 = vmul.f32 %v1933, 1.442695
        %v2029 = vpow.pop %v2028
        %v2030 = vmul.f32 %v1934, 1.442695
        %v2031 = vpow.pop %v2030
        %v2032 = vmul.f32 %v1935, 1.442695
        %v2033 = vpow.pop %v2032
        %v2034 = vmul.f32 %v1936, 1.442695
        %v2035 = vpow.pop %v2034
        %v2036 = vmul.f32 %v1937, 1.442695
        %v2037 = vpow.pop %v2036
        %v2038 = vmul.f32 %v1938, 1.442695
        %v2039 = vpow.pop %v2038
        %v2040 = vmul.f32 %v1939, 1.442695
        %v2041 = vpow.pop %v2040
        %v2042 = vmul.f32 %v1940, 1.442695
        %v2043 = vpow.pop %v2042
        %v2044 = vmul.f32 %v1941, 1.442695
        %v2045 = vpow.pop %v2044
        %v2046 = vmul.f32 %v1942, 1.442695
        %v2047 = vpow.pop %v2046
        %v2048 = vmul.f32 %v1943, 1.442695
        %v2049 = vpow.pop %v2048
        %v2050 = vmul.f32 %v1944, 1.442695
        %v2051 = vpow.pop %v2050
        %v2052 = vmul.f32 %v1945, 1.442695
        %v2053 = vpow.pop %v2052
        %v2054 = vmul.f32 %v1946, 1.442695
        %v2055 = vpow.pop %v2054
        %v2056 = vmul.f32 %v1947, 1.442695
        %v2057 = vpow.pop %v2056
        %v2058 = vmul.f32 %v1948, 1.442695
        %v2059 = vpow.pop %v2058
        %v2060 = vmul.f32 %v1949, 1.442695
        %v2061 = vpow.pop %v2060
        %v2062 = vmul.f32 %v1950, 1.442695
        %v2063 = vpow.pop %v2062
        %v2064 = vmul.f32 %v1951, 1.442695
        %v2065 = vpow.pop %v2064
        %v2066 = vmul.f32 %v1952, 1.442695
        %v2067 = vpow.pop %v2066
        %v2068 = vmul.f32 %v1953, 1.442695
        %v2069 = vpow.pop %v2068
        %v2070 = vmul.f32 %v1954, 1.442695
        %v2071 = vpow.pop %v2070
        %v2072 = vmul.f32 %v1955, 1.442695
        %v2073 = vpow.pop %v2072
        %v2074 = vmul.f32 %v1956, 1.442695
        %v2075 = vpow.pop %v2074
        %v2076 = vmul.f32 %v1957, 1.442695
        %v2077 = vpow.pop %v2076
        %v2078 = vmul.f32 %v1958, 1.442695
        %v2079 = vpow.pop %v2078
        %v2080 = vmul.f32 %v1959, 1.442695
        %v2081 = vpow.pop %v2080
        %v2082 = vmul.f32 %v1960, 1.442695
        %v2083 = vpow.pop %v2082
        %v2084 = vmul.f32 %v1961, 1.442695
        %v2085 = vpow.pop %v2084
        %v2086 = vmul.f32 %v1962, 1.442695
        %v2087 = vpow.pop %v2086
        %v2088 = vmul.f32 %v1963, 1.442695
        %v2089 = vpow.pop %v2088
        %v2090 = vmul.f32 %v1964, 1.442695
        %v2091 = vpow.pop %v2090
        %v2092 = vmul.f32 %v1965, 1.442695
        %v2093 = vpow.pop %v2092
        %v2094 = vmul.f32 %v1839, 0.0
        %v2095 = vmul.f32 %v1841, 0.0
        %v2096 = vmul.f32 %v1843, 0.0
        %v2097 = vmul.f32 %v1845, 0.0
        %v2098 = vmul.f32 %v1847, 0.0
        %v2099 = vmul.f32 %v1849, 0.0
        %v2100 = vmul.f32 %v1851, 0.0
        %v2101 = vmul.f32 %v1853, 0.0
        %v2102 = vmul.f32 %v1855, 0.0
        %v2103 = vmul.f32 %v1857, 0.0
        %v2104 = vmul.f32 %v1859, 0.0
        %v2105 = vmul.f32 %v1861, 0.0
        %v2106 = vmul.f32 %v1863, 0.0
        %v2107 = vmul.f32 %v1865, 0.0
        %v2108 = vmul.f32 %v1867, 0.0
        %v2109 = vmul.f32 %v1869, 0.0
        %v2110 = vmul.f32 %v1871, 0.0
        %v2111 = vmul.f32 %v1873, 0.0
        %v2112 = vmul.f32 %v1875, 0.0
        %v2113 = vmul.f32 %v1877, 0.0
        %v2114 = vmul.f32 %v1879, 0.0
        %v2115 = vmul.f32 %v1881, 0.0
        %v2116 = vmul.f32 %v1883, 0.0
        %v2117 = vmul.f32 %v1885, 0.0
        %v2118 = vmul.f32 %v1887, 0.0
        %v2119 = vmul.f32 %v1889, 0.0
        %v2120 = vmul.f32 %v1891, 0.0
        %v2121 = vmul.f32 %v1893, 0.0
        %v2122 = vmul.f32 %v1895, 0.0
        %v2123 = vmul.f32 %v1897, 0.0
        %v2124 = vmul.f32 %v1899, 0.0
        %v2125 = vmul.f32 %v1901, 0.0
        %v2126 = vadd.f32 %v1967, %v1969
        %2127 = vadd.xlane.f32.xlu0 %v2126
        %v2128 = vpop.xlane.xlu0 %2127
        %v2129 = vadd.f32 %v1971, %v1973
        %2130 = vadd.xlane.f32.xlu0 %v2129
        %v2131 = vpop.xlane.xlu0 %2130
        %v2132 = vadd.f32 %v1975, %v1977
        %2133 = vadd.xlane.f32.xlu0 %v2132
        %v2134 = vpop.xlane.xlu0 %2133
        %v2135 = vadd.f32 %v1979, %v1981
        %2136 = vadd.xlane.f32.xlu0 %v2135
        %v2137 = vpop.xlane.xlu0 %2136
        %v2138 = vadd.f32 %v1983, %v1985
        %2139 = vadd.xlane.f32.xlu0 %v2138
        %v2140 = vpop.xlane.xlu0 %2139
        %v2141 = vadd.f32 %v1987, %v1989
        %2142 = vadd.xlane.f32.xlu0 %v2141
        %v2143 = vpop.xlane.xlu0 %2142
        %v2144 = vadd.f32 %v1991, %v1993
        %2145 = vadd.xlane.f32.xlu0 %v2144
        %v2146 = vpop.xlane.xlu0 %2145
        %v2147 = vadd.f32 %v1995, %v1997
        %2148 = vadd.xlane.f32.xlu0 %v2147
        %v2149 = vpop.xlane.xlu0 %2148
        %v2150 = vadd.f32 %v1999, %v2001
        %2151 = vadd.xlane.f32.xlu0 %v2150
        %v2152 = vpop.xlane.xlu0 %2151
        %v2153 = vadd.f32 %v2003, %v2005
        %2154 = vadd.xlane.f32.xlu0 %v2153
        %v2155 = vpop.xlane.xlu0 %2154
        %v2156 = vadd.f32 %v2007, %v2009
        %2157 = vadd.xlane.f32.xlu0 %v2156
        %v2158 = vpop.xlane.xlu0 %2157
        %v2159 = vadd.f32 %v2011, %v2013
        %2160 = vadd.xlane.f32.xlu0 %v2159
        %v2161 = vpop.xlane.xlu0 %2160
        %v2162 = vadd.f32 %v2015, %v2017
        %2163 = vadd.xlane.f32.xlu0 %v2162
        %v2164 = vpop.xlane.xlu0 %2163
        %v2165 = vadd.f32 %v2019, %v2021
        %2166 = vadd.xlane.f32.xlu0 %v2165
        %v2167 = vpop.xlane.xlu0 %2166
        %v2168 = vadd.f32 %v2023, %v2025
        %2169 = vadd.xlane.f32.xlu0 %v2168
        %v2170 = vpop.xlane.xlu0 %2169
        %v2171 = vadd.f32 %v2027, %v2029
        %2172 = vadd.xlane.f32.xlu0 %v2171
        %v2173 = vpop.xlane.xlu0 %2172
        %v2174 = vadd.f32 %v2031, %v2033
        %2175 = vadd.xlane.f32.xlu0 %v2174
        %v2176 = vpop.xlane.xlu0 %2175
        %v2177 = vadd.f32 %v2035, %v2037
        %2178 = vadd.xlane.f32.xlu0 %v2177
        %v2179 = vpop.xlane.xlu0 %2178
        %v2180 = vadd.f32 %v2039, %v2041
        %2181 = vadd.xlane.f32.xlu0 %v2180
        %v2182 = vpop.xlane.xlu0 %2181
        %v2183 = vadd.f32 %v2043, %v2045
        %2184 = vadd.xlane.f32.xlu0 %v2183
        %v2185 = vpop.xlane.xlu0 %2184
        %v2186 = vadd.f32 %v2047, %v2049
        %2187 = vadd.xlane.f32.xlu0 %v2186
        %v2188 = vpop.xlane.xlu0 %2187
        %v2189 = vadd.f32 %v2051, %v2053
        %2190 = vadd.xlane.f32.xlu0 %v2189
        %v2191 = vpop.xlane.xlu0 %2190
        %v2192 = vadd.f32 %v2055, %v2057
        %2193 = vadd.xlane.f32.xlu0 %v2192
        %v2194 = vpop.xlane.xlu0 %2193
        %v2195 = vadd.f32 %v2059, %v2061
        %2196 = vadd.xlane.f32.xlu0 %v2195
        %v2197 = vpop.xlane.xlu0 %2196
        %v2198 = vadd.f32 %v2063, %v2065
        %2199 = vadd.xlane.f32.xlu0 %v2198
        %v2200 = vpop.xlane.xlu0 %2199
        %v2201 = vadd.f32 %v2067, %v2069
        %2202 = vadd.xlane.f32.xlu0 %v2201
        %v2203 = vpop.xlane.xlu0 %2202
        %v2204 = vadd.f32 %v2071, %v2073
        %2205 = vadd.xlane.f32.xlu0 %v2204
        %v2206 = vpop.xlane.xlu0 %2205
        %v2207 = vadd.f32 %v2075, %v2077
        %2208 = vadd.xlane.f32.xlu0 %v2207
        %v2209 = vpop.xlane.xlu0 %2208
        %v2210 = vadd.f32 %v2079, %v2081
        %2211 = vadd.xlane.f32.xlu0 %v2210
        %v2212 = vpop.xlane.xlu0 %2211
        %v2213 = vadd.f32 %v2083, %v2085
        %2214 = vadd.xlane.f32.xlu0 %v2213
        %v2215 = vpop.xlane.xlu0 %2214
        %v2216 = vadd.f32 %v2087, %v2089
        %2217 = vadd.xlane.f32.xlu0 %v2216
        %v2218 = vpop.xlane.xlu0 %2217
        %v2219 = vadd.f32 %v2091, %v2093
        %2220 = vadd.xlane.f32.xlu0 %v2219
        %v2221 = vpop.xlane.xlu0 %2220
        %v2222 = vadd.f32 %v2094, %v2128
        %v2223 = vadd.f32 %v2095, %v2131
        %v2224 = vadd.f32 %v2096, %v2134
        %v2225 = vadd.f32 %v2097, %v2137
        %v2226 = vadd.f32 %v2098, %v2140
        %v2227 = vadd.f32 %v2099, %v2143
        %v2228 = vadd.f32 %v2100, %v2146
        %v2229 = vadd.f32 %v2101, %v2149
        %v2230 = vadd.f32 %v2102, %v2152
        %v2231 = vadd.f32 %v2103, %v2155
        %v2232 = vadd.f32 %v2104, %v2158
        %v2233 = vadd.f32 %v2105, %v2161
        %v2234 = vadd.f32 %v2106, %v2164
        %v2235 = vadd.f32 %v2107, %v2167
        %v2236 = vadd.f32 %v2108, %v2170
        %v2237 = vadd.f32 %v2109, %v2173
        %v2238 = vadd.f32 %v2110, %v2176
        %v2239 = vadd.f32 %v2111, %v2179
        %v2240 = vadd.f32 %v2112, %v2182
        %v2241 = vadd.f32 %v2113, %v2185
        %v2242 = vadd.f32 %v2114, %v2188
        %v2243 = vadd.f32 %v2115, %v2191
        %v2244 = vadd.f32 %v2116, %v2194
        %v2245 = vadd.f32 %v2117, %v2197
        %v2246 = vadd.f32 %v2118, %v2200
        %v2247 = vadd.f32 %v2119, %v2203
        %v2248 = vadd.f32 %v2120, %v2206
        %v2249 = vadd.f32 %v2121, %v2209
        %v2250 = vadd.f32 %v2122, %v2212
        %v2251 = vadd.f32 %v2123, %v2215
        %v2252 = vadd.f32 %v2124, %v2218
        %v2253 = vadd.f32 %v2125, %v2221
        %2254 = vmatprep.subr.mxu0 0.0
        %2255 = vmatpush1.msra.mxu0 %v1436
        %2256 = vmatprep.subr.mxu0 0.0
        %2257 = vmatpush1.msra.mxu0 %v1435
        %2258 = vmatprep.subr.mxu0 0.0
        %2259 = vmatpush1.msra.mxu0 %v1434
        %2260 = vmatprep.subr.mxu0 0.0
        %2261 = vmatpush1.msra.mxu0 %v1433
        %2262 = vmatprep.subr.mxu0 0.0
        %2263 = vmatpush1.msra.mxu0 %v1432
        %2264 = vmatprep.subr.mxu0 0.0
        %2265 = vmatpush1.msra.mxu0 %v1431
        %2266 = vmatprep.subr.mxu0 0.0
        %2267 = vmatpush1.msra.mxu0 %v1430
        %2268 = vmatprep.subr.mxu0 0.0
        %2269 = vmatpush1.msra.mxu0 %v1429
        %2270 = vmatprep.subr.mxu0 0.0
        %2271 = vmatpush1.msra.mxu0 %v1428
        %2272 = vmatprep.subr.mxu0 0.0
        %2273 = vmatpush1.msra.mxu0 %v1427
        %2274 = vmatprep.subr.mxu0 0.0
        %2275 = vmatpush1.msra.mxu0 %v1426
        %2276 = vmatprep.subr.mxu0 0.0
        %2277 = vmatpush1.msra.mxu0 %v1425
        %2278 = vmatprep.subr.mxu0 0.0
        %2279 = vmatpush1.msra.mxu0 %v1424
        %2280 = vmatprep.subr.mxu0 0.0
        %2281 = vmatpush1.msra.mxu0 %v1423
        %2282 = vmatprep.subr.mxu0 0.0
        %2283 = vmatpush1.msra.mxu0 %v1422
        %2284 = vmatprep.subr.mxu0 0.0
        %2285 = vmatpush1.msra.mxu0 %v1421
        %2286 = vmatprep.subr.mxu0 0.0
        %2287 = vmatpush2.msra.mxu0 %v1452
        %2288 = vmatprep.subr.mxu0 0.0
        %2289 = vmatpush2.msra.mxu0 %v1451
        %2290 = vmatprep.subr.mxu0 0.0
        %2291 = vmatpush2.msra.mxu0 %v1450
        %2292 = vmatprep.subr.mxu0 0.0
        %2293 = vmatpush2.msra.mxu0 %v1449
        %2294 = vmatprep.subr.mxu0 0.0
        %2295 = vmatpush2.msra.mxu0 %v1448
        %2296 = vmatprep.subr.mxu0 0.0
        %2297 = vmatpush2.msra.mxu0 %v1447
        %2298 = vmatprep.subr.mxu0 0.0
        %2299 = vmatpush2.msra.mxu0 %v1446
        %2300 = vmatprep.subr.mxu0 0.0
        %2301 = vmatpush2.msra.mxu0 %v1445
        %2302 = vmatprep.subr.mxu0 0.0
        %2303 = vmatpush2.msra.mxu0 %v1444
        %2304 = vmatprep.subr.mxu0 0.0
        %2305 = vmatpush2.msra.mxu0 %v1443
        %2306 = vmatprep.subr.mxu0 0.0
        %2307 = vmatpush2.msra.mxu0 %v1442
        %2308 = vmatprep.subr.mxu0 0.0
        %2309 = vmatpush2.msra.mxu0 %v1441
        %2310 = vmatprep.subr.mxu0 0.0
        %2311 = vmatpush2.msra.mxu0 %v1440
        %2312 = vmatprep.subr.mxu0 0.0
        %2313 = vmatpush2.msra.mxu0 %v1439
        %2314 = vmatprep.subr.mxu0 0.0
        %2315 = vmatpush2.msra.mxu0 %v1438
        %2316 = vmatprep.subr.mxu0 0.0
        %2317 = vmatpush2.msra.mxu0 %v1437
        %2318 = vmatprep.mubr.f32.mxu0 %v1969
        %2319 = vmatmul.mubr.f32.gmra.mxu0 %v1967
        %v2320 = vpop.f32.mrf.mxu0
        %v2321 = vadd.f32 0.0, %v2320
        %v2322 = vpop.f32.mrf.mxu0
        %2323 = vmatprep.mubr.f32.mxu0 %v1973
        %2324 = vmatmul.mubr.f32.gmra.mxu0 %v1971
        %v2325 = vpop.f32.mrf.mxu0
        %v2326 = vadd.f32 0.0, %v2325
        %v2327 = vpop.f32.mrf.mxu0
        %2328 = vmatprep.mubr.f32.mxu0 %v1977
        %2329 = vmatmul.mubr.f32.gmra.mxu0 %v1975
        %v2330 = vpop.f32.mrf.mxu0
        %v2331 = vadd.f32 0.0, %v2330
        %v2332 = vpop.f32.mrf.mxu0
        %2333 = vmatprep.mubr.f32.mxu0 %v1981
        %2334 = vmatmul.mubr.f32.gmra.mxu0 %v1979
        %v2335 = vpop.f32.mrf.mxu0
        %v2336 = vadd.f32 0.0, %v2335
        %v2337 = vpop.f32.mrf.mxu0
        %2338 = vmatprep.mubr.f32.mxu0 %v1985
        %2339 = vmatmul.mubr.f32.gmra.mxu0 %v1983
        %v2340 = vpop.f32.mrf.mxu0
        %v2341 = vadd.f32 0.0, %v2340
        %v2342 = vpop.f32.mrf.mxu0
        %2343 = vmatprep.mubr.f32.mxu0 %v1989
        %2344 = vmatmul.mubr.f32.gmra.mxu0 %v1987
        %v2345 = vpop.f32.mrf.mxu0
        %v2346 = vadd.f32 0.0, %v2345
        %v2347 = vpop.f32.mrf.mxu0
        %2348 = vmatprep.mubr.f32.mxu0 %v1993
        %2349 = vmatmul.mubr.f32.gmra.mxu0 %v1991
        %v2350 = vpop.f32.mrf.mxu0
        %v2351 = vadd.f32 0.0, %v2350
        %v2352 = vpop.f32.mrf.mxu0
        %2353 = vmatprep.mubr.f32.mxu0 %v1997
        %2354 = vmatmul.mubr.f32.gmra.mxu0 %v1995
        %v2355 = vpop.f32.mrf.mxu0
        %v2356 = vadd.f32 0.0, %v2355
        %v2357 = vpop.f32.mrf.mxu0
        %2358 = vmatprep.mubr.f32.mxu0 %v2001
        %2359 = vmatmul.mubr.f32.gmra.mxu0 %v1999
        %v2360 = vpop.f32.mrf.mxu0
        %v2361 = vadd.f32 0.0, %v2360
        %v2362 = vpop.f32.mrf.mxu0
        %2363 = vmatprep.mubr.f32.mxu0 %v2005
        %2364 = vmatmul.mubr.f32.gmra.mxu0 %v2003
        %v2365 = vpop.f32.mrf.mxu0
        %v2366 = vadd.f32 0.0, %v2365
        %v2367 = vpop.f32.mrf.mxu0
        %2368 = vmatprep.mubr.f32.mxu0 %v2009
        %2369 = vmatmul.mubr.f32.gmra.mxu0 %v2007
        %v2370 = vpop.f32.mrf.mxu0
        %v2371 = vadd.f32 0.0, %v2370
        %v2372 = vpop.f32.mrf.mxu0
        %2373 = vmatprep.mubr.f32.mxu0 %v2013
        %2374 = vmatmul.mubr.f32.gmra.mxu0 %v2011
        %v2375 = vpop.f32.mrf.mxu0
        %v2376 = vadd.f32 0.0, %v2375
        %v2377 = vpop.f32.mrf.mxu0
        %2378 = vmatprep.mubr.f32.mxu0 %v2017
        %2379 = vmatmul.mubr.f32.gmra.mxu0 %v2015
        %v2380 = vpop.f32.mrf.mxu0
        %v2381 = vadd.f32 0.0, %v2380
        %v2382 = vpop.f32.mrf.mxu0
        %2383 = vmatprep.mubr.f32.mxu0 %v2021
        %2384 = vmatmul.mubr.f32.gmra.mxu0 %v2019
        %v2385 = vpop.f32.mrf.mxu0
        %v2386 = vadd.f32 0.0, %v2385
        %v2387 = vpop.f32.mrf.mxu0
        %2388 = vmatprep.mubr.f32.mxu0 %v2025
        %2389 = vmatmul.mubr.f32.gmra.mxu0 %v2023
        %v2390 = vpop.f32.mrf.mxu0
        %v2391 = vadd.f32 0.0, %v2390
        %v2392 = vpop.f32.mrf.mxu0
        %2393 = vmatprep.mubr.f32.mxu0 %v2029
        %2394 = vmatmul.mubr.f32.gmra.mxu0 %v2027
        %v2395 = vpop.f32.mrf.mxu0
        %v2396 = vadd.f32 0.0, %v2395
        %v2397 = vpop.f32.mrf.mxu0
        %2398 = vmatprep.mubr.f32.mxu0 %v2033
        %2399 = vmatmul.mubr.f32.gmra.mxu0 %v2031
        %v2400 = vpop.f32.mrf.mxu0
        %v2401 = vadd.f32 0.0, %v2400
        %v2402 = vpop.f32.mrf.mxu0
        %2403 = vmatprep.mubr.f32.mxu0 %v2037
        %2404 = vmatmul.mubr.f32.gmra.mxu0 %v2035
        %v2405 = vpop.f32.mrf.mxu0
        %v2406 = vadd.f32 0.0, %v2405
        %v2407 = vpop.f32.mrf.mxu0
        %2408 = vmatprep.mubr.f32.mxu0 %v2041
        %2409 = vmatmul.mubr.f32.gmra.mxu0 %v2039
        %v2410 = vpop.f32.mrf.mxu0
        %v2411 = vadd.f32 0.0, %v2410
        %v2412 = vpop.f32.mrf.mxu0
        %2413 = vmatprep.mubr.f32.mxu0 %v2045
        %2414 = vmatmul.mubr.f32.gmra.mxu0 %v2043
        %v2415 = vpop.f32.mrf.mxu0
        %v2416 = vadd.f32 0.0, %v2415
        %v2417 = vpop.f32.mrf.mxu0
        %2418 = vmatprep.mubr.f32.mxu0 %v2049
        %2419 = vmatmul.mubr.f32.gmra.mxu0 %v2047
        %v2420 = vpop.f32.mrf.mxu0
        %v2421 = vadd.f32 0.0, %v2420
        %v2422 = vpop.f32.mrf.mxu0
        %2423 = vmatprep.mubr.f32.mxu0 %v2053
        %2424 = vmatmul.mubr.f32.gmra.mxu0 %v2051
        %v2425 = vpop.f32.mrf.mxu0
        %v2426 = vadd.f32 0.0, %v2425
        %v2427 = vpop.f32.mrf.mxu0
        %2428 = vmatprep.mubr.f32.mxu0 %v2057
        %2429 = vmatmul.mubr.f32.gmra.mxu0 %v2055
        %v2430 = vpop.f32.mrf.mxu0
        %v2431 = vadd.f32 0.0, %v2430
        %v2432 = vpop.f32.mrf.mxu0
        %2433 = vmatprep.mubr.f32.mxu0 %v2061
        %2434 = vmatmul.mubr.f32.gmra.mxu0 %v2059
        %v2435 = vpop.f32.mrf.mxu0
        %v2436 = vadd.f32 0.0, %v2435
        %v2437 = vpop.f32.mrf.mxu0
        %2438 = vmatprep.mubr.f32.mxu0 %v2065
        %2439 = vmatmul.mubr.f32.gmra.mxu0 %v2063
        %v2440 = vpop.f32.mrf.mxu0
        %v2441 = vadd.f32 0.0, %v2440
        %v2442 = vpop.f32.mrf.mxu0
        %2443 = vmatprep.mubr.f32.mxu0 %v2069
        %2444 = vmatmul.mubr.f32.gmra.mxu0 %v2067
        %v2445 = vpop.f32.mrf.mxu0
        %v2446 = vadd.f32 0.0, %v2445
        %v2447 = vpop.f32.mrf.mxu0
        %2448 = vmatprep.mubr.f32.mxu0 %v2073
        %2449 = vmatmul.mubr.f32.gmra.mxu0 %v2071
        %v2450 = vpop.f32.mrf.mxu0
        %v2451 = vadd.f32 0.0, %v2450
        %v2452 = vpop.f32.mrf.mxu0
        %2453 = vmatprep.mubr.f32.mxu0 %v2077
        %2454 = vmatmul.mubr.f32.gmra.mxu0 %v2075
        %v2455 = vpop.f32.mrf.mxu0
        %v2456 = vadd.f32 0.0, %v2455
        %v2457 = vpop.f32.mrf.mxu0
        %2458 = vmatprep.mubr.f32.mxu0 %v2081
        %2459 = vmatmul.mubr.f32.gmra.mxu0 %v2079
        %v2460 = vpop.f32.mrf.mxu0
        %v2461 = vadd.f32 0.0, %v2460
        %v2462 = vpop.f32.mrf.mxu0
        %2463 = vmatprep.mubr.f32.mxu0 %v2085
        %2464 = vmatmul.mubr.f32.gmra.mxu0 %v2083
        %v2465 = vpop.f32.mrf.mxu0
        %v2466 = vadd.f32 0.0, %v2465
        %v2467 = vpop.f32.mrf.mxu0
        %2468 = vmatprep.mubr.f32.mxu0 %v2089
        %2469 = vmatmul.mubr.f32.gmra.mxu0 %v2087
        %v2470 = vpop.f32.mrf.mxu0
        %v2471 = vadd.f32 0.0, %v2470
        %v2472 = vpop.f32.mrf.mxu0
        %2473 = vmatprep.mubr.f32.mxu0 %v2093
        %2474 = vmatmul.mubr.f32.gmra.mxu0 %v2091
        %v2475 = vpop.f32.mrf.mxu0
        %v2476 = vadd.f32 0.0, %v2475
        %v2477 = vpop.f32.mrf.mxu0
        %2478 = vdwg.mxu0
        %v2479 = vadd.f32 %v2094, %v2321
        %v2480 = vadd.f32 %v2095, %v2326
        %v2481 = vadd.f32 %v2096, %v2331
        %v2482 = vadd.f32 %v2097, %v2336
        %v2483 = vadd.f32 %v2098, %v2341
        %v2484 = vadd.f32 %v2099, %v2346
        %v2485 = vadd.f32 %v2100, %v2351
        %v2486 = vadd.f32 %v2101, %v2356
        %v2487 = vadd.f32 %v2102, %v2361
        %v2488 = vadd.f32 %v2103, %v2366
        %v2489 = vadd.f32 %v2104, %v2371
        %v2490 = vadd.f32 %v2105, %v2376
        %v2491 = vadd.f32 %v2106, %v2381
        %v2492 = vadd.f32 %v2107, %v2386
        %v2493 = vadd.f32 %v2108, %v2391
        %v2494 = vadd.f32 %v2109, %v2396
        %v2495 = vadd.f32 %v2110, %v2401
        %v2496 = vadd.f32 %v2111, %v2406
        %v2497 = vadd.f32 %v2112, %v2411
        %v2498 = vadd.f32 %v2113, %v2416
        %v2499 = vadd.f32 %v2114, %v2421
        %v2500 = vadd.f32 %v2115, %v2426
        %v2501 = vadd.f32 %v2116, %v2431
        %v2502 = vadd.f32 %v2117, %v2436
        %v2503 = vadd.f32 %v2118, %v2441
        %v2504 = vadd.f32 %v2119, %v2446
        %v2505 = vadd.f32 %v2120, %v2451
        %v2506 = vadd.f32 %v2121, %v2456
        %v2507 = vadd.f32 %v2122, %v2461
        %v2508 = vadd.f32 %v2123, %v2466
        %v2509 = vadd.f32 %v2124, %v2471
        %v2510 = vadd.f32 %v2125, %v2476
        %v2511 = vrcp.pop %v2222
        %v2512 = vmul.f32 %v2479, %v2511
        %v2513 = vrcp.pop %v2223
        %v2514 = vmul.f32 %v2480, %v2513
        %v2515 = vrcp.pop %v2224
        %v2516 = vmul.f32 %v2481, %v2515
        %v2517 = vrcp.pop %v2225
        %v2518 = vmul.f32 %v2482, %v2517
        %v2519 = vrcp.pop %v2226
        %v2520 = vmul.f32 %v2483, %v2519
        %v2521 = vrcp.pop %v2227
        %v2522 = vmul.f32 %v2484, %v2521
        %v2523 = vrcp.pop %v2228
        %v2524 = vmul.f32 %v2485, %v2523
        %v2525 = vrcp.pop %v2229
        %v2526 = vmul.f32 %v2486, %v2525
        %v2527 = vrcp.pop %v2230
        %v2528 = vmul.f32 %v2487, %v2527
        %v2529 = vrcp.pop %v2231
        %v2530 = vmul.f32 %v2488, %v2529
        %v2531 = vrcp.pop %v2232
        %v2532 = vmul.f32 %v2489, %v2531
        %v2533 = vrcp.pop %v2233
        %v2534 = vmul.f32 %v2490, %v2533
        %v2535 = vrcp.pop %v2234
        %v2536 = vmul.f32 %v2491, %v2535
        %v2537 = vrcp.pop %v2235
        %v2538 = vmul.f32 %v2492, %v2537
        %v2539 = vrcp.pop %v2236
        %v2540 = vmul.f32 %v2493, %v2539
        %v2541 = vrcp.pop %v2237
        %v2542 = vmul.f32 %v2494, %v2541
        %v2543 = vrcp.pop %v2238
        %v2544 = vmul.f32 %v2495, %v2543
        %v2545 = vrcp.pop %v2239
        %v2546 = vmul.f32 %v2496, %v2545
        %v2547 = vrcp.pop %v2240
        %v2548 = vmul.f32 %v2497, %v2547
        %v2549 = vrcp.pop %v2241
        %v2550 = vmul.f32 %v2498, %v2549
        %v2551 = vrcp.pop %v2242
        %v2552 = vmul.f32 %v2499, %v2551
        %v2553 = vrcp.pop %v2243
        %v2554 = vmul.f32 %v2500, %v2553
        %v2555 = vrcp.pop %v2244
        %v2556 = vmul.f32 %v2501, %v2555
        %v2557 = vrcp.pop %v2245
        %v2558 = vmul.f32 %v2502, %v2557
        %v2559 = vrcp.pop %v2246
        %v2560 = vmul.f32 %v2503, %v2559
        %v2561 = vrcp.pop %v2247
        %v2562 = vmul.f32 %v2504, %v2561
        %v2563 = vrcp.pop %v2248
        %v2564 = vmul.f32 %v2505, %v2563
        %v2565 = vrcp.pop %v2249
        %v2566 = vmul.f32 %v2506, %v2565
        %v2567 = vrcp.pop %v2250
        %v2568 = vmul.f32 %v2507, %v2567
        %v2569 = vrcp.pop %v2251
        %v2570 = vmul.f32 %v2508, %v2569
        %v2571 = vrcp.pop %v2252
        %v2572 = vmul.f32 %v2509, %v2571
        %v2573 = vrcp.pop %v2253
        %v2574 = vmul.f32 %v2510, %v2573
        %v2575 = vld [vmem:[#allocation2] sm:$0xff]
        %v2576 = vld [vmem:[#allocation2 + $0x8] sm:$0xff]
        %v2577 = vld [vmem:[#allocation2 + $0x10] sm:$0xff]
        %v2578 = vld [vmem:[#allocation2 + $0x18] sm:$0xff]
        %v2579 = vld [vmem:[#allocation2 + $0x20] sm:$0xff]
        %v2580 = vld [vmem:[#allocation2 + $0x28] sm:$0xff]
        %v2581 = vld [vmem:[#allocation2 + $0x30] sm:$0xff]
        %v2582 = vld [vmem:[#allocation2 + $0x38] sm:$0xff]
        %v2583 = vld [vmem:[#allocation2 + $0x40] sm:$0xff]
        %v2584 = vld [vmem:[#allocation2 + $0x48] sm:$0xff]
        %v2585 = vld [vmem:[#allocation2 + $0x50] sm:$0xff]
        %v2586 = vld [vmem:[#allocation2 + $0x58] sm:$0xff]
        %v2587 = vld [vmem:[#allocation2 + $0x60] sm:$0xff]
        %v2588 = vld [vmem:[#allocation2 + $0x68] sm:$0xff]
        %v2589 = vld [vmem:[#allocation2 + $0x70] sm:$0xff]
        %v2590 = vld [vmem:[#allocation2 + $0x78] sm:$0xff]
        %v2591 = vld [vmem:[#allocation2 + $0x80] sm:$0xff]
        %v2592 = vld [vmem:[#allocation2 + $0x88] sm:$0xff]
        %v2593 = vld [vmem:[#allocation2 + $0x90] sm:$0xff]
        %v2594 = vld [vmem:[#allocation2 + $0x98] sm:$0xff]
        %v2595 = vld [vmem:[#allocation2 + $0xa0] sm:$0xff]
        %v2596 = vld [vmem:[#allocation2 + $0xa8] sm:$0xff]
        %v2597 = vld [vmem:[#allocation2 + $0xb0] sm:$0xff]
        %v2598 = vld [vmem:[#allocation2 + $0xb8] sm:$0xff]
        %v2599 = vld [vmem:[#allocation2 + $0xc0] sm:$0xff]
        %v2600 = vld [vmem:[#allocation2 + $0xc8] sm:$0xff]
        %v2601 = vld [vmem:[#allocation2 + $0xd0] sm:$0xff]
        %v2602 = vld [vmem:[#allocation2 + $0xd8] sm:$0xff]
        %v2603 = vld [vmem:[#allocation2 + $0xe0] sm:$0xff]
        %v2604 = vld [vmem:[#allocation2 + $0xe8] sm:$0xff]
        %v2605 = vld [vmem:[#allocation2 + $0xf0] sm:$0xff]
        %v2606 = vld [vmem:[#allocation2 + $0xf8] sm:$0xff]
        %v2607 = vld [vmem:[#allocation5] sm:$0xff]
        %v2608 = vld [vmem:[#allocation5 + $0x8] sm:$0xff]
        %v2609 = vld [vmem:[#allocation5 + $0x10] sm:$0xff]
        %v2610 = vld [vmem:[#allocation5 + $0x18] sm:$0xff]
        %v2611 = vld [vmem:[#allocation5 + $0x20] sm:$0xff]
        %v2612 = vld [vmem:[#allocation5 + $0x28] sm:$0xff]
        %v2613 = vld [vmem:[#allocation5 + $0x30] sm:$0xff]
        %v2614 = vld [vmem:[#allocation5 + $0x38] sm:$0xff]
        %v2615 = vld [vmem:[#allocation5 + $0x40] sm:$0xff]
        %v2616 = vld [vmem:[#allocation5 + $0x48] sm:$0xff]
        %v2617 = vld [vmem:[#allocation5 + $0x50] sm:$0xff]
        %v2618 = vld [vmem:[#allocation5 + $0x58] sm:$0xff]
        %v2619 = vld [vmem:[#allocation5 + $0x60] sm:$0xff]
        %v2620 = vld [vmem:[#allocation5 + $0x68] sm:$0xff]
        %v2621 = vld [vmem:[#allocation5 + $0x70] sm:$0xff]
        %v2622 = vld [vmem:[#allocation5 + $0x78] sm:$0xff]
        %v2623 = vld [vmem:[#allocation5 + $0x80] sm:$0xff]
        %v2624 = vld [vmem:[#allocation5 + $0x88] sm:$0xff]
        %v2625 = vld [vmem:[#allocation5 + $0x90] sm:$0xff]
        %v2626 = vld [vmem:[#allocation5 + $0x98] sm:$0xff]
        %v2627 = vld [vmem:[#allocation5 + $0xa0] sm:$0xff]
        %v2628 = vld [vmem:[#allocation5 + $0xa8] sm:$0xff]
        %v2629 = vld [vmem:[#allocation5 + $0xb0] sm:$0xff]
        %v2630 = vld [vmem:[#allocation5 + $0xb8] sm:$0xff]
        %v2631 = vld [vmem:[#allocation5 + $0xc0] sm:$0xff]
        %v2632 = vld [vmem:[#allocation5 + $0xc8] sm:$0xff]
        %v2633 = vld [vmem:[#allocation5 + $0xd0] sm:$0xff]
        %v2634 = vld [vmem:[#allocation5 + $0xd8] sm:$0xff]
        %v2635 = vld [vmem:[#allocation5 + $0xe0] sm:$0xff]
        %v2636 = vld [vmem:[#allocation5 + $0xe8] sm:$0xff]
        %v2637 = vld [vmem:[#allocation5 + $0xf0] sm:$0xff]
        %v2638 = vld [vmem:[#allocation5 + $0xf8] sm:$0xff]
        %2639 = vmatprep.subr.mxu0 0.0
        %2640 = vmatpush1.xpose.msra.mxu0 %v2590
        %2641 = vmatprep.subr.mxu0 0.0
        %2642 = vmatpush1.xpose.msra.mxu0 %v2589
        %2643 = vmatprep.subr.mxu0 0.0
        %2644 = vmatpush1.xpose.msra.mxu0 %v2588
        %2645 = vmatprep.subr.mxu0 0.0
        %2646 = vmatpush1.xpose.msra.mxu0 %v2587
        %2647 = vmatprep.subr.mxu0 0.0
        %2648 = vmatpush1.xpose.msra.mxu0 %v2586
        %2649 = vmatprep.subr.mxu0 0.0
        %2650 = vmatpush1.xpose.msra.mxu0 %v2585
        %2651 = vmatprep.subr.mxu0 0.0
        %2652 = vmatpush1.xpose.msra.mxu0 %v2584
        %2653 = vmatprep.subr.mxu0 0.0
        %2654 = vmatpush1.xpose.msra.mxu0 %v2583
        %2655 = vmatprep.subr.mxu0 0.0
        %2656 = vmatpush1.xpose.msra.mxu0 %v2582
        %2657 = vmatprep.subr.mxu0 0.0
        %2658 = vmatpush1.xpose.msra.mxu0 %v2581
        %2659 = vmatprep.subr.mxu0 0.0
        %2660 = vmatpush1.xpose.msra.mxu0 %v2580
        %2661 = vmatprep.subr.mxu0 0.0
        %2662 = vmatpush1.xpose.msra.mxu0 %v2579
        %2663 = vmatprep.subr.mxu0 0.0
        %2664 = vmatpush1.xpose.msra.mxu0 %v2578
        %2665 = vmatprep.subr.mxu0 0.0
        %2666 = vmatpush1.xpose.msra.mxu0 %v2577
        %2667 = vmatprep.subr.mxu0 0.0
        %2668 = vmatpush1.xpose.msra.mxu0 %v2576
        %2669 = vmatprep.subr.mxu0 0.0
        %2670 = vmatpush1.xpose.msra.mxu0 %v2575
        %2671 = vmatprep.subr.mxu0 0.0
        %2672 = vmatpush2.xpose.msra.mxu0 %v2606
        %2673 = vmatprep.subr.mxu0 0.0
        %2674 = vmatpush2.xpose.msra.mxu0 %v2605
        %2675 = vmatprep.subr.mxu0 0.0
        %2676 = vmatpush2.xpose.msra.mxu0 %v2604
        %2677 = vmatprep.subr.mxu0 0.0
        %2678 = vmatpush2.xpose.msra.mxu0 %v2603
        %2679 = vmatprep.subr.mxu0 0.0
        %2680 = vmatpush2.xpose.msra.mxu0 %v2602
        %2681 = vmatprep.subr.mxu0 0.0
        %2682 = vmatpush2.xpose.msra.mxu0 %v2601
        %2683 = vmatprep.subr.mxu0 0.0
        %2684 = vmatpush2.xpose.msra.mxu0 %v2600
        %2685 = vmatprep.subr.mxu0 0.0
        %2686 = vmatpush2.xpose.msra.mxu0 %v2599
        %2687 = vmatprep.subr.mxu0 0.0
        %2688 = vmatpush2.xpose.msra.mxu0 %v2598
        %2689 = vmatprep.subr.mxu0 0.0
        %2690 = vmatpush2.xpose.msra.mxu0 %v2597
        %2691 = vmatprep.subr.mxu0 0.0
        %2692 = vmatpush2.xpose.msra.mxu0 %v2596
        %2693 = vmatprep.subr.mxu0 0.0
        %2694 = vmatpush2.xpose.msra.mxu0 %v2595
        %2695 = vmatprep.subr.mxu0 0.0
        %2696 = vmatpush2.xpose.msra.mxu0 %v2594
        %2697 = vmatprep.subr.mxu0 0.0
        %2698 = vmatpush2.xpose.msra.mxu0 %v2593
        %2699 = vmatprep.subr.mxu0 0.0
        %2700 = vmatpush2.xpose.msra.mxu0 %v2592
        %2701 = vmatprep.subr.mxu0 0.0
        %2702 = vmatpush2.xpose.msra.mxu0 %v2591
        %2703 = vmatprep.mubr.f32.mxu0 0.0
        %2704 = vmatmul.mubr.f32.gmra.mxu0 %v1357
        %v2705 = vpop.f32.mrf.mxu0
        %v2706 = vadd.f32 0.0, %v2705
        %v2707 = vpop.f32.mrf.mxu0
        %v2708 = vadd.f32 0.0, %v2707
        %2709 = vmatprep.mubr.f32.mxu0 0.0
        %2710 = vmatmul.mubr.f32.gmra.mxu0 %v1358
        %v2711 = vpop.f32.mrf.mxu0
        %v2712 = vadd.f32 0.0, %v2711
        %v2713 = vpop.f32.mrf.mxu0
        %v2714 = vadd.f32 0.0, %v2713
        %2715 = vmatprep.mubr.f32.mxu0 0.0
        %2716 = vmatmul.mubr.f32.gmra.mxu0 %v1359
        %v2717 = vpop.f32.mrf.mxu0
        %v2718 = vadd.f32 0.0, %v2717
        %v2719 = vpop.f32.mrf.mxu0
        %v2720 = vadd.f32 0.0, %v2719
        %2721 = vmatprep.mubr.f32.mxu0 0.0
        %2722 = vmatmul.mubr.f32.gmra.mxu0 %v1360
        %v2723 = vpop.f32.mrf.mxu0
        %v2724 = vadd.f32 0.0, %v2723
        %v2725 = vpop.f32.mrf.mxu0
        %v2726 = vadd.f32 0.0, %v2725
        %2727 = vmatprep.mubr.f32.mxu0 0.0
        %2728 = vmatmul.mubr.f32.gmra.mxu0 %v1361
        %v2729 = vpop.f32.mrf.mxu0
        %v2730 = vadd.f32 0.0, %v2729
        %v2731 = vpop.f32.mrf.mxu0
        %v2732 = vadd.f32 0.0, %v2731
        %2733 = vmatprep.mubr.f32.mxu0 0.0
        %2734 = vmatmul.mubr.f32.gmra.mxu0 %v1362
        %v2735 = vpop.f32.mrf.mxu0
        %v2736 = vadd.f32 0.0, %v2735
        %v2737 = vpop.f32.mrf.mxu0
        %v2738 = vadd.f32 0.0, %v2737
        %2739 = vmatprep.mubr.f32.mxu0 0.0
        %2740 = vmatmul.mubr.f32.gmra.mxu0 %v1363
        %v2741 = vpop.f32.mrf.mxu0
        %v2742 = vadd.f32 0.0, %v2741
        %v2743 = vpop.f32.mrf.mxu0
        %v2744 = vadd.f32 0.0, %v2743
        %2745 = vmatprep.mubr.f32.mxu0 0.0
        %2746 = vmatmul.mubr.f32.gmra.mxu0 %v1364
        %v2747 = vpop.f32.mrf.mxu0
        %v2748 = vadd.f32 0.0, %v2747
        %v2749 = vpop.f32.mrf.mxu0
        %v2750 = vadd.f32 0.0, %v2749
        %2751 = vmatprep.mubr.f32.mxu0 0.0
        %2752 = vmatmul.mubr.f32.gmra.mxu0 %v1365
        %v2753 = vpop.f32.mrf.mxu0
        %v2754 = vadd.f32 0.0, %v2753
        %v2755 = vpop.f32.mrf.mxu0
        %v2756 = vadd.f32 0.0, %v2755
        %2757 = vmatprep.mubr.f32.mxu0 0.0
        %2758 = vmatmul.mubr.f32.gmra.mxu0 %v1366
        %v2759 = vpop.f32.mrf.mxu0
        %v2760 = vadd.f32 0.0, %v2759
        %v2761 = vpop.f32.mrf.mxu0
        %v2762 = vadd.f32 0.0, %v2761
        %2763 = vmatprep.mubr.f32.mxu0 0.0
        %2764 = vmatmul.mubr.f32.gmra.mxu0 %v1367
        %v2765 = vpop.f32.mrf.mxu0
        %v2766 = vadd.f32 0.0, %v2765
        %v2767 = vpop.f32.mrf.mxu0
        %v2768 = vadd.f32 0.0, %v2767
        %2769 = vmatprep.mubr.f32.mxu0 0.0
        %2770 = vmatmul.mubr.f32.gmra.mxu0 %v1368
        %v2771 = vpop.f32.mrf.mxu0
        %v2772 = vadd.f32 0.0, %v2771
        %v2773 = vpop.f32.mrf.mxu0
        %v2774 = vadd.f32 0.0, %v2773
        %2775 = vmatprep.mubr.f32.mxu0 0.0
        %2776 = vmatmul.mubr.f32.gmra.mxu0 %v1369
        %v2777 = vpop.f32.mrf.mxu0
        %v2778 = vadd.f32 0.0, %v2777
        %v2779 = vpop.f32.mrf.mxu0
        %v2780 = vadd.f32 0.0, %v2779
        %2781 = vmatprep.mubr.f32.mxu0 0.0
        %2782 = vmatmul.mubr.f32.gmra.mxu0 %v1370
        %v2783 = vpop.f32.mrf.mxu0
        %v2784 = vadd.f32 0.0, %v2783
        %v2785 = vpop.f32.mrf.mxu0
        %v2786 = vadd.f32 0.0, %v2785
        %2787 = vmatprep.mubr.f32.mxu0 0.0
        %2788 = vmatmul.mubr.f32.gmra.mxu0 %v1371
        %v2789 = vpop.f32.mrf.mxu0
        %v2790 = vadd.f32 0.0, %v2789
        %v2791 = vpop.f32.mrf.mxu0
        %v2792 = vadd.f32 0.0, %v2791
        %2793 = vmatprep.mubr.f32.mxu0 0.0
        %2794 = vmatmul.mubr.f32.gmra.mxu0 %v1372
        %v2795 = vpop.f32.mrf.mxu0
        %v2796 = vadd.f32 0.0, %v2795
        %v2797 = vpop.f32.mrf.mxu0
        %v2798 = vadd.f32 0.0, %v2797
        %2799 = vmatprep.mubr.f32.mxu0 0.0
        %2800 = vmatmul.mubr.f32.gmra.mxu0 %v1373
        %v2801 = vpop.f32.mrf.mxu0
        %v2802 = vadd.f32 0.0, %v2801
        %v2803 = vpop.f32.mrf.mxu0
        %v2804 = vadd.f32 0.0, %v2803
        %2805 = vmatprep.mubr.f32.mxu0 0.0
        %2806 = vmatmul.mubr.f32.gmra.mxu0 %v1374
        %v2807 = vpop.f32.mrf.mxu0
        %v2808 = vadd.f32 0.0, %v2807
        %v2809 = vpop.f32.mrf.mxu0
        %v2810 = vadd.f32 0.0, %v2809
        %2811 = vmatprep.mubr.f32.mxu0 0.0
        %2812 = vmatmul.mubr.f32.gmra.mxu0 %v1375
        %v2813 = vpop.f32.mrf.mxu0
        %v2814 = vadd.f32 0.0, %v2813
        %v2815 = vpop.f32.mrf.mxu0
        %v2816 = vadd.f32 0.0, %v2815
        %2817 = vmatprep.mubr.f32.mxu0 0.0
        %2818 = vmatmul.mubr.f32.gmra.mxu0 %v1376
        %v2819 = vpop.f32.mrf.mxu0
        %v2820 = vadd.f32 0.0, %v2819
        %v2821 = vpop.f32.mrf.mxu0
        %v2822 = vadd.f32 0.0, %v2821
        %2823 = vmatprep.mubr.f32.mxu0 0.0
        %2824 = vmatmul.mubr.f32.gmra.mxu0 %v1377
        %v2825 = vpop.f32.mrf.mxu0
        %v2826 = vadd.f32 0.0, %v2825
        %v2827 = vpop.f32.mrf.mxu0
        %v2828 = vadd.f32 0.0, %v2827
        %2829 = vmatprep.mubr.f32.mxu0 0.0
        %2830 = vmatmul.mubr.f32.gmra.mxu0 %v1378
        %v2831 = vpop.f32.mrf.mxu0
        %v2832 = vadd.f32 0.0, %v2831
        %v2833 = vpop.f32.mrf.mxu0
        %v2834 = vadd.f32 0.0, %v2833
        %2835 = vmatprep.mubr.f32.mxu0 0.0
        %2836 = vmatmul.mubr.f32.gmra.mxu0 %v1379
        %v2837 = vpop.f32.mrf.mxu0
        %v2838 = vadd.f32 0.0, %v2837
        %v2839 = vpop.f32.mrf.mxu0
        %v2840 = vadd.f32 0.0, %v2839
        %2841 = vmatprep.mubr.f32.mxu0 0.0
        %2842 = vmatmul.mubr.f32.gmra.mxu0 %v1380
        %v2843 = vpop.f32.mrf.mxu0
        %v2844 = vadd.f32 0.0, %v2843
        %v2845 = vpop.f32.mrf.mxu0
        %v2846 = vadd.f32 0.0, %v2845
        %2847 = vmatprep.mubr.f32.mxu0 0.0
        %2848 = vmatmul.mubr.f32.gmra.mxu0 %v1381
        %v2849 = vpop.f32.mrf.mxu0
        %v2850 = vadd.f32 0.0, %v2849
        %v2851 = vpop.f32.mrf.mxu0
        %v2852 = vadd.f32 0.0, %v2851
        %2853 = vmatprep.mubr.f32.mxu0 0.0
        %2854 = vmatmul.mubr.f32.gmra.mxu0 %v1382
        %v2855 = vpop.f32.mrf.mxu0
        %v2856 = vadd.f32 0.0, %v2855
        %v2857 = vpop.f32.mrf.mxu0
        %v2858 = vadd.f32 0.0, %v2857
        %2859 = vmatprep.mubr.f32.mxu0 0.0
        %2860 = vmatmul.mubr.f32.gmra.mxu0 %v1383
        %v2861 = vpop.f32.mrf.mxu0
        %v2862 = vadd.f32 0.0, %v2861
        %v2863 = vpop.f32.mrf.mxu0
        %v2864 = vadd.f32 0.0, %v2863
        %2865 = vmatprep.mubr.f32.mxu0 0.0
        %2866 = vmatmul.mubr.f32.gmra.mxu0 %v1384
        %v2867 = vpop.f32.mrf.mxu0
        %v2868 = vadd.f32 0.0, %v2867
        %v2869 = vpop.f32.mrf.mxu0
        %v2870 = vadd.f32 0.0, %v2869
        %2871 = vmatprep.mubr.f32.mxu0 0.0
        %2872 = vmatmul.mubr.f32.gmra.mxu0 %v1385
        %v2873 = vpop.f32.mrf.mxu0
        %v2874 = vadd.f32 0.0, %v2873
        %v2875 = vpop.f32.mrf.mxu0
        %v2876 = vadd.f32 0.0, %v2875
        %2877 = vmatprep.mubr.f32.mxu0 0.0
        %2878 = vmatmul.mubr.f32.gmra.mxu0 %v1386
        %v2879 = vpop.f32.mrf.mxu0
        %v2880 = vadd.f32 0.0, %v2879
        %v2881 = vpop.f32.mrf.mxu0
        %v2882 = vadd.f32 0.0, %v2881
        %2883 = vmatprep.mubr.f32.mxu0 0.0
        %2884 = vmatmul.mubr.f32.gmra.mxu0 %v1387
        %v2885 = vpop.f32.mrf.mxu0
        %v2886 = vadd.f32 0.0, %v2885
        %v2887 = vpop.f32.mrf.mxu0
        %v2888 = vadd.f32 0.0, %v2887
        %2889 = vmatprep.mubr.f32.mxu0 0.0
        %2890 = vmatmul.mubr.f32.gmra.mxu0 %v1388
        %v2891 = vpop.f32.mrf.mxu0
        %v2892 = vadd.f32 0.0, %v2891
        %v2893 = vpop.f32.mrf.mxu0
        %v2894 = vadd.f32 0.0, %v2893
        %2895 = vdwg.mxu0
        %v2896 = vmax.f32 %v2706, %v2708
        %2897 = vmax.xlane.f32.xlu0 %v2896
        %v2898 = vpop.xlane.xlu0 %2897
        %v2899 = vmax.f32 %v2712, %v2714
        %2900 = vmax.xlane.f32.xlu0 %v2899
        %v2901 = vpop.xlane.xlu0 %2900
        %v2902 = vmax.f32 %v2718, %v2720
        %2903 = vmax.xlane.f32.xlu0 %v2902
        %v2904 = vpop.xlane.xlu0 %2903
        %v2905 = vmax.f32 %v2724, %v2726
        %2906 = vmax.xlane.f32.xlu0 %v2905
        %v2907 = vpop.xlane.xlu0 %2906
        %v2908 = vmax.f32 %v2730, %v2732
        %2909 = vmax.xlane.f32.xlu0 %v2908
        %v2910 = vpop.xlane.xlu0 %2909
        %v2911 = vmax.f32 %v2736, %v2738
        %2912 = vmax.xlane.f32.xlu0 %v2911
        %v2913 = vpop.xlane.xlu0 %2912
        %v2914 = vmax.f32 %v2742, %v2744
        %2915 = vmax.xlane.f32.xlu0 %v2914
        %v2916 = vpop.xlane.xlu0 %2915
        %v2917 = vmax.f32 %v2748, %v2750
        %2918 = vmax.xlane.f32.xlu0 %v2917
        %v2919 = vpop.xlane.xlu0 %2918
        %v2920 = vmax.f32 %v2754, %v2756
        %2921 = vmax.xlane.f32.xlu0 %v2920
        %v2922 = vpop.xlane.xlu0 %2921
        %v2923 = vmax.f32 %v2760, %v2762
        %2924 = vmax.xlane.f32.xlu0 %v2923
        %v2925 = vpop.xlane.xlu0 %2924
        %v2926 = vmax.f32 %v2766, %v2768
        %2927 = vmax.xlane.f32.xlu0 %v2926
        %v2928 = vpop.xlane.xlu0 %2927
        %v2929 = vmax.f32 %v2772, %v2774
        %2930 = vmax.xlane.f32.xlu0 %v2929
        %v2931 = vpop.xlane.xlu0 %2930
        %v2932 = vmax.f32 %v2778, %v2780
        %2933 = vmax.xlane.f32.xlu0 %v2932
        %v2934 = vpop.xlane.xlu0 %2933
        %v2935 = vmax.f32 %v2784, %v2786
        %2936 = vmax.xlane.f32.xlu0 %v2935
        %v2937 = vpop.xlane.xlu0 %2936
        %v2938 = vmax.f32 %v2790, %v2792
        %2939 = vmax.xlane.f32.xlu0 %v2938
        %v2940 = vpop.xlane.xlu0 %2939
        %v2941 = vmax.f32 %v2796, %v2798
        %2942 = vmax.xlane.f32.xlu0 %v2941
        %v2943 = vpop.xlane.xlu0 %2942
        %v2944 = vmax.f32 %v2802, %v2804
        %2945 = vmax.xlane.f32.xlu0 %v2944
        %v2946 = vpop.xlane.xlu0 %2945
        %v2947 = vmax.f32 %v2808, %v2810
        %2948 = vmax.xlane.f32.xlu0 %v2947
        %v2949 = vpop.xlane.xlu0 %2948
        %v2950 = vmax.f32 %v2814, %v2816
        %2951 = vmax.xlane.f32.xlu0 %v2950
        %v2952 = vpop.xlane.xlu0 %2951
        %v2953 = vmax.f32 %v2820, %v2822
        %2954 = vmax.xlane.f32.xlu0 %v2953
        %v2955 = vpop.xlane.xlu0 %2954
        %v2956 = vmax.f32 %v2826, %v2828
        %2957 = vmax.xlane.f32.xlu0 %v2956
        %v2958 = vpop.xlane.xlu0 %2957
        %v2959 = vmax.f32 %v2832, %v2834
        %2960 = vmax.xlane.f32.xlu0 %v2959
        %v2961 = vpop.xlane.xlu0 %2960
        %v2962 = vmax.f32 %v2838, %v2840
        %2963 = vmax.xlane.f32.xlu0 %v2962
        %v2964 = vpop.xlane.xlu0 %2963
        %v2965 = vmax.f32 %v2844, %v2846
        %2966 = vmax.xlane.f32.xlu0 %v2965
        %v2967 = vpop.xlane.xlu0 %2966
        %v2968 = vmax.f32 %v2850, %v2852
        %2969 = vmax.xlane.f32.xlu0 %v2968
        %v2970 = vpop.xlane.xlu0 %2969
        %v2971 = vmax.f32 %v2856, %v2858
        %2972 = vmax.xlane.f32.xlu0 %v2971
        %v2973 = vpop.xlane.xlu0 %2972
        %v2974 = vmax.f32 %v2862, %v2864
        %2975 = vmax.xlane.f32.xlu0 %v2974
        %v2976 = vpop.xlane.xlu0 %2975
        %v2977 = vmax.f32 %v2868, %v2870
        %2978 = vmax.xlane.f32.xlu0 %v2977
        %v2979 = vpop.xlane.xlu0 %2978
        %v2980 = vmax.f32 %v2874, %v2876
        %2981 = vmax.xlane.f32.xlu0 %v2980
        %v2982 = vpop.xlane.xlu0 %2981
        %v2983 = vmax.f32 %v2880, %v2882
        %2984 = vmax.xlane.f32.xlu0 %v2983
        %v2985 = vpop.xlane.xlu0 %2984
        %v2986 = vmax.f32 %v2886, %v2888
        %2987 = vmax.xlane.f32.xlu0 %v2986
        %v2988 = vpop.xlane.xlu0 %2987
        %v2989 = vmax.f32 %v2892, %v2894
        %2990 = vmax.xlane.f32.xlu0 %v2989
        %v2991 = vpop.xlane.xlu0 %2990
        %v2992 = vsub.f32 -inf, %v2898
        %v2993 = vsub.f32 -inf, %v2901
        %v2994 = vsub.f32 -inf, %v2904
        %v2995 = vsub.f32 -inf, %v2907
        %v2996 = vsub.f32 -inf, %v2910
        %v2997 = vsub.f32 -inf, %v2913
        %v2998 = vsub.f32 -inf, %v2916
        %v2999 = vsub.f32 -inf, %v2919
        %v3000 = vsub.f32 -inf, %v2922
        %v3001 = vsub.f32 -inf, %v2925
        %v3002 = vsub.f32 -inf, %v2928
        %v3003 = vsub.f32 -inf, %v2931
        %v3004 = vsub.f32 -inf, %v2934
        %v3005 = vsub.f32 -inf, %v2937
        %v3006 = vsub.f32 -inf, %v2940
        %v3007 = vsub.f32 -inf, %v2943
        %v3008 = vsub.f32 -inf, %v2946
        %v3009 = vsub.f32 -inf, %v2949
        %v3010 = vsub.f32 -inf, %v2952
        %v3011 = vsub.f32 -inf, %v2955
        %v3012 = vsub.f32 -inf, %v2958
        %v3013 = vsub.f32 -inf, %v2961
        %v3014 = vsub.f32 -inf, %v2964
        %v3015 = vsub.f32 -inf, %v2967
        %v3016 = vsub.f32 -inf, %v2970
        %v3017 = vsub.f32 -inf, %v2973
        %v3018 = vsub.f32 -inf, %v2976
        %v3019 = vsub.f32 -inf, %v2979
        %v3020 = vsub.f32 -inf, %v2982
        %v3021 = vsub.f32 -inf, %v2985
        %v3022 = vsub.f32 -inf, %v2988
        %v3023 = vsub.f32 -inf, %v2991
        %v3024 = vmul.f32 %v2992, 1.442695
        %v3025 = vpow.pop %v3024
        %v3026 = vmul.f32 %v2993, 1.442695
        %v3027 = vpow.pop %v3026
        %v3028 = vmul.f32 %v2994, 1.442695
        %v3029 = vpow.pop %v3028
        %v3030 = vmul.f32 %v2995, 1.442695
        %v3031 = vpow.pop %v3030
        %v3032 = vmul.f32 %v2996, 1.442695
        %v3033 = vpow.pop %v3032
        %v3034 = vmul.f32 %v2997, 1.442695
        %v3035 = vpow.pop %v3034
        %v3036 = vmul.f32 %v2998, 1.442695
        %v3037 = vpow.pop %v3036
        %v3038 = vmul.f32 %v2999, 1.442695
        %v3039 = vpow.pop %v3038
        %v3040 = vmul.f32 %v3000, 1.442695
        %v3041 = vpow.pop %v3040
        %v3042 = vmul.f32 %v3001, 1.442695
        %v3043 = vpow.pop %v3042
        %v3044 = vmul.f32 %v3002, 1.442695
        %v3045 = vpow.pop %v3044
        %v3046 = vmul.f32 %v3003, 1.442695
        %v3047 = vpow.pop %v3046
        %v3048 = vmul.f32 %v3004, 1.442695
        %v3049 = vpow.pop %v3048
        %v3050 = vmul.f32 %v3005, 1.442695
        %v3051 = vpow.pop %v3050
        %v3052 = vmul.f32 %v3006, 1.442695
        %v3053 = vpow.pop %v3052
        %v3054 = vmul.f32 %v3007, 1.442695
        %v3055 = vpow.pop %v3054
        %v3056 = vmul.f32 %v3008, 1.442695
        %v3057 = vpow.pop %v3056
        %v3058 = vmul.f32 %v3009, 1.442695
        %v3059 = vpow.pop %v3058
        %v3060 = vmul.f32 %v3010, 1.442695
        %v3061 = vpow.pop %v3060
        %v3062 = vmul.f32 %v3011, 1.442695
        %v3063 = vpow.pop %v3062
        %v3064 = vmul.f32 %v3012, 1.442695
        %v3065 = vpow.pop %v3064
        %v3066 = vmul.f32 %v3013, 1.442695
        %v3067 = vpow.pop %v3066
        %v3068 = vmul.f32 %v3014, 1.442695
        %v3069 = vpow.pop %v3068
        %v3070 = vmul.f32 %v3015, 1.442695
        %v3071 = vpow.pop %v3070
        %v3072 = vmul.f32 %v3016, 1.442695
        %v3073 = vpow.pop %v3072
        %v3074 = vmul.f32 %v3017, 1.442695
        %v3075 = vpow.pop %v3074
        %v3076 = vmul.f32 %v3018, 1.442695
        %v3077 = vpow.pop %v3076
        %v3078 = vmul.f32 %v3019, 1.442695
        %v3079 = vpow.pop %v3078
        %v3080 = vmul.f32 %v3020, 1.442695
        %v3081 = vpow.pop %v3080
        %v3082 = vmul.f32 %v3021, 1.442695
        %v3083 = vpow.pop %v3082
        %v3084 = vmul.f32 %v3022, 1.442695
        %v3085 = vpow.pop %v3084
        %v3086 = vmul.f32 %v3023, 1.442695
        %v3087 = vpow.pop %v3086
        %v3088 = vsub.f32 %v2706, %v2898
        %v3089 = vsub.f32 %v2708, %v2898
        %v3090 = vsub.f32 %v2712, %v2901
        %v3091 = vsub.f32 %v2714, %v2901
        %v3092 = vsub.f32 %v2718, %v2904
        %v3093 = vsub.f32 %v2720, %v2904
        %v3094 = vsub.f32 %v2724, %v2907
        %v3095 = vsub.f32 %v2726, %v2907
        %v3096 = vsub.f32 %v2730, %v2910
        %v3097 = vsub.f32 %v2732, %v2910
        %v3098 = vsub.f32 %v2736, %v2913
        %v3099 = vsub.f32 %v2738, %v2913
        %v3100 = vsub.f32 %v2742, %v2916
        %v3101 = vsub.f32 %v2744, %v2916
        %v3102 = vsub.f32 %v2748, %v2919
        %v3103 = vsub.f32 %v2750, %v2919
        %v3104 = vsub.f32 %v2754, %v2922
        %v3105 = vsub.f32 %v2756, %v2922
        %v3106 = vsub.f32 %v2760, %v2925
        %v3107 = vsub.f32 %v2762, %v2925
        %v3108 = vsub.f32 %v2766, %v2928
        %v3109 = vsub.f32 %v2768, %v2928
        %v3110 = vsub.f32 %v2772, %v2931
        %v3111 = vsub.f32 %v2774, %v2931
        %v3112 = vsub.f32 %v2778, %v2934
        %v3113 = vsub.f32 %v2780, %v2934
        %v3114 = vsub.f32 %v2784, %v2937
        %v3115 = vsub.f32 %v2786, %v2937
        %v3116 = vsub.f32 %v2790, %v2940
        %v3117 = vsub.f32 %v2792, %v2940
        %v3118 = vsub.f32 %v2796, %v2943
        %v3119 = vsub.f32 %v2798, %v2943
        %v3120 = vsub.f32 %v2802, %v2946
        %v3121 = vsub.f32 %v2804, %v2946
        %v3122 = vsub.f32 %v2808, %v2949
        %v3123 = vsub.f32 %v2810, %v2949
        %v3124 = vsub.f32 %v2814, %v2952
        %v3125 = vsub.f32 %v2816, %v2952
        %v3126 = vsub.f32 %v2820, %v2955
        %v3127 = vsub.f32 %v2822, %v2955
        %v3128 = vsub.f32 %v2826, %v2958
        %v3129 = vsub.f32 %v2828, %v2958
        %v3130 = vsub.f32 %v2832, %v2961
        %v3131 = vsub.f32 %v2834, %v2961
        %v3132 = vsub.f32 %v2838, %v2964
        %v3133 = vsub.f32 %v2840, %v2964
        %v3134 = vsub.f32 %v2844, %v2967
        %v3135 = vsub.f32 %v2846, %v2967
        %v3136 = vsub.f32 %v2850, %v2970
        %v3137 = vsub.f32 %v2852, %v2970
        %v3138 = vsub.f32 %v2856, %v2973
        %v3139 = vsub.f32 %v2858, %v2973
        %v3140 = vsub.f32 %v2862, %v2976
        %v3141 = vsub.f32 %v2864, %v2976
        %v3142 = vsub.f32 %v2868, %v2979
        %v3143 = vsub.f32 %v2870, %v2979
        %v3144 = vsub.f32 %v2874, %v2982
        %v3145 = vsub.f32 %v2876, %v2982
        %v3146 = vsub.f32 %v2880, %v2985
        %v3147 = vsub.f32 %v2882, %v2985
        %v3148 = vsub.f32 %v2886, %v2988
        %v3149 = vsub.f32 %v2888, %v2988
        %v3150 = vsub.f32 %v2892, %v2991
        %v3151 = vsub.f32 %v2894, %v2991
        %v3152 = vmul.f32 %v3088, 1.442695
        %v3153 = vpow.pop %v3152
        %v3154 = vmul.f32 %v3089, 1.442695
        %v3155 = vpow.pop %v3154
        %v3156 = vmul.f32 %v3090, 1.442695
        %v3157 = vpow.pop %v3156
        %v3158 = vmul.f32 %v3091, 1.442695
        %v3159 = vpow.pop %v3158
        %v3160 = vmul.f32 %v3092, 1.442695
        %v3161 = vpow.pop %v3160
        %v3162 = vmul.f32 %v3093, 1.442695
        %v3163 = vpow.pop %v3162
        %v3164 = vmul.f32 %v3094, 1.442695
        %v3165 = vpow.pop %v3164
        %v3166 = vmul.f32 %v3095, 1.442695
        %v3167 = vpow.pop %v3166
        %v3168 = vmul.f32 %v3096, 1.442695
        %v3169 = vpow.pop %v3168
        %v3170 = vmul.f32 %v3097, 1.442695
        %v3171 = vpow.pop %v3170
        %v3172 = vmul.f32 %v3098, 1.442695
        %v3173 = vpow.pop %v3172
        %v3174 = vmul.f32 %v3099, 1.442695
        %v3175 = vpow.pop %v3174
        %v3176 = vmul.f32 %v3100, 1.442695
        %v3177 = vpow.pop %v3176
        %v3178 = vmul.f32 %v3101, 1.442695
        %v3179 = vpow.pop %v3178
        %v3180 = vmul.f32 %v3102, 1.442695
        %v3181 = vpow.pop %v3180
        %v3182 = vmul.f32 %v3103, 1.442695
        %v3183 = vpow.pop %v3182
        %v3184 = vmul.f32 %v3104, 1.442695
        %v3185 = vpow.pop %v3184
        %v3186 = vmul.f32 %v3105, 1.442695
        %v3187 = vpow.pop %v3186
        %v3188 = vmul.f32 %v3106, 1.442695
        %v3189 = vpow.pop %v3188
        %v3190 = vmul.f32 %v3107, 1.442695
        %v3191 = vpow.pop %v3190
        %v3192 = vmul.f32 %v3108, 1.442695
        %v3193 = vpow.pop %v3192
        %v3194 = vmul.f32 %v3109, 1.442695
        %v3195 = vpow.pop %v3194
        %v3196 = vmul.f32 %v3110, 1.442695
        %v3197 = vpow.pop %v3196
        %v3198 = vmul.f32 %v3111, 1.442695
        %v3199 = vpow.pop %v3198
        %v3200 = vmul.f32 %v3112, 1.442695
        %v3201 = vpow.pop %v3200
        %v3202 = vmul.f32 %v3113, 1.442695
        %v3203 = vpow.pop %v3202
        %v3204 = vmul.f32 %v3114, 1.442695
        %v3205 = vpow.pop %v3204
        %v3206 = vmul.f32 %v3115, 1.442695
        %v3207 = vpow.pop %v3206
        %v3208 = vmul.f32 %v3116, 1.442695
        %v3209 = vpow.pop %v3208
        %v3210 = vmul.f32 %v3117, 1.442695
        %v3211 = vpow.pop %v3210
        %v3212 = vmul.f32 %v3118, 1.442695
        %v3213 = vpow.pop %v3212
        %v3214 = vmul.f32 %v3119, 1.442695
        %v3215 = vpow.pop %v3214
        %v3216 = vmul.f32 %v3120, 1.442695
        %v3217 = vpow.pop %v3216
        %v3218 = vmul.f32 %v3121, 1.442695
        %v3219 = vpow.pop %v3218
        %v3220 = vmul.f32 %v3122, 1.442695
        %v3221 = vpow.pop %v3220
        %v3222 = vmul.f32 %v3123, 1.442695
        %v3223 = vpow.pop %v3222
        %v3224 = vmul.f32 %v3124, 1.442695
        %v3225 = vpow.pop %v3224
        %v3226 = vmul.f32 %v3125, 1.442695
        %v3227 = vpow.pop %v3226
        %v3228 = vmul.f32 %v3126, 1.442695
        %v3229 = vpow.pop %v3228
        %v3230 = vmul.f32 %v3127, 1.442695
        %v3231 = vpow.pop %v3230
        %v3232 = vmul.f32 %v3128, 1.442695
        %v3233 = vpow.pop %v3232
        %v3234 = vmul.f32 %v3129, 1.442695
        %v3235 = vpow.pop %v3234
        %v3236 = vmul.f32 %v3130, 1.442695
        %v3237 = vpow.pop %v3236
        %v3238 = vmul.f32 %v3131, 1.442695
        %v3239 = vpow.pop %v3238
        %v3240 = vmul.f32 %v3132, 1.442695
        %v3241 = vpow.pop %v3240
        %v3242 = vmul.f32 %v3133, 1.442695
        %v3243 = vpow.pop %v3242
        %v3244 = vmul.f32 %v3134, 1.442695
        %v3245 = vpow.pop %v3244
        %v3246 = vmul.f32 %v3135, 1.442695
        %v3247 = vpow.pop %v3246
        %v3248 = vmul.f32 %v3136, 1.442695
        %v3249 = vpow.pop %v3248
        %v3250 = vmul.f32 %v3137, 1.442695
        %v3251 = vpow.pop %v3250
        %v3252 = vmul.f32 %v3138, 1.442695
        %v3253 = vpow.pop %v3252
        %v3254 = vmul.f32 %v3139, 1.442695
        %v3255 = vpow.pop %v3254
        %v3256 = vmul.f32 %v3140, 1.442695
        %v3257 = vpow.pop %v3256
        %v3258 = vmul.f32 %v3141, 1.442695
        %v3259 = vpow.pop %v3258
        %v3260 = vmul.f32 %v3142, 1.442695
        %v3261 = vpow.pop %v3260
        %v3262 = vmul.f32 %v3143, 1.442695
        %v3263 = vpow.pop %v3262
        %v3264 = vmul.f32 %v3144, 1.442695
        %v3265 = vpow.pop %v3264
        %v3266 = vmul.f32 %v3145, 1.442695
        %v3267 = vpow.pop %v3266
        %v3268 = vmul.f32 %v3146, 1.442695
        %v3269 = vpow.pop %v3268
        %v3270 = vmul.f32 %v3147, 1.442695
        %v3271 = vpow.pop %v3270
        %v3272 = vmul.f32 %v3148, 1.442695
        %v3273 = vpow.pop %v3272
        %v3274 = vmul.f32 %v3149, 1.442695
        %v3275 = vpow.pop %v3274
        %v3276 = vmul.f32 %v3150, 1.442695
        %v3277 = vpow.pop %v3276
        %v3278 = vmul.f32 %v3151, 1.442695
        %v3279 = vpow.pop %v3278
        %v3280 = vmul.f32 %v3025, 0.0
        %v3281 = vmul.f32 %v3027, 0.0
        %v3282 = vmul.f32 %v3029, 0.0
        %v3283 = vmul.f32 %v3031, 0.0
        %v3284 = vmul.f32 %v3033, 0.0
        %v3285 = vmul.f32 %v3035, 0.0
        %v3286 = vmul.f32 %v3037, 0.0
        %v3287 = vmul.f32 %v3039, 0.0
        %v3288 = vmul.f32 %v3041, 0.0
        %v3289 = vmul.f32 %v3043, 0.0
        %v3290 = vmul.f32 %v3045, 0.0
        %v3291 = vmul.f32 %v3047, 0.0
        %v3292 = vmul.f32 %v3049, 0.0
        %v3293 = vmul.f32 %v3051, 0.0
        %v3294 = vmul.f32 %v3053, 0.0
        %v3295 = vmul.f32 %v3055, 0.0
        %v3296 = vmul.f32 %v3057, 0.0
        %v3297 = vmul.f32 %v3059, 0.0
        %v3298 = vmul.f32 %v3061, 0.0
        %v3299 = vmul.f32 %v3063, 0.0
        %v3300 = vmul.f32 %v3065, 0.0
        %v3301 = vmul.f32 %v3067, 0.0
        %v3302 = vmul.f32 %v3069, 0.0
        %v3303 = vmul.f32 %v3071, 0.0
        %v3304 = vmul.f32 %v3073, 0.0
        %v3305 = vmul.f32 %v3075, 0.0
        %v3306 = vmul.f32 %v3077, 0.0
        %v3307 = vmul.f32 %v3079, 0.0
        %v3308 = vmul.f32 %v3081, 0.0
        %v3309 = vmul.f32 %v3083, 0.0
        %v3310 = vmul.f32 %v3085, 0.0
        %v3311 = vmul.f32 %v3087, 0.0
        %v3312 = vadd.f32 %v3153, %v3155
        %3313 = vadd.xlane.f32.xlu0 %v3312
        %v3314 = vpop.xlane.xlu0 %3313
        %v3315 = vadd.f32 %v3157, %v3159
        %3316 = vadd.xlane.f32.xlu0 %v3315
        %v3317 = vpop.xlane.xlu0 %3316
        %v3318 = vadd.f32 %v3161, %v3163
        %3319 = vadd.xlane.f32.xlu0 %v3318
        %v3320 = vpop.xlane.xlu0 %3319
        %v3321 = vadd.f32 %v3165, %v3167
        %3322 = vadd.xlane.f32.xlu0 %v3321
        %v3323 = vpop.xlane.xlu0 %3322
        %v3324 = vadd.f32 %v3169, %v3171
        %3325 = vadd.xlane.f32.xlu0 %v3324
        %v3326 = vpop.xlane.xlu0 %3325
        %v3327 = vadd.f32 %v3173, %v3175
        %3328 = vadd.xlane.f32.xlu0 %v3327
        %v3329 = vpop.xlane.xlu0 %3328
        %v3330 = vadd.f32 %v3177, %v3179
        %3331 = vadd.xlane.f32.xlu0 %v3330
        %v3332 = vpop.xlane.xlu0 %3331
        %v3333 = vadd.f32 %v3181, %v3183
        %3334 = vadd.xlane.f32.xlu0 %v3333
        %v3335 = vpop.xlane.xlu0 %3334
        %v3336 = vadd.f32 %v3185, %v3187
        %3337 = vadd.xlane.f32.xlu0 %v3336
        %v3338 = vpop.xlane.xlu0 %3337
        %v3339 = vadd.f32 %v3189, %v3191
        %3340 = vadd.xlane.f32.xlu0 %v3339
        %v3341 = vpop.xlane.xlu0 %3340
        %v3342 = vadd.f32 %v3193, %v3195
        %3343 = vadd.xlane.f32.xlu0 %v3342
        %v3344 = vpop.xlane.xlu0 %3343
        %v3345 = vadd.f32 %v3197, %v3199
        %3346 = vadd.xlane.f32.xlu0 %v3345
        %v3347 = vpop.xlane.xlu0 %3346
        %v3348 = vadd.f32 %v3201, %v3203
        %3349 = vadd.xlane.f32.xlu0 %v3348
        %v3350 = vpop.xlane.xlu0 %3349
        %v3351 = vadd.f32 %v3205, %v3207
        %3352 = vadd.xlane.f32.xlu0 %v3351
        %v3353 = vpop.xlane.xlu0 %3352
        %v3354 = vadd.f32 %v3209, %v3211
        %3355 = vadd.xlane.f32.xlu0 %v3354
        %v3356 = vpop.xlane.xlu0 %3355
        %v3357 = vadd.f32 %v3213, %v3215
        %3358 = vadd.xlane.f32.xlu0 %v3357
        %v3359 = vpop.xlane.xlu0 %3358
        %v3360 = vadd.f32 %v3217, %v3219
        %3361 = vadd.xlane.f32.xlu0 %v3360
        %v3362 = vpop.xlane.xlu0 %3361
        %v3363 = vadd.f32 %v3221, %v3223
        %3364 = vadd.xlane.f32.xlu0 %v3363
        %v3365 = vpop.xlane.xlu0 %3364
        %v3366 = vadd.f32 %v3225, %v3227
        %3367 = vadd.xlane.f32.xlu0 %v3366
        %v3368 = vpop.xlane.xlu0 %3367
        %v3369 = vadd.f32 %v3229, %v3231
        %3370 = vadd.xlane.f32.xlu0 %v3369
        %v3371 = vpop.xlane.xlu0 %3370
        %v3372 = vadd.f32 %v3233, %v3235
        %3373 = vadd.xlane.f32.xlu0 %v3372
        %v3374 = vpop.xlane.xlu0 %3373
        %v3375 = vadd.f32 %v3237, %v3239
        %3376 = vadd.xlane.f32.xlu0 %v3375
        %v3377 = vpop.xlane.xlu0 %3376
        %v3378 = vadd.f32 %v3241, %v3243
        %3379 = vadd.xlane.f32.xlu0 %v3378
        %v3380 = vpop.xlane.xlu0 %3379
        %v3381 = vadd.f32 %v3245, %v3247
        %3382 = vadd.xlane.f32.xlu0 %v3381
        %v3383 = vpop.xlane.xlu0 %3382
        %v3384 = vadd.f32 %v3249, %v3251
        %3385 = vadd.xlane.f32.xlu0 %v3384
        %v3386 = vpop.xlane.xlu0 %3385
        %v3387 = vadd.f32 %v3253, %v3255
        %3388 = vadd.xlane.f32.xlu0 %v3387
        %v3389 = vpop.xlane.xlu0 %3388
        %v3390 = vadd.f32 %v3257, %v3259
        %3391 = vadd.xlane.f32.xlu0 %v3390
        %v3392 = vpop.xlane.xlu0 %3391
        %v3393 = vadd.f32 %v3261, %v3263
        %3394 = vadd.xlane.f32.xlu0 %v3393
        %v3395 = vpop.xlane.xlu0 %3394
        %v3396 = vadd.f32 %v3265, %v3267
        %3397 = vadd.xlane.f32.xlu0 %v3396
        %v3398 = vpop.xlane.xlu0 %3397
        %v3399 = vadd.f32 %v3269, %v3271
        %3400 = vadd.xlane.f32.xlu0 %v3399
        %v3401 = vpop.xlane.xlu0 %3400
        %v3402 = vadd.f32 %v3273, %v3275
        %3403 = vadd.xlane.f32.xlu0 %v3402
        %v3404 = vpop.xlane.xlu0 %3403
        %v3405 = vadd.f32 %v3277, %v3279
        %3406 = vadd.xlane.f32.xlu0 %v3405
        %v3407 = vpop.xlane.xlu0 %3406
        %v3408 = vadd.f32 %v3280, %v3314
        %v3409 = vadd.f32 %v3281, %v3317
        %v3410 = vadd.f32 %v3282, %v3320
        %v3411 = vadd.f32 %v3283, %v3323
        %v3412 = vadd.f32 %v3284, %v3326
        %v3413 = vadd.f32 %v3285, %v3329
        %v3414 = vadd.f32 %v3286, %v3332
        %v3415 = vadd.f32 %v3287, %v3335
        %v3416 = vadd.f32 %v3288, %v3338
        %v3417 = vadd.f32 %v3289, %v3341
        %v3418 = vadd.f32 %v3290, %v3344
        %v3419 = vadd.f32 %v3291, %v3347
        %v3420 = vadd.f32 %v3292, %v3350
        %v3421 = vadd.f32 %v3293, %v3353
        %v3422 = vadd.f32 %v3294, %v3356
        %v3423 = vadd.f32 %v3295, %v3359
        %v3424 = vadd.f32 %v3296, %v3362
        %v3425 = vadd.f32 %v3297, %v3365
        %v3426 = vadd.f32 %v3298, %v3368
        %v3427 = vadd.f32 %v3299, %v3371
        %v3428 = vadd.f32 %v3300, %v3374
        %v3429 = vadd.f32 %v3301, %v3377
        %v3430 = vadd.f32 %v3302, %v3380
        %v3431 = vadd.f32 %v3303, %v3383
        %v3432 = vadd.f32 %v3304, %v3386
        %v3433 = vadd.f32 %v3305, %v3389
        %v3434 = vadd.f32 %v3306, %v3392
        %v3435 = vadd.f32 %v3307, %v3395
        %v3436 = vadd.f32 %v3308, %v3398
        %v3437 = vadd.f32 %v3309, %v3401
        %v3438 = vadd.f32 %v3310, %v3404
        %v3439 = vadd.f32 %v3311, %v3407
        %3440 = vmatprep.subr.mxu0 0.0
        %3441 = vmatpush1.msra.mxu0 %v2622
        %3442 = vmatprep.subr.mxu0 0.0
        %3443 = vmatpush1.msra.mxu0 %v2621
        %3444 = vmatprep.subr.mxu0 0.0
        %3445 = vmatpush1.msra.mxu0 %v2620
        %3446 = vmatprep.subr.mxu0 0.0
        %3447 = vmatpush1.msra.mxu0 %v2619
        %3448 = vmatprep.subr.mxu0 0.0
        %3449 = vmatpush1.msra.mxu0 %v2618
        %3450 = vmatprep.subr.mxu0 0.0
        %3451 = vmatpush1.msra.mxu0 %v2617
        %3452 = vmatprep.subr.mxu0 0.0
        %3453 = vmatpush1.msra.mxu0 %v2616
        %3454 = vmatprep.subr.mxu0 0.0
        %3455 = vmatpush1.msra.mxu0 %v2615
        %3456 = vmatprep.subr.mxu0 0.0
        %3457 = vmatpush1.msra.mxu0 %v2614
        %3458 = vmatprep.subr.mxu0 0.0
        %3459 = vmatpush1.msra.mxu0 %v2613
        %3460 = vmatprep.subr.mxu0 0.0
        %3461 = vmatpush1.msra.mxu0 %v2612
        %3462 = vmatprep.subr.mxu0 0.0
        %3463 = vmatpush1.msra.mxu0 %v2611
        %3464 = vmatprep.subr.mxu0 0.0
        %3465 = vmatpush1.msra.mxu0 %v2610
        %3466 = vmatprep.subr.mxu0 0.0
        %3467 = vmatpush1.msra.mxu0 %v2609
        %3468 = vmatprep.subr.mxu0 0.0
        %3469 = vmatpush1.msra.mxu0 %v2608
        %3470 = vmatprep.subr.mxu0 0.0
        %3471 = vmatpush1.msra.mxu0 %v2607
        %3472 = vmatprep.subr.mxu0 0.0
        %3473 = vmatpush2.msra.mxu0 %v2638
        %3474 = vmatprep.subr.mxu0 0.0
        %3475 = vmatpush2.msra.mxu0 %v2637
        %3476 = vmatprep.subr.mxu0 0.0
        %3477 = vmatpush2.msra.mxu0 %v2636
        %3478 = vmatprep.subr.mxu0 0.0
        %3479 = vmatpush2.msra.mxu0 %v2635
        %3480 = vmatprep.subr.mxu0 0.0
        %3481 = vmatpush2.msra.mxu0 %v2634
        %3482 = vmatprep.subr.mxu0 0.0
        %3483 = vmatpush2.msra.mxu0 %v2633
        %3484 = vmatprep.subr.mxu0 0.0
        %3485 = vmatpush2.msra.mxu0 %v2632
        %3486 = vmatprep.subr.mxu0 0.0
        %3487 = vmatpush2.msra.mxu0 %v2631
        %3488 = vmatprep.subr.mxu0 0.0
        %3489 = vmatpush2.msra.mxu0 %v2630
        %3490 = vmatprep.subr.mxu0 0.0
        %3491 = vmatpush2.msra.mxu0 %v2629
        %3492 = vmatprep.subr.mxu0 0.0
        %3493 = vmatpush2.msra.mxu0 %v2628
        %3494 = vmatprep.subr.mxu0 0.0
        %3495 = vmatpush2.msra.mxu0 %v2627
        %3496 = vmatprep.subr.mxu0 0.0
        %3497 = vmatpush2.msra.mxu0 %v2626
        %3498 = vmatprep.subr.mxu0 0.0
        %3499 = vmatpush2.msra.mxu0 %v2625
        %3500 = vmatprep.subr.mxu0 0.0
        %3501 = vmatpush2.msra.mxu0 %v2624
        %3502 = vmatprep.subr.mxu0 0.0
        %3503 = vmatpush2.msra.mxu0 %v2623
        %3504 = vmatprep.mubr.f32.mxu0 %v3155
        %3505 = vmatmul.mubr.f32.gmra.mxu0 %v3153
        %v3506 = vpop.f32.mrf.mxu0
        %v3507 = vadd.f32 0.0, %v3506
        %v3508 = vpop.f32.mrf.mxu0
        %3509 = vmatprep.mubr.f32.mxu0 %v3159
        %3510 = vmatmul.mubr.f32.gmra.mxu0 %v3157
        %v3511 = vpop.f32.mrf.mxu0
        %v3512 = vadd.f32 0.0, %v3511
        %v3513 = vpop.f32.mrf.mxu0
        %3514 = vmatprep.mubr.f32.mxu0 %v3163
        %3515 = vmatmul.mubr.f32.gmra.mxu0 %v3161
        %v3516 = vpop.f32.mrf.mxu0
        %v3517 = vadd.f32 0.0, %v3516
        %v3518 = vpop.f32.mrf.mxu0
        %3519 = vmatprep.mubr.f32.mxu0 %v3167
        %3520 = vmatmul.mubr.f32.gmra.mxu0 %v3165
        %v3521 = vpop.f32.mrf.mxu0
        %v3522 = vadd.f32 0.0, %v3521
        %v3523 = vpop.f32.mrf.mxu0
        %3524 = vmatprep.mubr.f32.mxu0 %v3171
        %3525 = vmatmul.mubr.f32.gmra.mxu0 %v3169
        %v3526 = vpop.f32.mrf.mxu0
        %v3527 = vadd.f32 0.0, %v3526
        %v3528 = vpop.f32.mrf.mxu0
        %3529 = vmatprep.mubr.f32.mxu0 %v3175
        %3530 = vmatmul.mubr.f32.gmra.mxu0 %v3173
        %v3531 = vpop.f32.mrf.mxu0
        %v3532 = vadd.f32 0.0, %v3531
        %v3533 = vpop.f32.mrf.mxu0
        %3534 = vmatprep.mubr.f32.mxu0 %v3179
        %3535 = vmatmul.mubr.f32.gmra.mxu0 %v3177
        %v3536 = vpop.f32.mrf.mxu0
        %v3537 = vadd.f32 0.0, %v3536
        %v3538 = vpop.f32.mrf.mxu0
        %3539 = vmatprep.mubr.f32.mxu0 %v3183
        %3540 = vmatmul.mubr.f32.gmra.mxu0 %v3181
        %v3541 = vpop.f32.mrf.mxu0
        %v3542 = vadd.f32 0.0, %v3541
        %v3543 = vpop.f32.mrf.mxu0
        %3544 = vmatprep.mubr.f32.mxu0 %v3187
        %3545 = vmatmul.mubr.f32.gmra.mxu0 %v3185
        %v3546 = vpop.f32.mrf.mxu0
        %v3547 = vadd.f32 0.0, %v3546
        %v3548 = vpop.f32.mrf.mxu0
        %3549 = vmatprep.mubr.f32.mxu0 %v3191
        %3550 = vmatmul.mubr.f32.gmra.mxu0 %v3189
        %v3551 = vpop.f32.mrf.mxu0
        %v3552 = vadd.f32 0.0, %v3551
        %v3553 = vpop.f32.mrf.mxu0
        %3554 = vmatprep.mubr.f32.mxu0 %v3195
        %3555 = vmatmul.mubr.f32.gmra.mxu0 %v3193
        %v3556 = vpop.f32.mrf.mxu0
        %v3557 = vadd.f32 0.0, %v3556
        %v3558 = vpop.f32.mrf.mxu0
        %3559 = vmatprep.mubr.f32.mxu0 %v3199
        %3560 = vmatmul.mubr.f32.gmra.mxu0 %v3197
        %v3561 = vpop.f32.mrf.mxu0
        %v3562 = vadd.f32 0.0, %v3561
        %v3563 = vpop.f32.mrf.mxu0
        %3564 = vmatprep.mubr.f32.mxu0 %v3203
        %3565 = vmatmul.mubr.f32.gmra.mxu0 %v3201
        %v3566 = vpop.f32.mrf.mxu0
        %v3567 = vadd.f32 0.0, %v3566
        %v3568 = vpop.f32.mrf.mxu0
        %3569 = vmatprep.mubr.f32.mxu0 %v3207
        %3570 = vmatmul.mubr.f32.gmra.mxu0 %v3205
        %v3571 = vpop.f32.mrf.mxu0
        %v3572 = vadd.f32 0.0, %v3571
        %v3573 = vpop.f32.mrf.mxu0
        %3574 = vmatprep.mubr.f32.mxu0 %v3211
        %3575 = vmatmul.mubr.f32.gmra.mxu0 %v3209
        %v3576 = vpop.f32.mrf.mxu0
        %v3577 = vadd.f32 0.0, %v3576
        %v3578 = vpop.f32.mrf.mxu0
        %3579 = vmatprep.mubr.f32.mxu0 %v3215
        %3580 = vmatmul.mubr.f32.gmra.mxu0 %v3213
        %v3581 = vpop.f32.mrf.mxu0
        %v3582 = vadd.f32 0.0, %v3581
        %v3583 = vpop.f32.mrf.mxu0
        %3584 = vmatprep.mubr.f32.mxu0 %v3219
        %3585 = vmatmul.mubr.f32.gmra.mxu0 %v3217
        %v3586 = vpop.f32.mrf.mxu0
        %v3587 = vadd.f32 0.0, %v3586
        %v3588 = vpop.f32.mrf.mxu0
        %3589 = vmatprep.mubr.f32.mxu0 %v3223
        %3590 = vmatmul.mubr.f32.gmra.mxu0 %v3221
        %v3591 = vpop.f32.mrf.mxu0
        %v3592 = vadd.f32 0.0, %v3591
        %v3593 = vpop.f32.mrf.mxu0
        %3594 = vmatprep.mubr.f32.mxu0 %v3227
        %3595 = vmatmul.mubr.f32.gmra.mxu0 %v3225
        %v3596 = vpop.f32.mrf.mxu0
        %v3597 = vadd.f32 0.0, %v3596
        %v3598 = vpop.f32.mrf.mxu0
        %3599 = vmatprep.mubr.f32.mxu0 %v3231
        %3600 = vmatmul.mubr.f32.gmra.mxu0 %v3229
        %v3601 = vpop.f32.mrf.mxu0
        %v3602 = vadd.f32 0.0, %v3601
        %v3603 = vpop.f32.mrf.mxu0
        %3604 = vmatprep.mubr.f32.mxu0 %v3235
        %3605 = vmatmul.mubr.f32.gmra.mxu0 %v3233
        %v3606 = vpop.f32.mrf.mxu0
        %v3607 = vadd.f32 0.0, %v3606
        %v3608 = vpop.f32.mrf.mxu0
        %3609 = vmatprep.mubr.f32.mxu0 %v3239
        %3610 = vmatmul.mubr.f32.gmra.mxu0 %v3237
        %v3611 = vpop.f32.mrf.mxu0
        %v3612 = vadd.f32 0.0, %v3611
        %v3613 = vpop.f32.mrf.mxu0
        %3614 = vmatprep.mubr.f32.mxu0 %v3243
        %3615 = vmatmul.mubr.f32.gmra.mxu0 %v3241
        %v3616 = vpop.f32.mrf.mxu0
        %v3617 = vadd.f32 0.0, %v3616
        %v3618 = vpop.f32.mrf.mxu0
        %3619 = vmatprep.mubr.f32.mxu0 %v3247
        %3620 = vmatmul.mubr.f32.gmra.mxu0 %v3245
        %v3621 = vpop.f32.mrf.mxu0
        %v3622 = vadd.f32 0.0, %v3621
        %v3623 = vpop.f32.mrf.mxu0
        %3624 = vmatprep.mubr.f32.mxu0 %v3251
        %3625 = vmatmul.mubr.f32.gmra.mxu0 %v3249
        %v3626 = vpop.f32.mrf.mxu0
        %v3627 = vadd.f32 0.0, %v3626
        %v3628 = vpop.f32.mrf.mxu0
        %3629 = vmatprep.mubr.f32.mxu0 %v3255
        %3630 = vmatmul.mubr.f32.gmra.mxu0 %v3253
        %v3631 = vpop.f32.mrf.mxu0
        %v3632 = vadd.f32 0.0, %v3631
        %v3633 = vpop.f32.mrf.mxu0
        %3634 = vmatprep.mubr.f32.mxu0 %v3259
        %3635 = vmatmul.mubr.f32.gmra.mxu0 %v3257
        %v3636 = vpop.f32.mrf.mxu0
        %v3637 = vadd.f32 0.0, %v3636
        %v3638 = vpop.f32.mrf.mxu0
        %3639 = vmatprep.mubr.f32.mxu0 %v3263
        %3640 = vmatmul.mubr.f32.gmra.mxu0 %v3261
        %v3641 = vpop.f32.mrf.mxu0
        %v3642 = vadd.f32 0.0, %v3641
        %v3643 = vpop.f32.mrf.mxu0
        %3644 = vmatprep.mubr.f32.mxu0 %v3267
        %3645 = vmatmul.mubr.f32.gmra.mxu0 %v3265
        %v3646 = vpop.f32.mrf.mxu0
        %v3647 = vadd.f32 0.0, %v3646
        %v3648 = vpop.f32.mrf.mxu0
        %3649 = vmatprep.mubr.f32.mxu0 %v3271
        %3650 = vmatmul.mubr.f32.gmra.mxu0 %v3269
        %v3651 = vpop.f32.mrf.mxu0
        %v3652 = vadd.f32 0.0, %v3651
        %v3653 = vpop.f32.mrf.mxu0
        %3654 = vmatprep.mubr.f32.mxu0 %v3275
        %3655 = vmatmul.mubr.f32.gmra.mxu0 %v3273
        %v3656 = vpop.f32.mrf.mxu0
        %v3657 = vadd.f32 0.0, %v3656
        %v3658 = vpop.f32.mrf.mxu0
        %3659 = vmatprep.mubr.f32.mxu0 %v3279
        %3660 = vmatmul.mubr.f32.gmra.mxu0 %v3277
        %v3661 = vpop.f32.mrf.mxu0
        %v3662 = vadd.f32 0.0, %v3661
        %v3663 = vpop.f32.mrf.mxu0
        %3664 = vdwg.mxu0
        %v3665 = vadd.f32 %v3280, %v3507
        %v3666 = vadd.f32 %v3281, %v3512
        %v3667 = vadd.f32 %v3282, %v3517
        %v3668 = vadd.f32 %v3283, %v3522
        %v3669 = vadd.f32 %v3284, %v3527
        %v3670 = vadd.f32 %v3285, %v3532
        %v3671 = vadd.f32 %v3286, %v3537
        %v3672 = vadd.f32 %v3287, %v3542
        %v3673 = vadd.f32 %v3288, %v3547
        %v3674 = vadd.f32 %v3289, %v3552
        %v3675 = vadd.f32 %v3290, %v3557
        %v3676 = vadd.f32 %v3291, %v3562
        %v3677 = vadd.f32 %v3292, %v3567
        %v3678 = vadd.f32 %v3293, %v3572
        %v3679 = vadd.f32 %v3294, %v3577
        %v3680 = vadd.f32 %v3295, %v3582
        %v3681 = vadd.f32 %v3296, %v3587
        %v3682 = vadd.f32 %v3297, %v3592
        %v3683 = vadd.f32 %v3298, %v3597
        %v3684 = vadd.f32 %v3299, %v3602
        %v3685 = vadd.f32 %v3300, %v3607
        %v3686 = vadd.f32 %v3301, %v3612
        %v3687 = vadd.f32 %v3302, %v3617
        %v3688 = vadd.f32 %v3303, %v3622
        %v3689 = vadd.f32 %v3304, %v3627
        %v3690 = vadd.f32 %v3305, %v3632
        %v3691 = vadd.f32 %v3306, %v3637
        %v3692 = vadd.f32 %v3307, %v3642
        %v3693 = vadd.f32 %v3308, %v3647
        %v3694 = vadd.f32 %v3309, %v3652
        %v3695 = vadd.f32 %v3310, %v3657
        %v3696 = vadd.f32 %v3311, %v3662
        %v3697 = vrcp.pop %v3408
        %v3698 = vmul.f32 %v3665, %v3697
        %v3699 = vrcp.pop %v3409
        %v3700 = vmul.f32 %v3666, %v3699
        %v3701 = vrcp.pop %v3410
        %v3702 = vmul.f32 %v3667, %v3701
        %v3703 = vrcp.pop %v3411
        %v3704 = vmul.f32 %v3668, %v3703
        %v3705 = vrcp.pop %v3412
        %v3706 = vmul.f32 %v3669, %v3705
        %v3707 = vrcp.pop %v3413
        %v3708 = vmul.f32 %v3670, %v3707
        %v3709 = vrcp.pop %v3414
        %v3710 = vmul.f32 %v3671, %v3709
        %v3711 = vrcp.pop %v3415
        %v3712 = vmul.f32 %v3672, %v3711
        %v3713 = vrcp.pop %v3416
        %v3714 = vmul.f32 %v3673, %v3713
        %v3715 = vrcp.pop %v3417
        %v3716 = vmul.f32 %v3674, %v3715
        %v3717 = vrcp.pop %v3418
        %v3718 = vmul.f32 %v3675, %v3717
        %v3719 = vrcp.pop %v3419
        %v3720 = vmul.f32 %v3676, %v3719
        %v3721 = vrcp.pop %v3420
        %v3722 = vmul.f32 %v3677, %v3721
        %v3723 = vrcp.pop %v3421
        %v3724 = vmul.f32 %v3678, %v3723
        %v3725 = vrcp.pop %v3422
        %v3726 = vmul.f32 %v3679, %v3725
        %v3727 = vrcp.pop %v3423
        %v3728 = vmul.f32 %v3680, %v3727
        %v3729 = vrcp.pop %v3424
        %v3730 = vmul.f32 %v3681, %v3729
        %v3731 = vrcp.pop %v3425
        %v3732 = vmul.f32 %v3682, %v3731
        %v3733 = vrcp.pop %v3426
        %v3734 = vmul.f32 %v3683, %v3733
        %v3735 = vrcp.pop %v3427
        %v3736 = vmul.f32 %v3684, %v3735
        %v3737 = vrcp.pop %v3428
        %v3738 = vmul.f32 %v3685, %v3737
        %v3739 = vrcp.pop %v3429
        %v3740 = vmul.f32 %v3686, %v3739
        %v3741 = vrcp.pop %v3430
        %v3742 = vmul.f32 %v3687, %v3741
        %v3743 = vrcp.pop %v3431
        %v3744 = vmul.f32 %v3688, %v3743
        %v3745 = vrcp.pop %v3432
        %v3746 = vmul.f32 %v3689, %v3745
        %v3747 = vrcp.pop %v3433
        %v3748 = vmul.f32 %v3690, %v3747
        %v3749 = vrcp.pop %v3434
        %v3750 = vmul.f32 %v3691, %v3749
        %v3751 = vrcp.pop %v3435
        %v3752 = vmul.f32 %v3692, %v3751
        %v3753 = vrcp.pop %v3436
        %v3754 = vmul.f32 %v3693, %v3753
        %v3755 = vrcp.pop %v3437
        %v3756 = vmul.f32 %v3694, %v3755
        %v3757 = vrcp.pop %v3438
        %v3758 = vmul.f32 %v3695, %v3757
        %v3759 = vrcp.pop %v3439
        %v3760 = vmul.f32 %v3696, %v3759
        %v3761 = vld [vmem:[#allocation11] sm:$0xff]
        %v3762 = vld [vmem:[#allocation11 + $0x8] sm:$0xff]
        %v3763 = vld [vmem:[#allocation11 + $0x10] sm:$0xff]
        %v3764 = vld [vmem:[#allocation11 + $0x18] sm:$0xff]
        %v3765 = vld [vmem:[#allocation11 + $0x20] sm:$0xff]
        %v3766 = vld [vmem:[#allocation11 + $0x28] sm:$0xff]
        %v3767 = vld [vmem:[#allocation11 + $0x30] sm:$0xff]
        %v3768 = vld [vmem:[#allocation11 + $0x38] sm:$0xff]
        %v3769 = vld [vmem:[#allocation11 + $0x40] sm:$0xff]
        %v3770 = vld [vmem:[#allocation11 + $0x48] sm:$0xff]
        %v3771 = vld [vmem:[#allocation11 + $0x50] sm:$0xff]
        %v3772 = vld [vmem:[#allocation11 + $0x58] sm:$0xff]
        %v3773 = vld [vmem:[#allocation11 + $0x60] sm:$0xff]
        %v3774 = vld [vmem:[#allocation11 + $0x68] sm:$0xff]
        %v3775 = vld [vmem:[#allocation11 + $0x70] sm:$0xff]
        %v3776 = vld [vmem:[#allocation11 + $0x78] sm:$0xff]
        %v3777 = vld [vmem:[%s9] sm:$0x1]
        %v3779 = vlaneseq
        %v3780 = vshrl.u32 %v3779, 7
        %v3781 = vsub.s32 0, %v3780
        %v3782 = vrot.slane %v3777, %v3781
        %3784 = vmatprep.subr.mxu0 0.0
        %3785 = vmatpush1.msra.mxu0 %v3776
        %3786 = vmatprep.subr.mxu0 0.0
        %3787 = vmatpush1.msra.mxu0 %v3775
        %3788 = vmatprep.subr.mxu0 0.0
        %3789 = vmatpush1.msra.mxu0 %v3774
        %3790 = vmatprep.subr.mxu0 0.0
        %3791 = vmatpush1.msra.mxu0 %v3773
        %3792 = vmatprep.subr.mxu0 0.0
        %3793 = vmatpush1.msra.mxu0 %v3772
        %3794 = vmatprep.subr.mxu0 0.0
        %3795 = vmatpush1.msra.mxu0 %v3771
        %3796 = vmatprep.subr.mxu0 0.0
        %3797 = vmatpush1.msra.mxu0 %v3770
        %3798 = vmatprep.subr.mxu0 0.0
        %3799 = vmatpush1.msra.mxu0 %v3769
        %3800 = vmatprep.subr.mxu0 0.0
        %3801 = vmatpush1.msra.mxu0 %v3768
        %3802 = vmatprep.subr.mxu0 0.0
        %3803 = vmatpush1.msra.mxu0 %v3767
        %3804 = vmatprep.subr.mxu0 0.0
        %3805 = vmatpush1.msra.mxu0 %v3766
        %3806 = vmatprep.subr.mxu0 0.0
        %3807 = vmatpush1.msra.mxu0 %v3765
        %3808 = vmatprep.subr.mxu0 0.0
        %3809 = vmatpush1.msra.mxu0 %v3764
        %3810 = vmatprep.subr.mxu0 0.0
        %3811 = vmatpush1.msra.mxu0 %v3763
        %3812 = vmatprep.subr.mxu0 0.0
        %3813 = vmatpush1.msra.mxu0 %v3762
        %3814 = vmatprep.subr.mxu0 0.0
        %3815 = vmatpush1.msra.mxu0 %v3761
        %3816 = vmatprep.subr.mxu0 0.0
        %3817 = vmatpush2.msra.mxu0 0.0
        %3818 = vmatprep.subr.mxu0 0.0
        %3819 = vmatpush2.msra.mxu0 0.0
        %3820 = vmatprep.subr.mxu0 0.0
        %3821 = vmatpush2.msra.mxu0 0.0
        %3822 = vmatprep.subr.mxu0 0.0
        %3823 = vmatpush2.msra.mxu0 0.0
        %3824 = vmatprep.subr.mxu0 0.0
        %3825 = vmatpush2.msra.mxu0 0.0
        %3826 = vmatprep.subr.mxu0 0.0
        %3827 = vmatpush2.msra.mxu0 0.0
        %3828 = vmatprep.subr.mxu0 0.0
        %3829 = vmatpush2.msra.mxu0 0.0
        %3830 = vmatprep.subr.mxu0 0.0
        %3831 = vmatpush2.msra.mxu0 0.0
        %3832 = vmatprep.subr.mxu0 0.0
        %3833 = vmatpush2.msra.mxu0 0.0
        %3834 = vmatprep.subr.mxu0 0.0
        %3835 = vmatpush2.msra.mxu0 0.0
        %3836 = vmatprep.subr.mxu0 0.0
        %3837 = vmatpush2.msra.mxu0 0.0
        %3838 = vmatprep.subr.mxu0 0.0
        %3839 = vmatpush2.msra.mxu0 0.0
        %3840 = vmatprep.subr.mxu0 0.0
        %3841 = vmatpush2.msra.mxu0 0.0
        %3842 = vmatprep.subr.mxu0 0.0
        %3843 = vmatpush2.msra.mxu0 0.0
        %3844 = vmatprep.subr.mxu0 0.0
        %3845 = vmatpush2.msra.mxu0 0.0
        %3846 = vmatprep.subr.mxu0 0.0
        %3847 = vmatpush2.msra.mxu0 0.0
        %3848 = vmatprep.mubr.f32.mxu0 0.0
        %3849 = vmatmul.mubr.f32.gmra.mxu0 %v2512
        %v3850 = vpop.f32.mrf.mxu0
        %v3851 = vadd.f32 %v3782, %v3850
        %v3852 = vpop.f32.mrf.mxu0
        %3853 = vmatprep.mubr.f32.mxu0 0.0
        %3854 = vmatmul.mubr.f32.gmra.mxu0 %v2514
        %v3855 = vpop.f32.mrf.mxu0
        %v3856 = vadd.f32 %v3782, %v3855
        %v3857 = vpop.f32.mrf.mxu0
        %3858 = vmatprep.mubr.f32.mxu0 0.0
        %3859 = vmatmul.mubr.f32.gmra.mxu0 %v2516
        %v3860 = vpop.f32.mrf.mxu0
        %v3861 = vadd.f32 %v3782, %v3860
        %v3862 = vpop.f32.mrf.mxu0
        %3863 = vmatprep.mubr.f32.mxu0 0.0
        %3864 = vmatmul.mubr.f32.gmra.mxu0 %v2518
        %v3865 = vpop.f32.mrf.mxu0
        %v3866 = vadd.f32 %v3782, %v3865
        %v3867 = vpop.f32.mrf.mxu0
        %3868 = vmatprep.mubr.f32.mxu0 0.0
        %3869 = vmatmul.mubr.f32.gmra.mxu0 %v2520
        %v3870 = vpop.f32.mrf.mxu0
        %v3871 = vadd.f32 %v3782, %v3870
        %v3872 = vpop.f32.mrf.mxu0
        %3873 = vmatprep.mubr.f32.mxu0 0.0
        %3874 = vmatmul.mubr.f32.gmra.mxu0 %v2522
        %v3875 = vpop.f32.mrf.mxu0
        %v3876 = vadd.f32 %v3782, %v3875
        %v3877 = vpop.f32.mrf.mxu0
        %3878 = vmatprep.mubr.f32.mxu0 0.0
        %3879 = vmatmul.mubr.f32.gmra.mxu0 %v2524
        %v3880 = vpop.f32.mrf.mxu0
        %v3881 = vadd.f32 %v3782, %v3880
        %v3882 = vpop.f32.mrf.mxu0
        %3883 = vmatprep.mubr.f32.mxu0 0.0
        %3884 = vmatmul.mubr.f32.gmra.mxu0 %v2526
        %v3885 = vpop.f32.mrf.mxu0
        %v3886 = vadd.f32 %v3782, %v3885
        %v3887 = vpop.f32.mrf.mxu0
        %3888 = vmatprep.mubr.f32.mxu0 0.0
        %3889 = vmatmul.mubr.f32.gmra.mxu0 %v2528
        %v3890 = vpop.f32.mrf.mxu0
        %v3891 = vadd.f32 %v3782, %v3890
        %v3892 = vpop.f32.mrf.mxu0
        %3893 = vmatprep.mubr.f32.mxu0 0.0
        %3894 = vmatmul.mubr.f32.gmra.mxu0 %v2530
        %v3895 = vpop.f32.mrf.mxu0
        %v3896 = vadd.f32 %v3782, %v3895
        %v3897 = vpop.f32.mrf.mxu0
        %3898 = vmatprep.mubr.f32.mxu0 0.0
        %3899 = vmatmul.mubr.f32.gmra.mxu0 %v2532
        %v3900 = vpop.f32.mrf.mxu0
        %v3901 = vadd.f32 %v3782, %v3900
        %v3902 = vpop.f32.mrf.mxu0
        %3903 = vmatprep.mubr.f32.mxu0 0.0
        %3904 = vmatmul.mubr.f32.gmra.mxu0 %v2534
        %v3905 = vpop.f32.mrf.mxu0
        %v3906 = vadd.f32 %v3782, %v3905
        %v3907 = vpop.f32.mrf.mxu0
        %3908 = vmatprep.mubr.f32.mxu0 0.0
        %3909 = vmatmul.mubr.f32.gmra.mxu0 %v2536
        %v3910 = vpop.f32.mrf.mxu0
        %v3911 = vadd.f32 %v3782, %v3910
        %v3912 = vpop.f32.mrf.mxu0
        %3913 = vmatprep.mubr.f32.mxu0 0.0
        %3914 = vmatmul.mubr.f32.gmra.mxu0 %v2538
        %v3915 = vpop.f32.mrf.mxu0
        %v3916 = vadd.f32 %v3782, %v3915
        %v3917 = vpop.f32.mrf.mxu0
        %3918 = vmatprep.mubr.f32.mxu0 0.0
        %3919 = vmatmul.mubr.f32.gmra.mxu0 %v2540
        %v3920 = vpop.f32.mrf.mxu0
        %v3921 = vadd.f32 %v3782, %v3920
        %v3922 = vpop.f32.mrf.mxu0
        %3923 = vmatprep.mubr.f32.mxu0 0.0
        %3924 = vmatmul.mubr.f32.gmra.mxu0 %v2542
        %v3925 = vpop.f32.mrf.mxu0
        %v3926 = vadd.f32 %v3782, %v3925
        %v3927 = vpop.f32.mrf.mxu0
        %3928 = vmatprep.mubr.f32.mxu0 0.0
        %3929 = vmatmul.mubr.f32.gmra.mxu0 %v2544
        %v3930 = vpop.f32.mrf.mxu0
        %v3931 = vadd.f32 %v3782, %v3930
        %v3932 = vpop.f32.mrf.mxu0
        %3933 = vmatprep.mubr.f32.mxu0 0.0
        %3934 = vmatmul.mubr.f32.gmra.mxu0 %v2546
        %v3935 = vpop.f32.mrf.mxu0
        %v3936 = vadd.f32 %v3782, %v3935
        %v3937 = vpop.f32.mrf.mxu0
        %3938 = vmatprep.mubr.f32.mxu0 0.0
        %3939 = vmatmul.mubr.f32.gmra.mxu0 %v2548
        %v3940 = vpop.f32.mrf.mxu0
        %v3941 = vadd.f32 %v3782, %v3940
        %v3942 = vpop.f32.mrf.mxu0
        %3943 = vmatprep.mubr.f32.mxu0 0.0
        %3944 = vmatmul.mubr.f32.gmra.mxu0 %v2550
        %v3945 = vpop.f32.mrf.mxu0
        %v3946 = vadd.f32 %v3782, %v3945
        %v3947 = vpop.f32.mrf.mxu0
        %3948 = vmatprep.mubr.f32.mxu0 0.0
        %3949 = vmatmul.mubr.f32.gmra.mxu0 %v2552
        %v3950 = vpop.f32.mrf.mxu0
        %v3951 = vadd.f32 %v3782, %v3950
        %v3952 = vpop.f32.mrf.mxu0
        %3953 = vmatprep.mubr.f32.mxu0 0.0
        %3954 = vmatmul.mubr.f32.gmra.mxu0 %v2554
        %v3955 = vpop.f32.mrf.mxu0
        %v3956 = vadd.f32 %v3782, %v3955
        %v3957 = vpop.f32.mrf.mxu0
        %3958 = vmatprep.mubr.f32.mxu0 0.0
        %3959 = vmatmul.mubr.f32.gmra.mxu0 %v2556
        %v3960 = vpop.f32.mrf.mxu0
        %v3961 = vadd.f32 %v3782, %v3960
        %v3962 = vpop.f32.mrf.mxu0
        %3963 = vmatprep.mubr.f32.mxu0 0.0
        %3964 = vmatmul.mubr.f32.gmra.mxu0 %v2558
        %v3965 = vpop.f32.mrf.mxu0
        %v3966 = vadd.f32 %v3782, %v3965
        %v3967 = vpop.f32.mrf.mxu0
        %3968 = vmatprep.mubr.f32.mxu0 0.0
        %3969 = vmatmul.mubr.f32.gmra.mxu0 %v2560
        %v3970 = vpop.f32.mrf.mxu0
        %v3971 = vadd.f32 %v3782, %v3970
        %v3972 = vpop.f32.mrf.mxu0
        %3973 = vmatprep.mubr.f32.mxu0 0.0
        %3974 = vmatmul.mubr.f32.gmra.mxu0 %v2562
        %v3975 = vpop.f32.mrf.mxu0
        %v3976 = vadd.f32 %v3782, %v3975
        %v3977 = vpop.f32.mrf.mxu0
        %3978 = vmatprep.mubr.f32.mxu0 0.0
        %3979 = vmatmul.mubr.f32.gmra.mxu0 %v2564
        %v3980 = vpop.f32.mrf.mxu0
        %v3981 = vadd.f32 %v3782, %v3980
        %v3982 = vpop.f32.mrf.mxu0
        %3983 = vmatprep.mubr.f32.mxu0 0.0
        %3984 = vmatmul.mubr.f32.gmra.mxu0 %v2566
        %v3985 = vpop.f32.mrf.mxu0
        %v3986 = vadd.f32 %v3782, %v3985
        %v3987 = vpop.f32.mrf.mxu0
        %3988 = vmatprep.mubr.f32.mxu0 0.0
        %3989 = vmatmul.mubr.f32.gmra.mxu0 %v2568
        %v3990 = vpop.f32.mrf.mxu0
        %v3991 = vadd.f32 %v3782, %v3990
        %v3992 = vpop.f32.mrf.mxu0
        %3993 = vmatprep.mubr.f32.mxu0 0.0
        %3994 = vmatmul.mubr.f32.gmra.mxu0 %v2570
        %v3995 = vpop.f32.mrf.mxu0
        %v3996 = vadd.f32 %v3782, %v3995
        %v3997 = vpop.f32.mrf.mxu0
        %3998 = vmatprep.mubr.f32.mxu0 0.0
        %3999 = vmatmul.mubr.f32.gmra.mxu0 %v2572
        %v4000 = vpop.f32.mrf.mxu0
        %v4001 = vadd.f32 %v3782, %v4000
        %v4002 = vpop.f32.mrf.mxu0
        %4003 = vmatprep.mubr.f32.mxu0 0.0
        %4004 = vmatmul.mubr.f32.gmra.mxu0 %v2574
        %v4005 = vpop.f32.mrf.mxu0
        %v4006 = vadd.f32 %v3782, %v4005
        %v4007 = vpop.f32.mrf.mxu0
        %4008 = vdwg.mxu0
        %v4009 = vld [vmem:[%s397] sm:$0xff]
        %v4010 = vld [vmem:[%s397 + $0x8] sm:$0xff]
        %v4011 = vld [vmem:[%s397 + $0x10] sm:$0xff]
        %v4012 = vld [vmem:[%s397 + $0x18] sm:$0xff]
        %v4013 = vld [vmem:[%s397 + $0x20] sm:$0xff]
        %v4014 = vld [vmem:[%s397 + $0x28] sm:$0xff]
        %v4015 = vld [vmem:[%s397 + $0x30] sm:$0xff]
        %v4016 = vld [vmem:[%s397 + $0x38] sm:$0xff]
        %v4017 = vld [vmem:[%s397 + $0x40] sm:$0xff]
        %v4018 = vld [vmem:[%s397 + $0x48] sm:$0xff]
        %v4019 = vld [vmem:[%s397 + $0x50] sm:$0xff]
        %v4020 = vld [vmem:[%s397 + $0x58] sm:$0xff]
        %v4021 = vld [vmem:[%s397 + $0x60] sm:$0xff]
        %v4022 = vld [vmem:[%s397 + $0x68] sm:$0xff]
        %v4023 = vld [vmem:[%s397 + $0x70] sm:$0xff]
        %v4024 = vld [vmem:[%s397 + $0x78] sm:$0xff]
        %v4025 = vld [vmem:[%s397 + $0x80] sm:$0xff]
        %v4026 = vld [vmem:[%s397 + $0x88] sm:$0xff]
        %v4027 = vld [vmem:[%s397 + $0x90] sm:$0xff]
        %v4028 = vld [vmem:[%s397 + $0x98] sm:$0xff]
        %v4029 = vld [vmem:[%s397 + $0xa0] sm:$0xff]
        %v4030 = vld [vmem:[%s397 + $0xa8] sm:$0xff]
        %v4031 = vld [vmem:[%s397 + $0xb0] sm:$0xff]
        %v4032 = vld [vmem:[%s397 + $0xb8] sm:$0xff]
        %v4033 = vld [vmem:[%s397 + $0xc0] sm:$0xff]
        %v4034 = vld [vmem:[%s397 + $0xc8] sm:$0xff]
        %v4035 = vld [vmem:[%s397 + $0xd0] sm:$0xff]
        %v4036 = vld [vmem:[%s397 + $0xd8] sm:$0xff]
        %v4037 = vld [vmem:[%s397 + $0xe0] sm:$0xff]
        %v4038 = vld [vmem:[%s397 + $0xe8] sm:$0xff]
        %v4039 = vld [vmem:[%s397 + $0xf0] sm:$0xff]
        %v4040 = vld [vmem:[%s397 + $0xf8] sm:$0xff]
        %v4041 = vadd.f32 %v3851, %v4009
        %v4042 = vadd.f32 %v3856, %v4010
        %v4043 = vadd.f32 %v3861, %v4011
        %v4044 = vadd.f32 %v3866, %v4012
        %v4045 = vadd.f32 %v3871, %v4013
        %v4046 = vadd.f32 %v3876, %v4014
        %v4047 = vadd.f32 %v3881, %v4015
        %v4048 = vadd.f32 %v3886, %v4016
        %v4049 = vadd.f32 %v3891, %v4017
        %v4050 = vadd.f32 %v3896, %v4018
        %v4051 = vadd.f32 %v3901, %v4019
        %v4052 = vadd.f32 %v3906, %v4020
        %v4053 = vadd.f32 %v3911, %v4021
        %v4054 = vadd.f32 %v3916, %v4022
        %v4055 = vadd.f32 %v3921, %v4023
        %v4056 = vadd.f32 %v3926, %v4024
        %v4057 = vadd.f32 %v3931, %v4025
        %v4058 = vadd.f32 %v3936, %v4026
        %v4059 = vadd.f32 %v3941, %v4027
        %v4060 = vadd.f32 %v3946, %v4028
        %v4061 = vadd.f32 %v3951, %v4029
        %v4062 = vadd.f32 %v3956, %v4030
        %v4063 = vadd.f32 %v3961, %v4031
        %v4064 = vadd.f32 %v3966, %v4032
        %v4065 = vadd.f32 %v3971, %v4033
        %v4066 = vadd.f32 %v3976, %v4034
        %v4067 = vadd.f32 %v3981, %v4035
        %v4068 = vadd.f32 %v3986, %v4036
        %v4069 = vadd.f32 %v3991, %v4037
        %v4070 = vadd.f32 %v3996, %v4038
        %v4071 = vadd.f32 %v4001, %v4039
        %v4072 = vadd.f32 %v4006, %v4040
        %4073 = vst [vmem:[%s451] sm:$0xff] %v4041
        %4074 = vst [vmem:[%s451 + $0x8] sm:$0xff] %v4042
        %4075 = vst [vmem:[%s451 + $0x10] sm:$0xff] %v4043
        %4076 = vst [vmem:[%s451 + $0x18] sm:$0xff] %v4044
        %4077 = vst [vmem:[%s451 + $0x20] sm:$0xff] %v4045
        %4078 = vst [vmem:[%s451 + $0x28] sm:$0xff] %v4046
        %4079 = vst [vmem:[%s451 + $0x30] sm:$0xff] %v4047
        %4080 = vst [vmem:[%s451 + $0x38] sm:$0xff] %v4048
        %4081 = vst [vmem:[%s451 + $0x40] sm:$0xff] %v4049
        %4082 = vst [vmem:[%s451 + $0x48] sm:$0xff] %v4050
        %4083 = vst [vmem:[%s451 + $0x50] sm:$0xff] %v4051
        %4084 = vst [vmem:[%s451 + $0x58] sm:$0xff] %v4052
        %4085 = vst [vmem:[%s451 + $0x60] sm:$0xff] %v4053
        %4086 = vst [vmem:[%s451 + $0x68] sm:$0xff] %v4054
        %4087 = vst [vmem:[%s451 + $0x70] sm:$0xff] %v4055
        %4088 = vst [vmem:[%s451 + $0x78] sm:$0xff] %v4056
        %4089 = vst [vmem:[%s451 + $0x80] sm:$0xff] %v4057
        %4090 = vst [vmem:[%s451 + $0x88] sm:$0xff] %v4058
        %4091 = vst [vmem:[%s451 + $0x90] sm:$0xff] %v4059
        %4092 = vst [vmem:[%s451 + $0x98] sm:$0xff] %v4060
        %4093 = vst [vmem:[%s451 + $0xa0] sm:$0xff] %v4061
        %4094 = vst [vmem:[%s451 + $0xa8] sm:$0xff] %v4062
        %4095 = vst [vmem:[%s451 + $0xb0] sm:$0xff] %v4063
        %4096 = vst [vmem:[%s451 + $0xb8] sm:$0xff] %v4064
        %4097 = vst [vmem:[%s451 + $0xc0] sm:$0xff] %v4065
        %4098 = vst [vmem:[%s451 + $0xc8] sm:$0xff] %v4066
        %4099 = vst [vmem:[%s451 + $0xd0] sm:$0xff] %v4067
        %4100 = vst [vmem:[%s451 + $0xd8] sm:$0xff] %v4068
        %4101 = vst [vmem:[%s451 + $0xe0] sm:$0xff] %v4069
        %4102 = vst [vmem:[%s451 + $0xe8] sm:$0xff] %v4070
        %4103 = vst [vmem:[%s451 + $0xf0] sm:$0xff] %v4071
        %4104 = vst [vmem:[%s451 + $0xf8] sm:$0xff] %v4072
        %v4105 = vld [vmem:[#allocation12] sm:$0xff]
        %v4106 = vld [vmem:[#allocation12 + $0x8] sm:$0xff]
        %v4107 = vld [vmem:[#allocation12 + $0x10] sm:$0xff]
        %v4108 = vld [vmem:[#allocation12 + $0x18] sm:$0xff]
        %v4109 = vld [vmem:[#allocation12 + $0x20] sm:$0xff]
        %v4110 = vld [vmem:[#allocation12 + $0x28] sm:$0xff]
        %v4111 = vld [vmem:[#allocation12 + $0x30] sm:$0xff]
        %v4112 = vld [vmem:[#allocation12 + $0x38] sm:$0xff]
        %v4113 = vld [vmem:[#allocation12 + $0x40] sm:$0xff]
        %v4114 = vld [vmem:[#allocation12 + $0x48] sm:$0xff]
        %v4115 = vld [vmem:[#allocation12 + $0x50] sm:$0xff]
        %v4116 = vld [vmem:[#allocation12 + $0x58] sm:$0xff]
        %v4117 = vld [vmem:[#allocation12 + $0x60] sm:$0xff]
        %v4118 = vld [vmem:[#allocation12 + $0x68] sm:$0xff]
        %v4119 = vld [vmem:[#allocation12 + $0x70] sm:$0xff]
        %v4120 = vld [vmem:[#allocation12 + $0x78] sm:$0xff]
        %v4121 = vld [vmem:[%s11] sm:$0x1]
        %v4123 = vlaneseq
        %v4124 = vshrl.u32 %v4123, 7
        %v4125 = vsub.s32 0, %v4124
        %v4126 = vrot.slane %v4121, %v4125
        %4128 = vmatprep.subr.mxu0 0.0
        %4129 = vmatpush1.msra.mxu0 %v4120
        %4130 = vmatprep.subr.mxu0 0.0
        %4131 = vmatpush1.msra.mxu0 %v4119
        %4132 = vmatprep.subr.mxu0 0.0
        %4133 = vmatpush1.msra.mxu0 %v4118
        %4134 = vmatprep.subr.mxu0 0.0
        %4135 = vmatpush1.msra.mxu0 %v4117
        %4136 = vmatprep.subr.mxu0 0.0
        %4137 = vmatpush1.msra.mxu0 %v4116
        %4138 = vmatprep.subr.mxu0 0.0
        %4139 = vmatpush1.msra.mxu0 %v4115
        %4140 = vmatprep.subr.mxu0 0.0
        %4141 = vmatpush1.msra.mxu0 %v4114
        %4142 = vmatprep.subr.mxu0 0.0
        %4143 = vmatpush1.msra.mxu0 %v4113
        %4144 = vmatprep.subr.mxu0 0.0
        %4145 = vmatpush1.msra.mxu0 %v4112
        %4146 = vmatprep.subr.mxu0 0.0
        %4147 = vmatpush1.msra.mxu0 %v4111
        %4148 = vmatprep.subr.mxu0 0.0
        %4149 = vmatpush1.msra.mxu0 %v4110
        %4150 = vmatprep.subr.mxu0 0.0
        %4151 = vmatpush1.msra.mxu0 %v4109
        %4152 = vmatprep.subr.mxu0 0.0
        %4153 = vmatpush1.msra.mxu0 %v4108
        %4154 = vmatprep.subr.mxu0 0.0
        %4155 = vmatpush1.msra.mxu0 %v4107
        %4156 = vmatprep.subr.mxu0 0.0
        %4157 = vmatpush1.msra.mxu0 %v4106
        %4158 = vmatprep.subr.mxu0 0.0
        %4159 = vmatpush1.msra.mxu0 %v4105
        %4160 = vmatprep.subr.mxu0 0.0
        %4161 = vmatpush2.msra.mxu0 0.0
        %4162 = vmatprep.subr.mxu0 0.0
        %4163 = vmatpush2.msra.mxu0 0.0
        %4164 = vmatprep.subr.mxu0 0.0
        %4165 = vmatpush2.msra.mxu0 0.0
        %4166 = vmatprep.subr.mxu0 0.0
        %4167 = vmatpush2.msra.mxu0 0.0
        %4168 = vmatprep.subr.mxu0 0.0
        %4169 = vmatpush2.msra.mxu0 0.0
        %4170 = vmatprep.subr.mxu0 0.0
        %4171 = vmatpush2.msra.mxu0 0.0
        %4172 = vmatprep.subr.mxu0 0.0
        %4173 = vmatpush2.msra.mxu0 0.0
        %4174 = vmatprep.subr.mxu0 0.0
        %4175 = vmatpush2.msra.mxu0 0.0
        %4176 = vmatprep.subr.mxu0 0.0
        %4177 = vmatpush2.msra.mxu0 0.0
        %4178 = vmatprep.subr.mxu0 0.0
        %4179 = vmatpush2.msra.mxu0 0.0
        %4180 = vmatprep.subr.mxu0 0.0
        %4181 = vmatpush2.msra.mxu0 0.0
        %4182 = vmatprep.subr.mxu0 0.0
        %4183 = vmatpush2.msra.mxu0 0.0
        %4184 = vmatprep.subr.mxu0 0.0
        %4185 = vmatpush2.msra.mxu0 0.0
        %4186 = vmatprep.subr.mxu0 0.0
        %4187 = vmatpush2.msra.mxu0 0.0
        %4188 = vmatprep.subr.mxu0 0.0
        %4189 = vmatpush2.msra.mxu0 0.0
        %4190 = vmatprep.subr.mxu0 0.0
        %4191 = vmatpush2.msra.mxu0 0.0
        %4192 = vmatprep.mubr.f32.mxu0 0.0
        %4193 = vmatmul.mubr.f32.gmra.mxu0 %v3698
        %v4194 = vpop.f32.mrf.mxu0
        %v4195 = vadd.f32 %v4126, %v4194
        %v4196 = vpop.f32.mrf.mxu0
        %4197 = vmatprep.mubr.f32.mxu0 0.0
        %4198 = vmatmul.mubr.f32.gmra.mxu0 %v3700
        %v4199 = vpop.f32.mrf.mxu0
        %v4200 = vadd.f32 %v4126, %v4199
        %v4201 = vpop.f32.mrf.mxu0
        %4202 = vmatprep.mubr.f32.mxu0 0.0
        %4203 = vmatmul.mubr.f32.gmra.mxu0 %v3702
        %v4204 = vpop.f32.mrf.mxu0
        %v4205 = vadd.f32 %v4126, %v4204
        %v4206 = vpop.f32.mrf.mxu0
        %4207 = vmatprep.mubr.f32.mxu0 0.0
        %4208 = vmatmul.mubr.f32.gmra.mxu0 %v3704
        %v4209 = vpop.f32.mrf.mxu0
        %v4210 = vadd.f32 %v4126, %v4209
        %v4211 = vpop.f32.mrf.mxu0
        %4212 = vmatprep.mubr.f32.mxu0 0.0
        %4213 = vmatmul.mubr.f32.gmra.mxu0 %v3706
        %v4214 = vpop.f32.mrf.mxu0
        %v4215 = vadd.f32 %v4126, %v4214
        %v4216 = vpop.f32.mrf.mxu0
        %4217 = vmatprep.mubr.f32.mxu0 0.0
        %4218 = vmatmul.mubr.f32.gmra.mxu0 %v3708
        %v4219 = vpop.f32.mrf.mxu0
        %v4220 = vadd.f32 %v4126, %v4219
        %v4221 = vpop.f32.mrf.mxu0
        %4222 = vmatprep.mubr.f32.mxu0 0.0
        %4223 = vmatmul.mubr.f32.gmra.mxu0 %v3710
        %v4224 = vpop.f32.mrf.mxu0
        %v4225 = vadd.f32 %v4126, %v4224
        %v4226 = vpop.f32.mrf.mxu0
        %4227 = vmatprep.mubr.f32.mxu0 0.0
        %4228 = vmatmul.mubr.f32.gmra.mxu0 %v3712
        %v4229 = vpop.f32.mrf.mxu0
        %v4230 = vadd.f32 %v4126, %v4229
        %v4231 = vpop.f32.mrf.mxu0
        %4232 = vmatprep.mubr.f32.mxu0 0.0
        %4233 = vmatmul.mubr.f32.gmra.mxu0 %v3714
        %v4234 = vpop.f32.mrf.mxu0
        %v4235 = vadd.f32 %v4126, %v4234
        %v4236 = vpop.f32.mrf.mxu0
        %4237 = vmatprep.mubr.f32.mxu0 0.0
        %4238 = vmatmul.mubr.f32.gmra.mxu0 %v3716
        %v4239 = vpop.f32.mrf.mxu0
        %v4240 = vadd.f32 %v4126, %v4239
        %v4241 = vpop.f32.mrf.mxu0
        %4242 = vmatprep.mubr.f32.mxu0 0.0
        %4243 = vmatmul.mubr.f32.gmra.mxu0 %v3718
        %v4244 = vpop.f32.mrf.mxu0
        %v4245 = vadd.f32 %v4126, %v4244
        %v4246 = vpop.f32.mrf.mxu0
        %4247 = vmatprep.mubr.f32.mxu0 0.0
        %4248 = vmatmul.mubr.f32.gmra.mxu0 %v3720
        %v4249 = vpop.f32.mrf.mxu0
        %v4250 = vadd.f32 %v4126, %v4249
        %v4251 = vpop.f32.mrf.mxu0
        %4252 = vmatprep.mubr.f32.mxu0 0.0
        %4253 = vmatmul.mubr.f32.gmra.mxu0 %v3722
        %v4254 = vpop.f32.mrf.mxu0
        %v4255 = vadd.f32 %v4126, %v4254
        %v4256 = vpop.f32.mrf.mxu0
        %4257 = vmatprep.mubr.f32.mxu0 0.0
        %4258 = vmatmul.mubr.f32.gmra.mxu0 %v3724
        %v4259 = vpop.f32.mrf.mxu0
        %v4260 = vadd.f32 %v4126, %v4259
        %v4261 = vpop.f32.mrf.mxu0
        %4262 = vmatprep.mubr.f32.mxu0 0.0
        %4263 = vmatmul.mubr.f32.gmra.mxu0 %v3726
        %v4264 = vpop.f32.mrf.mxu0
        %v4265 = vadd.f32 %v4126, %v4264
        %v4266 = vpop.f32.mrf.mxu0
        %4267 = vmatprep.mubr.f32.mxu0 0.0
        %4268 = vmatmul.mubr.f32.gmra.mxu0 %v3728
        %v4269 = vpop.f32.mrf.mxu0
        %v4270 = vadd.f32 %v4126, %v4269
        %v4271 = vpop.f32.mrf.mxu0
        %4272 = vmatprep.mubr.f32.mxu0 0.0
        %4273 = vmatmul.mubr.f32.gmra.mxu0 %v3730
        %v4274 = vpop.f32.mrf.mxu0
        %v4275 = vadd.f32 %v4126, %v4274
        %v4276 = vpop.f32.mrf.mxu0
        %4277 = vmatprep.mubr.f32.mxu0 0.0
        %4278 = vmatmul.mubr.f32.gmra.mxu0 %v3732
        %v4279 = vpop.f32.mrf.mxu0
        %v4280 = vadd.f32 %v4126, %v4279
        %v4281 = vpop.f32.mrf.mxu0
        %4282 = vmatprep.mubr.f32.mxu0 0.0
        %4283 = vmatmul.mubr.f32.gmra.mxu0 %v3734
        %v4284 = vpop.f32.mrf.mxu0
        %v4285 = vadd.f32 %v4126, %v4284
        %v4286 = vpop.f32.mrf.mxu0
        %4287 = vmatprep.mubr.f32.mxu0 0.0
        %4288 = vmatmul.mubr.f32.gmra.mxu0 %v3736
        %v4289 = vpop.f32.mrf.mxu0
        %v4290 = vadd.f32 %v4126, %v4289
        %v4291 = vpop.f32.mrf.mxu0
        %4292 = vmatprep.mubr.f32.mxu0 0.0
        %4293 = vmatmul.mubr.f32.gmra.mxu0 %v3738
        %v4294 = vpop.f32.mrf.mxu0
        %v4295 = vadd.f32 %v4126, %v4294
        %v4296 = vpop.f32.mrf.mxu0
        %4297 = vmatprep.mubr.f32.mxu0 0.0
        %4298 = vmatmul.mubr.f32.gmra.mxu0 %v3740
        %v4299 = vpop.f32.mrf.mxu0
        %v4300 = vadd.f32 %v4126, %v4299
        %v4301 = vpop.f32.mrf.mxu0
        %4302 = vmatprep.mubr.f32.mxu0 0.0
        %4303 = vmatmul.mubr.f32.gmra.mxu0 %v3742
        %v4304 = vpop.f32.mrf.mxu0
        %v4305 = vadd.f32 %v4126, %v4304
        %v4306 = vpop.f32.mrf.mxu0
        %4307 = vmatprep.mubr.f32.mxu0 0.0
        %4308 = vmatmul.mubr.f32.gmra.mxu0 %v3744
        %v4309 = vpop.f32.mrf.mxu0
        %v4310 = vadd.f32 %v4126, %v4309
        %v4311 = vpop.f32.mrf.mxu0
        %4312 = vmatprep.mubr.f32.mxu0 0.0
        %4313 = vmatmul.mubr.f32.gmra.mxu0 %v3746
        %v4314 = vpop.f32.mrf.mxu0
        %v4315 = vadd.f32 %v4126, %v4314
        %v4316 = vpop.f32.mrf.mxu0
        %4317 = vmatprep.mubr.f32.mxu0 0.0
        %4318 = vmatmul.mubr.f32.gmra.mxu0 %v3748
        %v4319 = vpop.f32.mrf.mxu0
        %v4320 = vadd.f32 %v4126, %v4319
        %v4321 = vpop.f32.mrf.mxu0
        %4322 = vmatprep.mubr.f32.mxu0 0.0
        %4323 = vmatmul.mubr.f32.gmra.mxu0 %v3750
        %v4324 = vpop.f32.mrf.mxu0
        %v4325 = vadd.f32 %v4126, %v4324
        %v4326 = vpop.f32.mrf.mxu0
        %4327 = vmatprep.mubr.f32.mxu0 0.0
        %4328 = vmatmul.mubr.f32.gmra.mxu0 %v3752
        %v4329 = vpop.f32.mrf.mxu0
        %v4330 = vadd.f32 %v4126, %v4329
        %v4331 = vpop.f32.mrf.mxu0
        %4332 = vmatprep.mubr.f32.mxu0 0.0
        %4333 = vmatmul.mubr.f32.gmra.mxu0 %v3754
        %v4334 = vpop.f32.mrf.mxu0
        %v4335 = vadd.f32 %v4126, %v4334
        %v4336 = vpop.f32.mrf.mxu0
        %4337 = vmatprep.mubr.f32.mxu0 0.0
        %4338 = vmatmul.mubr.f32.gmra.mxu0 %v3756
        %v4339 = vpop.f32.mrf.mxu0
        %v4340 = vadd.f32 %v4126, %v4339
        %v4341 = vpop.f32.mrf.mxu0
        %4342 = vmatprep.mubr.f32.mxu0 0.0
        %4343 = vmatmul.mubr.f32.gmra.mxu0 %v3758
        %v4344 = vpop.f32.mrf.mxu0
        %v4345 = vadd.f32 %v4126, %v4344
        %v4346 = vpop.f32.mrf.mxu0
        %4347 = vmatprep.mubr.f32.mxu0 0.0
        %4348 = vmatmul.mubr.f32.gmra.mxu0 %v3760
        %v4349 = vpop.f32.mrf.mxu0
        %v4350 = vadd.f32 %v4126, %v4349
        %v4351 = vpop.f32.mrf.mxu0
        %4352 = vdwg.mxu0
        %v4353 = vld [vmem:[%s406] sm:$0xff]
        %v4354 = vld [vmem:[%s406 + $0x8] sm:$0xff]
        %v4355 = vld [vmem:[%s406 + $0x10] sm:$0xff]
        %v4356 = vld [vmem:[%s406 + $0x18] sm:$0xff]
        %v4357 = vld [vmem:[%s406 + $0x20] sm:$0xff]
        %v4358 = vld [vmem:[%s406 + $0x28] sm:$0xff]
        %v4359 = vld [vmem:[%s406 + $0x30] sm:$0xff]
        %v4360 = vld [vmem:[%s406 + $0x38] sm:$0xff]
        %v4361 = vld [vmem:[%s406 + $0x40] sm:$0xff]
        %v4362 = vld [vmem:[%s406 + $0x48] sm:$0xff]
        %v4363 = vld [vmem:[%s406 + $0x50] sm:$0xff]
        %v4364 = vld [vmem:[%s406 + $0x58] sm:$0xff]
        %v4365 = vld [vmem:[%s406 + $0x60] sm:$0xff]
        %v4366 = vld [vmem:[%s406 + $0x68] sm:$0xff]
        %v4367 = vld [vmem:[%s406 + $0x70] sm:$0xff]
        %v4368 = vld [vmem:[%s406 + $0x78] sm:$0xff]
        %v4369 = vld [vmem:[%s406 + $0x80] sm:$0xff]
        %v4370 = vld [vmem:[%s406 + $0x88] sm:$0xff]
        %v4371 = vld [vmem:[%s406 + $0x90] sm:$0xff]
        %v4372 = vld [vmem:[%s406 + $0x98] sm:$0xff]
        %v4373 = vld [vmem:[%s406 + $0xa0] sm:$0xff]
        %v4374 = vld [vmem:[%s406 + $0xa8] sm:$0xff]
        %v4375 = vld [vmem:[%s406 + $0xb0] sm:$0xff]
        %v4376 = vld [vmem:[%s406 + $0xb8] sm:$0xff]
        %v4377 = vld [vmem:[%s406 + $0xc0] sm:$0xff]
        %v4378 = vld [vmem:[%s406 + $0xc8] sm:$0xff]
        %v4379 = vld [vmem:[%s406 + $0xd0] sm:$0xff]
        %v4380 = vld [vmem:[%s406 + $0xd8] sm:$0xff]
        %v4381 = vld [vmem:[%s406 + $0xe0] sm:$0xff]
        %v4382 = vld [vmem:[%s406 + $0xe8] sm:$0xff]
        %v4383 = vld [vmem:[%s406 + $0xf0] sm:$0xff]
        %v4384 = vld [vmem:[%s406 + $0xf8] sm:$0xff]
        %v4385 = vadd.f32 %v4195, %v4353
        %v4386 = vadd.f32 %v4200, %v4354
        %v4387 = vadd.f32 %v4205, %v4355
        %v4388 = vadd.f32 %v4210, %v4356
        %v4389 = vadd.f32 %v4215, %v4357
        %v4390 = vadd.f32 %v4220, %v4358
        %v4391 = vadd.f32 %v4225, %v4359
        %v4392 = vadd.f32 %v4230, %v4360
        %v4393 = vadd.f32 %v4235, %v4361
        %v4394 = vadd.f32 %v4240, %v4362
        %v4395 = vadd.f32 %v4245, %v4363
        %v4396 = vadd.f32 %v4250, %v4364
        %v4397 = vadd.f32 %v4255, %v4365
        %v4398 = vadd.f32 %v4260, %v4366
        %v4399 = vadd.f32 %v4265, %v4367
        %v4400 = vadd.f32 %v4270, %v4368
        %v4401 = vadd.f32 %v4275, %v4369
        %v4402 = vadd.f32 %v4280, %v4370
        %v4403 = vadd.f32 %v4285, %v4371
        %v4404 = vadd.f32 %v4290, %v4372
        %v4405 = vadd.f32 %v4295, %v4373
        %v4406 = vadd.f32 %v4300, %v4374
        %v4407 = vadd.f32 %v4305, %v4375
        %v4408 = vadd.f32 %v4310, %v4376
        %v4409 = vadd.f32 %v4315, %v4377
        %v4410 = vadd.f32 %v4320, %v4378
        %v4411 = vadd.f32 %v4325, %v4379
        %v4412 = vadd.f32 %v4330, %v4380
        %v4413 = vadd.f32 %v4335, %v4381
        %v4414 = vadd.f32 %v4340, %v4382
        %v4415 = vadd.f32 %v4345, %v4383
        %v4416 = vadd.f32 %v4350, %v4384
        %4417 = vst [vmem:[%s458] sm:$0xff] %v4385
        %4418 = vst [vmem:[%s458 + $0x8] sm:$0xff] %v4386
        %4419 = vst [vmem:[%s458 + $0x10] sm:$0xff] %v4387
        %4420 = vst [vmem:[%s458 + $0x18] sm:$0xff] %v4388
        %4421 = vst [vmem:[%s458 + $0x20] sm:$0xff] %v4389
        %4422 = vst [vmem:[%s458 + $0x28] sm:$0xff] %v4390
        %4423 = vst [vmem:[%s458 + $0x30] sm:$0xff] %v4391
        %4424 = vst [vmem:[%s458 + $0x38] sm:$0xff] %v4392
        %4425 = vst [vmem:[%s458 + $0x40] sm:$0xff] %v4393
        %4426 = vst [vmem:[%s458 + $0x48] sm:$0xff] %v4394
        %4427 = vst [vmem:[%s458 + $0x50] sm:$0xff] %v4395
        %4428 = vst [vmem:[%s458 + $0x58] sm:$0xff] %v4396
        %4429 = vst [vmem:[%s458 + $0x60] sm:$0xff] %v4397
        %4430 = vst [vmem:[%s458 + $0x68] sm:$0xff] %v4398
        %4431 = vst [vmem:[%s458 + $0x70] sm:$0xff] %v4399
        %4432 = vst [vmem:[%s458 + $0x78] sm:$0xff] %v4400
        %4433 = vst [vmem:[%s458 + $0x80] sm:$0xff] %v4401
        %4434 = vst [vmem:[%s458 + $0x88] sm:$0xff] %v4402
        %4435 = vst [vmem:[%s458 + $0x90] sm:$0xff] %v4403
        %4436 = vst [vmem:[%s458 + $0x98] sm:$0xff] %v4404
        %4437 = vst [vmem:[%s458 + $0xa0] sm:$0xff] %v4405
        %4438 = vst [vmem:[%s458 + $0xa8] sm:$0xff] %v4406
        %4439 = vst [vmem:[%s458 + $0xb0] sm:$0xff] %v4407
        %4440 = vst [vmem:[%s458 + $0xb8] sm:$0xff] %v4408
        %4441 = vst [vmem:[%s458 + $0xc0] sm:$0xff] %v4409
        %4442 = vst [vmem:[%s458 + $0xc8] sm:$0xff] %v4410
        %4443 = vst [vmem:[%s458 + $0xd0] sm:$0xff] %v4411
        %4444 = vst [vmem:[%s458 + $0xd8] sm:$0xff] %v4412
        %4445 = vst [vmem:[%s458 + $0xe0] sm:$0xff] %v4413
        %4446 = vst [vmem:[%s458 + $0xe8] sm:$0xff] %v4414
        %4447 = vst [vmem:[%s458 + $0xf0] sm:$0xff] %v4415
        %4448 = vst [vmem:[%s458 + $0xf8] sm:$0xff] %v4416
        %s4449 = sand.u32 %s242, 1
        %s4450 = scalar_lea.sflag [#allocation8], %s4449
        %s4451 = sand.u32 %s242, 1
        %s4452 = smul.addr %s4451, 256
        %s4453 = scalar_lea.vmem [#allocation14], %s4452
        %s4454 = sand.u32 %s270, 1
        %s4455 = scalar_lea.sflag [#allocation16], %s4454
        %s4456 = sand.u32 %s270, 1
        %s4457 = smul.addr %s4456, 256
        %s4458 = scalar_lea.vmem [#allocation15], %s4457
        // Predicated region
        $region90: #{tpu_custom_call.1} parent=51 // pred_check
          %p4459 = pneg %p252
        $region91: #{tpu_custom_call.1} parent=51 // pred_check_branch
          %4461 = sbr.rel (%p4459) target = $region93
        $region92: #{tpu_custom_call.1} parent=51 // pred_region
          %s4462 = smul.u32 32, %s43
          %s4464 = ssub.s32 4096, 4096
          %4465 = vsyncadd %s4450, %s4464
          %s4466 = smul.addr %s42, 32
          %s4467 = sadd.s32 %s4462, %s4466
          %s4468 = smul.addr %s4467, 128
          %s4469 = scalar_lea.hbm %s12, %s4468
          %s4470 = sshll.u32 %s4453, 4
          %s4471 = int_to_ptr.vmem [resolvable:$true] %s4470
          %4476 = dma.vmem_to_hbm [thread:$0]  %s4471, 4096, %s4469, %s4450, 128, 128, 8
        $region93: #{tpu_custom_call.1} parent=51 // pred_fallthru
          _
        // Predicated region
        $region94: #{tpu_custom_call.1} parent=51 // pred_check
          %p4477 = pneg %p280
        $region95: #{tpu_custom_call.1} parent=51 // pred_check_branch
          %4479 = sbr.rel (%p4477) target = $region97
        $region96: #{tpu_custom_call.1} parent=51 // pred_region
          %s4480 = smul.u32 32, %s43
          %s4482 = ssub.s32 4096, 4096
          %4483 = vsyncadd %s4455, %s4482
          %s4484 = smul.addr %s42, 32
          %s4485 = sadd.s32 %s4480, %s4484
          %s4486 = smul.addr %s4485, 128
          %s4487 = scalar_lea.hbm %s13, %s4486
          %s4488 = sshll.u32 %s4458, 4
          %s4489 = int_to_ptr.vmem [resolvable:$true] %s4488
          %4494 = dma.vmem_to_hbm [thread:$0]  %s4489, 4096, %s4487, %s4455, 128, 128, 8
        $region97: #{tpu_custom_call.1} parent=51 // pred_fallthru
          _
      $region52: #{tpu_custom_call.1} parent=5 // pred_fallthru
        _
      %p4495 = scmp.le.s32.totalorder 2, %s33
      // Predicated region
      $region98: #{tpu_custom_call.1} parent=5 // pred_check
        %p4496 = pneg %p4495
      $region99: #{tpu_custom_call.1} parent=5 // pred_check_branch
        %4498 = sbr.rel (%p4496) target = $region101
      $region100: #{tpu_custom_call.1} parent=5 // pred_region
        %s4499 = ssub.s32 %s33, 2
        // Predicated region
        $region102: #{tpu_custom_call.1} parent=100 // pred_check
          %p4500 = pneg %p258
        $region103: #{tpu_custom_call.1} parent=100 // pred_check_branch
          %4502 = sbr.rel (%p4500) target = $region105
        $region104: #{tpu_custom_call.1} parent=100 // pred_region
          %s4503 = sand.u32 %s243, 1
          %s4504 = scalar_lea.sflag [#allocation8], %s4503
          %s4505 = sand.u32 %s243, 1
          %s4506 = smul.addr %s4505, 256
          %s4507 = scalar_lea.vmem [#allocation14], %s4506
          %4508 = dma.done %s4504, 4096
        $region105: #{tpu_custom_call.1} parent=100 // pred_fallthru
          _
        // Predicated region
        $region106: #{tpu_custom_call.1} parent=100 // pred_check
          %p4509 = pneg %p286
        $region107: #{tpu_custom_call.1} parent=100 // pred_check_branch
          %4511 = sbr.rel (%p4509) target = $region109
        $region108: #{tpu_custom_call.1} parent=100 // pred_region
          %s4512 = sand.u32 %s271, 1
          %s4513 = scalar_lea.sflag [#allocation16], %s4512
          %s4514 = sand.u32 %s271, 1
          %s4515 = smul.addr %s4514, 256
          %s4516 = scalar_lea.vmem [#allocation15], %s4515
          %4517 = dma.done %s4513, 4096
        $region109: #{tpu_custom_call.1} parent=100 // pred_fallthru
          _
      $region101: #{tpu_custom_call.1} parent=5 // pred_fallthru
        _
    $region6: #{tpu_custom_call.1} parent=1 // loop_footer
      %s37 = sadd.s32 1, %s33
    $region7: #{tpu_custom_call.1} parent=1 // loop_footer_branch
      %32 = sbr.rel target = $region3
    $region8: #{tpu_custom_call.1} parent=1 // loop_exit
      _
    %4518 = vsyncpa [#allocation7], 1
    %s4519 = scalar_lea.sflag [#allocation7], 1
    %4520 = vsyncpa %s4519, 1
    %4521 = vsyncpa [#allocation10], 1
    %s4522 = scalar_lea.sflag [#allocation10], 1
    %4523 = vsyncpa %s4522, 1
    %4524 = vsyncpa [#allocation13], 1
    %4525 = vsyncpa [#allocation8], 1
    %s4526 = scalar_lea.sflag [#allocation8], 1
    %4527 = vsyncpa %s4526, 1
    %4528 = vsyncpa [#allocation16], 1
    %s4529 = scalar_lea.sflag [#allocation16], 1
    %4530 = vsyncpa %s4529, 1

</llo_original>
